<compile_context>
chip_gen: v6e
topology: v6e:2x2x1
jax: 0.10.0
libtpu: 0.0.40
codegen_flags: <defaults>
</compile_context>

<pallas_src>
import functools

import jax
import jax.numpy as jnp
from jax import lax
from jax.experimental import pallas as pl
from jax.experimental.pallas import tpu as pltpu  # noqa: F401  (TPU backend)

# ----------------------------- configuration --------------------------------
SEQ_LEN = 64          # configs.seq_len
PATCH_SIZE = 16       # configs.patch_size
STRIDE = 8            # configs.stride
PRED_LEN = 32         # configs.pred_len
D_MODEL = 64          # configs.d_model (== GPT-2 n_embd here)
N_HEADS = 4
HEAD_DIM = D_MODEL // N_HEADS
GPT_LAYERS = 2        # configs.gpt_layers
PATCH_NUM = (SEQ_LEN - PATCH_SIZE) // STRIDE + 1 + 1   # +1 from padding_patch_layer

BATCH = 2
CHANNELS = 3          # M

_NEG_INF = -1e30
_VEC_ROWS_PER_LAYER = 16          # per-layer group stride in the vector slab
_W64_ROWS_PER_LAYER = 5 * D_MODEL  # proj_w (64) + fc_proj_w (256) per layer


# ------------------------------ math helpers --------------------------------
def _gelu_new(x):
    # GPT-2 "gelu_new" (tanh approximation) — tanh runs on the EUP.
    return 0.5 * x * (1.0 + jnp.tanh(jnp.sqrt(2.0 / jnp.pi) * (x + 0.044715 * x ** 3)))


def _layer_norm(x, g, b, eps=1e-5):
    mu = jnp.mean(x, axis=-1, keepdims=True)
    xc = x - mu
    var = jnp.mean(xc * xc, axis=-1, keepdims=True)
    return xc * lax.rsqrt(var + eps) * g + b


# ------------------------------ fused kernel --------------------------------
def _fused_ofa_kernel(x_ref, vecs_ref, wqkv_ref, w64_ref, w256_ref, out_ref,
                      *, n_layers):
    rows, seq_len = x_ref.shape          # (padded series count, L)
    n_out = out_ref.shape[0]             # true B*M
    t_rows = PATCH_NUM * rows            # total token rows

    # ---- RevIN-style per-series normalization over the time axis (f32) ----
    x = x_ref[...]
    mu = jnp.mean(x, axis=-1, keepdims=True)
    xc = x - mu
    var = jnp.mean(xc * xc, axis=-1, keepdims=True)      # unbiased=False
    std = jnp.sqrt(var + 1e-5)
    xn = xc * lax.rsqrt(var + 1e-5)

    # ---- ReplicationPad1d((0, stride)) + unfold into patches ----
    # Token rows ordered (patch, series): row = n * rows + series.
    xp = jnp.concatenate(
        [xn, jnp.broadcast_to(xn[:, seq_len - 1:seq_len], (rows, STRIDE))], axis=1)
    patches = jnp.concatenate(
        [xp[:, n * STRIDE:n * STRIDE + PATCH_SIZE] for n in range(PATCH_NUM)],
        axis=0)                                          # (t_rows, PATCH_SIZE)

    # ---- in_layer: Linear(patch_size -> d_model) + (wpe + in_b) table ----
    in_w = w64_ref[0:PATCH_SIZE, :]                      # bf16 (16, 64)
    h = jnp.dot(patches.astype(jnp.bfloat16), in_w,
                preferred_element_type=jnp.float32)
    h = h + vecs_ref[0:t_rows, :]                        # (t_rows, D_MODEL) f32

    # ---- block-diagonal causal additive mask, built in-kernel ----
    # row r = n_r*rows + s_r ; attend iff same series and causal
    #   <=>  (r - c) == k*rows for some k in [0, PATCH_NUM)
    r = lax.broadcasted_iota(jnp.int32, (t_rows, t_rows), 0)
    c = lax.broadcasted_iota(jnp.int32, (t_rows, t_rows), 1)
    d = r - c
    allowed = functools.reduce(
        jnp.logical_or, [d == k * rows for k in range(PATCH_NUM)])
    bias = jnp.where(allowed, 0.0, _NEG_INF).astype(jnp.float32)

    scale = 1.0 / (HEAD_DIM ** 0.5)

    # TODO(synk): GPT-2 dropout (module is in .train()) is stochastic; omitted
    #             for determinism (matches eval-mode numerics).
    for li in range(n_layers):
        vb = t_rows + li * _VEC_ROWS_PER_LAYER           # vector-slab base
        wb = PATCH_SIZE + li * _W64_ROWS_PER_LAYER       # w64-slab base

        ln1_g = vecs_ref[vb + 0:vb + 1, :]
        ln1_b = vecs_ref[vb + 1:vb + 2, :]
        bq = vecs_ref[vb + 2:vb + 3, :]
        bk = vecs_ref[vb + 3:vb + 4, :]
        bv = vecs_ref[vb + 4:vb + 5, :]
        proj_b = vecs_ref[vb + 5:vb + 6, :]
        ln2_g = vecs_ref[vb + 6:vb + 7, :]
        ln2_b = vecs_ref[vb + 7:vb + 8, :]
        fc_b = jnp.concatenate(
            [vecs_ref[vb + 8 + i:vb + 9 + i, :] for i in range(4)], axis=-1)
        fc_proj_b = vecs_ref[vb + 12:vb + 13, :]

        wqkv = wqkv_ref[li * D_MODEL:(li + 1) * D_MODEL, :]        # bf16 (64,192)
        proj_w = w64_ref[wb:wb + D_MODEL, :]                       # bf16 (64,64)
        fc_proj_w = w64_ref[wb + D_MODEL:wb + 5 * D_MODEL, :]      # bf16 (256,64)
        fc_w = w256_ref[li * D_MODEL:(li + 1) * D_MODEL, :]        # bf16 (64,256)

        # ----- attention sub-block -----
        x2 = _layer_norm(h, ln1_g, ln1_b)
        qkv = jnp.dot(x2.astype(jnp.bfloat16), wqkv,
                      preferred_element_type=jnp.float32)          # (t_rows, 192)
        q = (qkv[:, 0:D_MODEL] + bq).astype(jnp.bfloat16)
        k = (qkv[:, D_MODEL:2 * D_MODEL] + bk).astype(jnp.bfloat16)
        v = (qkv[:, 2 * D_MODEL:3 * D_MODEL] + bv).astype(jnp.bfloat16)

        ctx_heads = []
        for hd in range(N_HEADS):
            lo, hi = hd * HEAD_DIM, (hd + 1) * HEAD_DIM
            qh, kh, vh = q[:, lo:hi], k[:, lo:hi], v[:, lo:hi]
            # scores = q @ k^T  (rhs contracted on its last dim — MXU-native)
            s = lax.dot_general(qh, kh, (((1,), (1,)), ((), ())),
                                preferred_element_type=jnp.float32) * scale + bias
            m = jnp.max(s, axis=-1, keepdims=True)
            p = jnp.exp(s - m)
            p = p * pl.reciprocal(jnp.sum(p, axis=-1, keepdims=True), approx=True)
            ctx_heads.append(jnp.dot(p.astype(jnp.bfloat16), vh,
                                     preferred_element_type=jnp.float32))
        ctx = jnp.concatenate(ctx_heads, axis=-1)                  # (t_rows, 64)
        attn = jnp.dot(ctx.astype(jnp.bfloat16), proj_w,
                       preferred_element_type=jnp.float32) + proj_b
        h = h + attn

        # ----- MLP sub-block -----
        x2 = _layer_norm(h, ln2_g, ln2_b)
        m1 = _gelu_new(jnp.dot(x2.astype(jnp.bfloat16), fc_w,
                               preferred_element_type=jnp.float32) + fc_b)
        m2 = jnp.dot(m1.astype(jnp.bfloat16), fc_proj_w,
                     preferred_element_type=jnp.float32) + fc_proj_b
        h = h + m2

    fb = t_rows + n_layers * _VEC_ROWS_PER_LAYER
    lnf_g = vecs_ref[fb + 0:fb + 1, :]
    lnf_b = vecs_ref[fb + 1:fb + 2, :]
    out_b = vecs_ref[fb + 2:fb + 3, 0:PRED_LEN]

    h = _layer_norm(h, lnf_g, lnf_b)

    # ---- out_layer: Linear(d_model*patch_num -> pred_len) as ONE matmul ----
    # lane-concatenate the per-patch (rows, D_MODEL) slices -> (rows, 512)
    h_cat = jnp.concatenate(
        [h[n * rows:(n + 1) * rows, :] for n in range(PATCH_NUM)], axis=-1)
    ow_base = PATCH_SIZE + n_layers * _W64_ROWS_PER_LAYER
    out_w = w64_ref[ow_base:ow_base + D_MODEL * PATCH_NUM, :]      # bf16 (512,64), padded N
    out_full = jnp.dot(h_cat.astype(jnp.bfloat16), out_w,
                       preferred_element_type=jnp.float32)         # (rows, 64)
    out = out_full[:, 0:PRED_LEN] + out_b

    # ---- RevIN de-normalization; only the real series leave VMEM ----
    out = out * std + mu
    out_ref[...] = out[:n_out, :].astype(out_ref.dtype)


# ------------------------------ parameter init -------------------------------
def init_params(key):
    keys = iter(jax.random.split(key, 64))

    def nrm(shape, scale=0.02):
        return jax.random.normal(next(keys), shape, jnp.float32) * scale

    p = {
        "in_w": nrm((PATCH_SIZE, D_MODEL)),
        "in_b": jnp.zeros((D_MODEL,), jnp.float32),
        "wpe": nrm((PATCH_NUM, D_MODEL), 0.01),
        "lnf_g": jnp.ones((D_MODEL,), jnp.float32),
        "lnf_b": jnp.zeros((D_MODEL,), jnp.float32),
        "out_w": nrm((D_MODEL * PATCH_NUM, PRED_LEN)),
        "out_b": jnp.zeros((PRED_LEN,), jnp.float32),
        "blocks": [],
    }
    for _ in range(GPT_LAYERS):
        p["blocks"].append(dict(
            ln1_g=jnp.ones((D_MODEL,), jnp.float32),
            ln1_b=jnp.zeros((D_MODEL,), jnp.float32),
            attn_w=nrm((D_MODEL, 3 * D_MODEL)),
            attn_b=jnp.zeros((3 * D_MODEL,), jnp.float32),
            proj_w=nrm((D_MODEL, D_MODEL)),
            proj_b=jnp.zeros((D_MODEL,), jnp.float32),
            ln2_g=jnp.ones((D_MODEL,), jnp.float32),
            ln2_b=jnp.zeros((D_MODEL,), jnp.float32),
            fc_w=nrm((D_MODEL, 4 * D_MODEL)),
            fc_b=jnp.zeros((4 * D_MODEL,), jnp.float32),
            fc_proj_w=nrm((4 * D_MODEL, D_MODEL)),
            fc_proj_b=jnp.zeros((D_MODEL,), jnp.float32),
        ))
    return p


# ----------------------------- parameter packing ------------------------------
def _pack_params(params, rows):
    """Packs all parameters into 4 VMEM-friendly slabs (4 input DMAs)."""
    n_layers = len(params["blocks"])
    zeros64 = jnp.zeros((D_MODEL,), jnp.float32)

    # ---- f32 vector slab (N, 64): position table + all gains/biases ----
    pos = jnp.repeat(params["wpe"], rows, axis=0) + params["in_b"][None, :]
    vec_rows = [pos]                                     # (PATCH_NUM*rows, 64)
    for blk in params["blocks"]:
        bq, bk, bv = jnp.split(blk["attn_b"], 3)
        grp = jnp.stack([
            blk["ln1_g"], blk["ln1_b"], bq, bk, bv, blk["proj_b"],
            blk["ln2_g"], blk["ln2_b"],
            blk["fc_b"][0 * D_MODEL:1 * D_MODEL], blk["fc_b"][1 * D_MODEL:2 * D_MODEL],
            blk["fc_b"][2 * D_MODEL:3 * D_MODEL], blk["fc_b"][3 * D_MODEL:4 * D_MODEL],
            blk["fc_proj_b"], zeros64, zeros64, zeros64,
        ])                                               # (_VEC_ROWS_PER_LAYER, 64)
        vec_rows.append(grp)
    out_b_pad = jnp.zeros((D_MODEL,), jnp.float32).at[:PRED_LEN].set(params["out_b"])
    fin = jnp.stack([params["lnf_g"], params["lnf_b"], out_b_pad,
                     zeros64, zeros64, zeros64, zeros64, zeros64])
    vec_rows.append(fin)
    vecs = jnp.concatenate(vec_rows, axis=0).astype(jnp.float32)

    # ---- bf16 fused-QKV weight slab (n_layers*64, 192) ----
    wqkv = jnp.concatenate(
        [blk["attn_w"] for blk in params["blocks"]], axis=0).astype(jnp.bfloat16)

    # ---- bf16 width-64 weight slab: in_w | (proj_w, fc_proj_w)xL | out_w ----
    w64_parts = [params["in_w"]]
    for blk in params["blocks"]:
        w64_parts += [blk["proj_w"], blk["fc_proj_w"]]
    out_w_pad = jnp.zeros((D_MODEL * PATCH_NUM, D_MODEL),
                          jnp.float32).at[:, :PRED_LEN].set(params["out_w"])
    w64_parts.append(out_w_pad)
    w64 = jnp.concatenate(w64_parts, axis=0).astype(jnp.bfloat16)

    # ---- bf16 width-256 MLP fc weight slab (n_layers*64, 256) ----
    w256 = jnp.concatenate(
        [blk["fc_w"] for blk in params["blocks"]], axis=0).astype(jnp.bfloat16)

    return vecs, wqkv, w64, w256


# -------------------------------- forward ------------------------------------
def ofa_forward(params, x):
    B, L, M = x.shape
    n_series = B * M
    rows = ((n_series + 7) // 8) * 8      # pad series count to a sublane multiple

    # (B, L, M) -> channel-major rows (B*M, L), zero-pad to `rows`
    x_t = jnp.transpose(x, (0, 2, 1)).reshape(n_series, L)
    x_in = jnp.pad(x_t, ((0, rows - n_series), (0, 0)))

    vecs, wqkv, w64, w256 = _pack_params(params, rows)

    out = pl.pallas_call(
        functools.partial(_fused_ofa_kernel, n_layers=len(params["blocks"])),
        out_shape=jax.ShapeDtypeStruct((n_series, PRED_LEN), jnp.float32),
    )(x_in, vecs, wqkv, w64, w256)

    # restore (B, pred_len, M) layout
    return out.reshape(B, M, PRED_LEN).transpose(0, 2, 1)


# ---------------------------------- main --------------------------------------
if __name__ == "__main__":
    x = jax.random.normal(jax.random.PRNGKey(0), (BATCH, SEQ_LEN, CHANNELS), jnp.float32)
    params = init_params(jax.random.PRNGKey(42))

    out = jax.jit(ofa_forward)(params, x)
    out = jax.block_until_ready(out)

    assert out.shape == (BATCH, PRED_LEN, CHANNELS), out.shape
    assert bool(jnp.all(jnp.isfinite(out)))
    print("KERNEL_OK")
</pallas_src>

<mosaic_0001>
module attributes {stable_mosaic.version = 11 : i64} {
  func.func @_fused_ofa_kernel(%arg0: memref<8x64xf32, #tpu.memory_space<vmem>>, %arg1: memref<104x64xf32, #tpu.memory_space<vmem>>, %arg2: memref<128x192xbf16, #tpu.memory_space<vmem>>, %arg3: memref<1168x64xbf16, #tpu.memory_space<vmem>>, %arg4: memref<128x256xbf16, #tpu.memory_space<vmem>>, %arg5: memref<6x32xf32, #tpu.memory_space<vmem>>) attributes {dimension_semantics = [], scalar_prefetch = 0 : i64, scratch_operands = 0 : i64, tpu.core_type = #tpu.core_type<tc>} {
    %c0 = arith.constant 0 : index
    %c0_0 = arith.constant 0 : index
    %0 = vector.load %arg0[%c0, %c0_0] : memref<8x64xf32, #tpu.memory_space<vmem>>, vector<8x64xf32>
    %cst = arith.constant dense<0.000000e+00> : vector<8xf32>
    %1 = vector.multi_reduction <add>, %0, %cst [1] : vector<8x64xf32> to vector<8xf32>
    %2 = vector.shape_cast %1 : vector<8xf32> to vector<8x1xf32>
    %cst_1 = arith.constant 6.400000e+01 : f32
    %3 = vector.broadcast %cst_1 : f32 to vector<8x1xf32>
    %4 = arith.divf %2, %3 : vector<8x1xf32>
    %5 = vector.broadcast %4 : vector<8x1xf32> to vector<8x64xf32>
    %6 = arith.subf %0, %5 : vector<8x64xf32>
    %7 = arith.mulf %6, %6 : vector<8x64xf32>
    %cst_2 = arith.constant dense<0.000000e+00> : vector<8xf32>
    %8 = vector.multi_reduction <add>, %7, %cst_2 [1] : vector<8x64xf32> to vector<8xf32>
    %9 = vector.shape_cast %8 : vector<8xf32> to vector<8x1xf32>
    %cst_3 = arith.constant 6.400000e+01 : f32
    %10 = vector.broadcast %cst_3 : f32 to vector<8x1xf32>
    %11 = arith.divf %9, %10 : vector<8x1xf32>
    %cst_4 = arith.constant 9.99999974E-6 : f32
    %12 = vector.broadcast %cst_4 : f32 to vector<8x1xf32>
    %13 = arith.addf %11, %12 : vector<8x1xf32>
    %14 = math.sqrt %13 : vector<8x1xf32>
    %cst_5 = arith.constant 9.99999974E-6 : f32
    %15 = vector.broadcast %cst_5 : f32 to vector<8x1xf32>
    %16 = arith.addf %11, %15 : vector<8x1xf32>
    %17 = math.rsqrt %16 : vector<8x1xf32>
    %18 = vector.broadcast %17 : vector<8x1xf32> to vector<8x64xf32>
    %19 = arith.mulf %6, %18 : vector<8x64xf32>
    %20 = vector.extract_strided_slice %19 {offsets = [0, 63], sizes = [8, 1], strides = [1, 1]} : vector<8x64xf32> to vector<8x1xf32>
    %21 = vector.shape_cast %20 : vector<8x1xf32> to vector<8x1xf32>
    %22 = vector.broadcast %21 : vector<8x1xf32> to vector<8x8xf32>
    %23 = tpu.concatenate %19, %22 in 1 : vector<8x64xf32>, vector<8x8xf32> -> vector<8x72xf32>
    %24 = vector.extract_strided_slice %23 {offsets = [0, 0], sizes = [8, 16], strides = [1, 1]} : vector<8x72xf32> to vector<8x16xf32>
    %25 = vector.extract_strided_slice %23 {offsets = [0, 8], sizes = [8, 16], strides = [1, 1]} : vector<8x72xf32> to vector<8x16xf32>
    %26 = vector.extract_strided_slice %23 {offsets = [0, 16], sizes = [8, 16], strides = [1, 1]} : vector<8x72xf32> to vector<8x16xf32>
    %27 = vector.extract_strided_slice %23 {offsets = [0, 24], sizes = [8, 16], strides = [1, 1]} : vector<8x72xf32> to vector<8x16xf32>
    %28 = vector.extract_strided_slice %23 {offsets = [0, 32], sizes = [8, 16], strides = [1, 1]} : vector<8x72xf32> to vector<8x16xf32>
    %29 = vector.extract_strided_slice %23 {offsets = [0, 40], sizes = [8, 16], strides = [1, 1]} : vector<8x72xf32> to vector<8x16xf32>
    %30 = vector.extract_strided_slice %23 {offsets = [0, 48], sizes = [8, 16], strides = [1, 1]} : vector<8x72xf32> to vector<8x16xf32>
    %31 = vector.extract_strided_slice %23 {offsets = [0, 56], sizes = [8, 16], strides = [1, 1]} : vector<8x72xf32> to vector<8x16xf32>
    %32 = tpu.concatenate %24, %25, %26, %27, %28, %29, %30, %31 in 0 : vector<8x16xf32>, vector<8x16xf32>, vector<8x16xf32>, vector<8x16xf32>, vector<8x16xf32>, vector<8x16xf32>, vector<8x16xf32>, vector<8x16xf32> -> vector<64x16xf32>
    %c0_6 = arith.constant 0 : index
    %c0_7 = arith.constant 0 : index
    %33 = vector.load %arg3[%c0_6, %c0_7] : memref<1168x64xbf16, #tpu.memory_space<vmem>>, vector<16x64xbf16>
    %34 = arith.truncf %32 : vector<64x16xf32> to vector<64x16xbf16>
    %cst_8 = arith.constant dense<0.000000e+00> : vector<64x64xf32>
    %35 = tpu.matmul %34, %33, %cst_8 {dimension_numbers = #tpu.dot_dimension_numbers<[1], [0], [0], [1], [0, 0, 1, 1], [], []>} : vector<64x16xbf16>, vector<16x64xbf16>, vector<64x64xf32> -> vector<64x64xf32>
    %c0_9 = arith.constant 0 : index
    %c0_10 = arith.constant 0 : index
    %36 = vector.load %arg1[%c0_9, %c0_10] : memref<104x64xf32, #tpu.memory_space<vmem>>, vector<64x64xf32>
    %37 = arith.addf %35, %36 : vector<64x64xf32>
    %38 = tpu.iota {dimensions = array<i32: 0>} : vector<64x64xi32>
    %39 = tpu.iota {dimensions = array<i32: 1>} : vector<64x64xi32>
    %40 = arith.subi %38, %39 : vector<64x64xi32>
    %c0_i32 = arith.constant 0 : i32
    %41 = vector.broadcast %c0_i32 : i32 to vector<64x64xi32>
    %42 = arith.cmpi eq, %40, %41 : vector<64x64xi32>
    %c8_i32 = arith.constant 8 : i32
    %43 = vector.broadcast %c8_i32 : i32 to vector<64x64xi32>
    %44 = arith.cmpi eq, %40, %43 : vector<64x64xi32>
    %c16_i32 = arith.constant 16 : i32
    %45 = vector.broadcast %c16_i32 : i32 to vector<64x64xi32>
    %46 = arith.cmpi eq, %40, %45 : vector<64x64xi32>
    %c24_i32 = arith.constant 24 : i32
    %47 = vector.broadcast %c24_i32 : i32 to vector<64x64xi32>
    %48 = arith.cmpi eq, %40, %47 : vector<64x64xi32>
    %c32_i32 = arith.constant 32 : i32
    %49 = vector.broadcast %c32_i32 : i32 to vector<64x64xi32>
    %50 = arith.cmpi eq, %40, %49 : vector<64x64xi32>
    %c40_i32 = arith.constant 40 : i32
    %51 = vector.broadcast %c40_i32 : i32 to vector<64x64xi32>
    %52 = arith.cmpi eq, %40, %51 : vector<64x64xi32>
    %c48_i32 = arith.constant 48 : i32
    %53 = vector.broadcast %c48_i32 : i32 to vector<64x64xi32>
    %54 = arith.cmpi eq, %40, %53 : vector<64x64xi32>
    %c56_i32 = arith.constant 56 : i32
    %55 = vector.broadcast %c56_i32 : i32 to vector<64x64xi32>
    %56 = arith.cmpi eq, %40, %55 : vector<64x64xi32>
    %57 = arith.ori %42, %44 : vector<64x64xi1>
    %58 = arith.ori %57, %46 : vector<64x64xi1>
    %59 = arith.ori %58, %48 : vector<64x64xi1>
    %60 = arith.ori %59, %50 : vector<64x64xi1>
    %61 = arith.ori %60, %52 : vector<64x64xi1>
    %62 = arith.ori %61, %54 : vector<64x64xi1>
    %63 = arith.ori %62, %56 : vector<64x64xi1>
    %cst_11 = arith.constant 0.000000e+00 : f32
    %cst_12 = arith.constant -1.000000e+30 : f32
    %64 = vector.broadcast %cst_11 : f32 to vector<64x64xf32>
    %65 = vector.broadcast %cst_12 : f32 to vector<64x64xf32>
    %66 = arith.select %63, %64, %65 : vector<64x64xi1>, vector<64x64xf32>
    %c64 = arith.constant 64 : index
    %c0_13 = arith.constant 0 : index
    %67 = vector.load %arg1[%c64, %c0_13] : memref<104x64xf32, #tpu.memory_space<vmem>>, vector<1x64xf32>
    %c65 = arith.constant 65 : index
    %c0_14 = arith.constant 0 : index
    %68 = vector.load %arg1[%c65, %c0_14] : memref<104x64xf32, #tpu.memory_space<vmem>>, vector<1x64xf32>
    %c66 = arith.constant 66 : index
    %c0_15 = arith.constant 0 : index
    %69 = vector.load %arg1[%c66, %c0_15] : memref<104x64xf32, #tpu.memory_space<vmem>>, vector<1x64xf32>
    %c67 = arith.constant 67 : index
    %c0_16 = arith.constant 0 : index
    %70 = vector.load %arg1[%c67, %c0_16] : memref<104x64xf32, #tpu.memory_space<vmem>>, vector<1x64xf32>
    %c68 = arith.constant 68 : index
    %c0_17 = arith.constant 0 : index
    %71 = vector.load %arg1[%c68, %c0_17] : memref<104x64xf32, #tpu.memory_space<vmem>>, vector<1x64xf32>
    %c69 = arith.constant 69 : index
    %c0_18 = arith.constant 0 : index
    %72 = vector.load %arg1[%c69, %c0_18] : memref<104x64xf32, #tpu.memory_space<vmem>>, vector<1x64xf32>
    %c70 = arith.constant 70 : index
    %c0_19 = arith.constant 0 : index
    %73 = vector.load %arg1[%c70, %c0_19] : memref<104x64xf32, #tpu.memory_space<vmem>>, vector<1x64xf32>
    %c71 = arith.constant 71 : index
    %c0_20 = arith.constant 0 : index
    %74 = vector.load %arg1[%c71, %c0_20] : memref<104x64xf32, #tpu.memory_space<vmem>>, vector<1x64xf32>
    %c72 = arith.constant 72 : index
    %c0_21 = arith.constant 0 : index
    %75 = vector.load %arg1[%c72, %c0_21] : memref<104x64xf32, #tpu.memory_space<vmem>>, vector<1x64xf32>
    %c73 = arith.constant 73 : index
    %c0_22 = arith.constant 0 : index
    %76 = vector.load %arg1[%c73, %c0_22] : memref<104x64xf32, #tpu.memory_space<vmem>>, vector<1x64xf32>
    %c74 = arith.constant 74 : index
    %c0_23 = arith.constant 0 : index
    %77 = vector.load %arg1[%c74, %c0_23] : memref<104x64xf32, #tpu.memory_space<vmem>>, vector<1x64xf32>
    %c75 = arith.constant 75 : index
    %c0_24 = arith.constant 0 : index
    %78 = vector.load %arg1[%c75, %c0_24] : memref<104x64xf32, #tpu.memory_space<vmem>>, vector<1x64xf32>
    %79 = tpu.concatenate %75, %76, %77, %78 in 1 : vector<1x64xf32>, vector<1x64xf32>, vector<1x64xf32>, vector<1x64xf32> -> vector<1x256xf32>
    %c76 = arith.constant 76 : index
    %c0_25 = arith.constant 0 : index
    %80 = vector.load %arg1[%c76, %c0_25] : memref<104x64xf32, #tpu.memory_space<vmem>>, vector<1x64xf32>
    %c0_26 = arith.constant 0 : index
    %c0_27 = arith.constant 0 : index
    %81 = vector.load %arg2[%c0_26, %c0_27] : memref<128x192xbf16, #tpu.memory_space<vmem>>, vector<64x192xbf16>
    %c16 = arith.constant 16 : index
    %c0_28 = arith.constant 0 : index
    %82 = vector.load %arg3[%c16, %c0_28] : memref<1168x64xbf16, #tpu.memory_space<vmem>>, vector<64x64xbf16>
    %c80 = arith.constant 80 : index
    %c0_29 = arith.constant 0 : index
    %83 = vector.load %arg3[%c80, %c0_29] : memref<1168x64xbf16, #tpu.memory_space<vmem>>, vector<256x64xbf16>
    %c0_30 = arith.constant 0 : index
    %c0_31 = arith.constant 0 : index
    %84 = vector.load %arg4[%c0_30, %c0_31] : memref<128x256xbf16, #tpu.memory_space<vmem>>, vector<64x256xbf16>
    %cst_32 = arith.constant dense<0.000000e+00> : vector<64xf32>
    %85 = vector.multi_reduction <add>, %37, %cst_32 [1] : vector<64x64xf32> to vector<64xf32>
    %86 = vector.shape_cast %85 : vector<64xf32> to vector<64x1xf32>
    %cst_33 = arith.constant 6.400000e+01 : f32
    %87 = vector.broadcast %cst_33 : f32 to vector<64x1xf32>
    %88 = arith.divf %86, %87 : vector<64x1xf32>
    %89 = vector.broadcast %88 : vector<64x1xf32> to vector<64x64xf32>
    %90 = arith.subf %37, %89 : vector<64x64xf32>
    %91 = arith.mulf %90, %90 : vector<64x64xf32>
    %cst_34 = arith.constant dense<0.000000e+00> : vector<64xf32>
    %92 = vector.multi_reduction <add>, %91, %cst_34 [1] : vector<64x64xf32> to vector<64xf32>
    %93 = vector.shape_cast %92 : vector<64xf32> to vector<64x1xf32>
    %cst_35 = arith.constant 6.400000e+01 : f32
    %94 = vector.broadcast %cst_35 : f32 to vector<64x1xf32>
    %95 = arith.divf %93, %94 : vector<64x1xf32>
    %cst_36 = arith.constant 9.99999974E-6 : f32
    %96 = vector.broadcast %cst_36 : f32 to vector<64x1xf32>
    %97 = arith.addf %95, %96 : vector<64x1xf32>
    %98 = math.rsqrt %97 : vector<64x1xf32>
    %99 = vector.broadcast %98 : vector<64x1xf32> to vector<64x64xf32>
    %100 = arith.mulf %90, %99 : vector<64x64xf32>
    %101 = vector.broadcast %67 : vector<1x64xf32> to vector<64x64xf32>
    %102 = arith.mulf %100, %101 : vector<64x64xf32>
    %103 = vector.broadcast %68 : vector<1x64xf32> to vector<64x64xf32>
    %104 = arith.addf %102, %103 : vector<64x64xf32>
    %105 = arith.truncf %104 : vector<64x64xf32> to vector<64x64xbf16>
    %cst_37 = arith.constant dense<0.000000e+00> : vector<64x192xf32>
    %106 = tpu.matmul %105, %81, %cst_37 {dimension_numbers = #tpu.dot_dimension_numbers<[1], [0], [0], [1], [0, 0, 1, 1], [], []>} : vector<64x64xbf16>, vector<64x192xbf16>, vector<64x192xf32> -> vector<64x192xf32>
    %107 = vector.extract_strided_slice %106 {offsets = [0, 0], sizes = [64, 64], strides = [1, 1]} : vector<64x192xf32> to vector<64x64xf32>
    %108 = vector.broadcast %69 : vector<1x64xf32> to vector<64x64xf32>
    %109 = arith.addf %107, %108 : vector<64x64xf32>
    %110 = arith.truncf %109 : vector<64x64xf32> to vector<64x64xbf16>
    %111 = vector.extract_strided_slice %106 {offsets = [0, 64], sizes = [64, 64], strides = [1, 1]} : vector<64x192xf32> to vector<64x64xf32>
    %112 = vector.broadcast %70 : vector<1x64xf32> to vector<64x64xf32>
    %113 = arith.addf %111, %112 : vector<64x64xf32>
    %114 = arith.truncf %113 : vector<64x64xf32> to vector<64x64xbf16>
    %115 = vector.extract_strided_slice %106 {offsets = [0, 128], sizes = [64, 64], strides = [1, 1]} : vector<64x192xf32> to vector<64x64xf32>
    %116 = vector.broadcast %71 : vector<1x64xf32> to vector<64x64xf32>
    %117 = arith.addf %115, %116 : vector<64x64xf32>
    %118 = arith.truncf %117 : vector<64x64xf32> to vector<64x64xbf16>
    %119 = vector.extract_strided_slice %110 {offsets = [0, 0], sizes = [64, 16], strides = [1, 1]} : vector<64x64xbf16> to vector<64x16xbf16>
    %120 = vector.extract_strided_slice %114 {offsets = [0, 0], sizes = [64, 16], strides = [1, 1]} : vector<64x64xbf16> to vector<64x16xbf16>
    %121 = vector.extract_strided_slice %118 {offsets = [0, 0], sizes = [64, 16], strides = [1, 1]} : vector<64x64xbf16> to vector<64x16xbf16>
    %cst_38 = arith.constant dense<0.000000e+00> : vector<64x64xf32>
    %122 = tpu.matmul %119, %120, %cst_38 {dimension_numbers = #tpu.dot_dimension_numbers<[1], [1], [0], [0], [0, 0, 1, 0], [], []>} : vector<64x16xbf16>, vector<64x16xbf16>, vector<64x64xf32> -> vector<64x64xf32>
    %cst_39 = arith.constant 2.500000e-01 : f32
    %123 = vector.broadcast %cst_39 : f32 to vector<64x64xf32>
    %124 = arith.mulf %122, %123 : vector<64x64xf32>
    %125 = arith.addf %124, %66 : vector<64x64xf32>
    %cst_40 = arith.constant dense<0xFF800000> : vector<64xf32>
    %126 = vector.multi_reduction <maximumf>, %125, %cst_40 [1] : vector<64x64xf32> to vector<64xf32>
    %127 = vector.shape_cast %126 : vector<64xf32> to vector<64x1xf32>
    %128 = vector.broadcast %127 : vector<64x1xf32> to vector<64x64xf32>
    %129 = arith.subf %125, %128 : vector<64x64xf32>
    %130 = math.exp %129 : vector<64x64xf32>
    %cst_41 = arith.constant dense<0.000000e+00> : vector<64xf32>
    %131 = vector.multi_reduction <add>, %130, %cst_41 [1] : vector<64x64xf32> to vector<64xf32>
    %132 = vector.shape_cast %131 : vector<64xf32> to vector<64x1xf32>
    %133 = tpu.reciprocal %132 {approx = true} : vector<64x1xf32> -> vector<64x1xf32>
    %134 = vector.broadcast %133 : vector<64x1xf32> to vector<64x64xf32>
    %135 = arith.mulf %130, %134 : vector<64x64xf32>
    %136 = arith.truncf %135 : vector<64x64xf32> to vector<64x64xbf16>
    %cst_42 = arith.constant dense<0.000000e+00> : vector<64x16xf32>
    %137 = tpu.matmul %136, %121, %cst_42 {dimension_numbers = #tpu.dot_dimension_numbers<[1], [0], [0], [1], [0, 0, 1, 1], [], []>} : vector<64x64xbf16>, vector<64x16xbf16>, vector<64x16xf32> -> vector<64x16xf32>
    %138 = vector.extract_strided_slice %110 {offsets = [0, 16], sizes = [64, 16], strides = [1, 1]} : vector<64x64xbf16> to vector<64x16xbf16>
    %139 = vector.extract_strided_slice %114 {offsets = [0, 16], sizes = [64, 16], strides = [1, 1]} : vector<64x64xbf16> to vector<64x16xbf16>
    %140 = vector.extract_strided_slice %118 {offsets = [0, 16], sizes = [64, 16], strides = [1, 1]} : vector<64x64xbf16> to vector<64x16xbf16>
    %cst_43 = arith.constant dense<0.000000e+00> : vector<64x64xf32>
    %141 = tpu.matmul %138, %139, %cst_43 {dimension_numbers = #tpu.dot_dimension_numbers<[1], [1], [0], [0], [0, 0, 1, 0], [], []>} : vector<64x16xbf16>, vector<64x16xbf16>, vector<64x64xf32> -> vector<64x64xf32>
    %cst_44 = arith.constant 2.500000e-01 : f32
    %142 = vector.broadcast %cst_44 : f32 to vector<64x64xf32>
    %143 = arith.mulf %141, %142 : vector<64x64xf32>
    %144 = arith.addf %143, %66 : vector<64x64xf32>
    %cst_45 = arith.constant dense<0xFF800000> : vector<64xf32>
    %145 = vector.multi_reduction <maximumf>, %144, %cst_45 [1] : vector<64x64xf32> to vector<64xf32>
    %146 = vector.shape_cast %145 : vector<64xf32> to vector<64x1xf32>
    %147 = vector.broadcast %146 : vector<64x1xf32> to vector<64x64xf32>
    %148 = arith.subf %144, %147 : vector<64x64xf32>
    %149 = math.exp %148 : vector<64x64xf32>
    %cst_46 = arith.constant dense<0.000000e+00> : vector<64xf32>
    %150 = vector.multi_reduction <add>, %149, %cst_46 [1] : vector<64x64xf32> to vector<64xf32>
    %151 = vector.shape_cast %150 : vector<64xf32> to vector<64x1xf32>
    %152 = tpu.reciprocal %151 {approx = true} : vector<64x1xf32> -> vector<64x1xf32>
    %153 = vector.broadcast %152 : vector<64x1xf32> to vector<64x64xf32>
    %154 = arith.mulf %149, %153 : vector<64x64xf32>
    %155 = arith.truncf %154 : vector<64x64xf32> to vector<64x64xbf16>
    %cst_47 = arith.constant dense<0.000000e+00> : vector<64x16xf32>
    %156 = tpu.matmul %155, %140, %cst_47 {dimension_numbers = #tpu.dot_dimension_numbers<[1], [0], [0], [1], [0, 0, 1, 1], [], []>} : vector<64x64xbf16>, vector<64x16xbf16>, vector<64x16xf32> -> vector<64x16xf32>
    %157 = vector.extract_strided_slice %110 {offsets = [0, 32], sizes = [64, 16], strides = [1, 1]} : vector<64x64xbf16> to vector<64x16xbf16>
    %158 = vector.extract_strided_slice %114 {offsets = [0, 32], sizes = [64, 16], strides = [1, 1]} : vector<64x64xbf16> to vector<64x16xbf16>
    %159 = vector.extract_strided_slice %118 {offsets = [0, 32], sizes = [64, 16], strides = [1, 1]} : vector<64x64xbf16> to vector<64x16xbf16>
    %cst_48 = arith.constant dense<0.000000e+00> : vector<64x64xf32>
    %160 = tpu.matmul %157, %158, %cst_48 {dimension_numbers = #tpu.dot_dimension_numbers<[1], [1], [0], [0], [0, 0, 1, 0], [], []>} : vector<64x16xbf16>, vector<64x16xbf16>, vector<64x64xf32> -> vector<64x64xf32>
    %cst_49 = arith.constant 2.500000e-01 : f32
    %161 = vector.broadcast %cst_49 : f32 to vector<64x64xf32>
    %162 = arith.mulf %160, %161 : vector<64x64xf32>
    %163 = arith.addf %162, %66 : vector<64x64xf32>
    %cst_50 = arith.constant dense<0xFF800000> : vector<64xf32>
    %164 = vector.multi_reduction <maximumf>, %163, %cst_50 [1] : vector<64x64xf32> to vector<64xf32>
    %165 = vector.shape_cast %164 : vector<64xf32> to vector<64x1xf32>
    %166 = vector.broadcast %165 : vector<64x1xf32> to vector<64x64xf32>
    %167 = arith.subf %163, %166 : vector<64x64xf32>
    %168 = math.exp %167 : vector<64x64xf32>
    %cst_51 = arith.constant dense<0.000000e+00> : vector<64xf32>
    %169 = vector.multi_reduction <add>, %168, %cst_51 [1] : vector<64x64xf32> to vector<64xf32>
    %170 = vector.shape_cast %169 : vector<64xf32> to vector<64x1xf32>
    %171 = tpu.reciprocal %170 {approx = true} : vector<64x1xf32> -> vector<64x1xf32>
    %172 = vector.broadcast %171 : vector<64x1xf32> to vector<64x64xf32>
    %173 = arith.mulf %168, %172 : vector<64x64xf32>
    %174 = arith.truncf %173 : vector<64x64xf32> to vector<64x64xbf16>
    %cst_52 = arith.constant dense<0.000000e+00> : vector<64x16xf32>
    %175 = tpu.matmul %174, %159, %cst_52 {dimension_numbers = #tpu.dot_dimension_numbers<[1], [0], [0], [1], [0, 0, 1, 1], [], []>} : vector<64x64xbf16>, vector<64x16xbf16>, vector<64x16xf32> -> vector<64x16xf32>
    %176 = vector.extract_strided_slice %110 {offsets = [0, 48], sizes = [64, 16], strides = [1, 1]} : vector<64x64xbf16> to vector<64x16xbf16>
    %177 = vector.extract_strided_slice %114 {offsets = [0, 48], sizes = [64, 16], strides = [1, 1]} : vector<64x64xbf16> to vector<64x16xbf16>
    %178 = vector.extract_strided_slice %118 {offsets = [0, 48], sizes = [64, 16], strides = [1, 1]} : vector<64x64xbf16> to vector<64x16xbf16>
    %cst_53 = arith.constant dense<0.000000e+00> : vector<64x64xf32>
    %179 = tpu.matmul %176, %177, %cst_53 {dimension_numbers = #tpu.dot_dimension_numbers<[1], [1], [0], [0], [0, 0, 1, 0], [], []>} : vector<64x16xbf16>, vector<64x16xbf16>, vector<64x64xf32> -> vector<64x64xf32>
    %cst_54 = arith.constant 2.500000e-01 : f32
    %180 = vector.broadcast %cst_54 : f32 to vector<64x64xf32>
    %181 = arith.mulf %179, %180 : vector<64x64xf32>
    %182 = arith.addf %181, %66 : vector<64x64xf32>
    %cst_55 = arith.constant dense<0xFF800000> : vector<64xf32>
    %183 = vector.multi_reduction <maximumf>, %182, %cst_55 [1] : vector<64x64xf32> to vector<64xf32>
    %184 = vector.shape_cast %183 : vector<64xf32> to vector<64x1xf32>
    %185 = vector.broadcast %184 : vector<64x1xf32> to vector<64x64xf32>
    %186 = arith.subf %182, %185 : vector<64x64xf32>
    %187 = math.exp %186 : vector<64x64xf32>
    %cst_56 = arith.constant dense<0.000000e+00> : vector<64xf32>
    %188 = vector.multi_reduction <add>, %187, %cst_56 [1] : vector<64x64xf32> to vector<64xf32>
    %189 = vector.shape_cast %188 : vector<64xf32> to vector<64x1xf32>
    %190 = tpu.reciprocal %189 {approx = true} : vector<64x1xf32> -> vector<64x1xf32>
    %191 = vector.broadcast %190 : vector<64x1xf32> to vector<64x64xf32>
    %192 = arith.mulf %187, %191 : vector<64x64xf32>
    %193 = arith.truncf %192 : vector<64x64xf32> to vector<64x64xbf16>
    %cst_57 = arith.constant dense<0.000000e+00> : vector<64x16xf32>
    %194 = tpu.matmul %193, %178, %cst_57 {dimension_numbers = #tpu.dot_dimension_numbers<[1], [0], [0], [1], [0, 0, 1, 1], [], []>} : vector<64x64xbf16>, vector<64x16xbf16>, vector<64x16xf32> -> vector<64x16xf32>
    %195 = tpu.concatenate %137, %156, %175, %194 in 1 : vector<64x16xf32>, vector<64x16xf32>, vector<64x16xf32>, vector<64x16xf32> -> vector<64x64xf32>
    %196 = arith.truncf %195 : vector<64x64xf32> to vector<64x64xbf16>
    %cst_58 = arith.constant dense<0.000000e+00> : vector<64x64xf32>
    %197 = tpu.matmul %196, %82, %cst_58 {dimension_numbers = #tpu.dot_dimension_numbers<[1], [0], [0], [1], [0, 0, 1, 1], [], []>} : vector<64x64xbf16>, vector<64x64xbf16>, vector<64x64xf32> -> vector<64x64xf32>
    %198 = vector.broadcast %72 : vector<1x64xf32> to vector<64x64xf32>
    %199 = arith.addf %197, %198 : vector<64x64xf32>
    %200 = arith.addf %37, %199 : vector<64x64xf32>
    %cst_59 = arith.constant dense<0.000000e+00> : vector<64xf32>
    %201 = vector.multi_reduction <add>, %200, %cst_59 [1] : vector<64x64xf32> to vector<64xf32>
    %202 = vector.shape_cast %201 : vector<64xf32> to vector<64x1xf32>
    %cst_60 = arith.constant 6.400000e+01 : f32
    %203 = vector.broadcast %cst_60 : f32 to vector<64x1xf32>
    %204 = arith.divf %202, %203 : vector<64x1xf32>
    %205 = vector.broadcast %204 : vector<64x1xf32> to vector<64x64xf32>
    %206 = arith.subf %200, %205 : vector<64x64xf32>
    %207 = arith.mulf %206, %206 : vector<64x64xf32>
    %cst_61 = arith.constant dense<0.000000e+00> : vector<64xf32>
    %208 = vector.multi_reduction <add>, %207, %cst_61 [1] : vector<64x64xf32> to vector<64xf32>
    %209 = vector.shape_cast %208 : vector<64xf32> to vector<64x1xf32>
    %cst_62 = arith.constant 6.400000e+01 : f32
    %210 = vector.broadcast %cst_62 : f32 to vector<64x1xf32>
    %211 = arith.divf %209, %210 : vector<64x1xf32>
    %cst_63 = arith.constant 9.99999974E-6 : f32
    %212 = vector.broadcast %cst_63 : f32 to vector<64x1xf32>
    %213 = arith.addf %211, %212 : vector<64x1xf32>
    %214 = math.rsqrt %213 : vector<64x1xf32>
    %215 = vector.broadcast %214 : vector<64x1xf32> to vector<64x64xf32>
    %216 = arith.mulf %206, %215 : vector<64x64xf32>
    %217 = vector.broadcast %73 : vector<1x64xf32> to vector<64x64xf32>
    %218 = arith.mulf %216, %217 : vector<64x64xf32>
    %219 = vector.broadcast %74 : vector<1x64xf32> to vector<64x64xf32>
    %220 = arith.addf %218, %219 : vector<64x64xf32>
    %221 = arith.truncf %220 : vector<64x64xf32> to vector<64x64xbf16>
    %cst_64 = arith.constant dense<0.000000e+00> : vector<64x256xf32>
    %222 = tpu.matmul %221, %84, %cst_64 {dimension_numbers = #tpu.dot_dimension_numbers<[1], [0], [0], [1], [0, 0, 1, 1], [], []>} : vector<64x64xbf16>, vector<64x256xbf16>, vector<64x256xf32> -> vector<64x256xf32>
    %223 = vector.broadcast %79 : vector<1x256xf32> to vector<64x256xf32>
    %224 = arith.addf %222, %223 : vector<64x256xf32>
    %cst_65 = arith.constant 5.000000e-01 : f32
    %225 = vector.broadcast %cst_65 : f32 to vector<64x256xf32>
    %226 = arith.mulf %225, %224 : vector<64x256xf32>
    %cst_66 = arith.constant 0.636619746 : f32
    %227 = math.sqrt %cst_66 : f32
    %228 = arith.mulf %224, %224 : vector<64x256xf32>
    %229 = arith.mulf %224, %228 : vector<64x256xf32>
    %cst_67 = arith.constant 4.471500e-02 : f32
    %230 = vector.broadcast %cst_67 : f32 to vector<64x256xf32>
    %231 = arith.mulf %230, %229 : vector<64x256xf32>
    %232 = arith.addf %224, %231 : vector<64x256xf32>
    %233 = vector.broadcast %227 : f32 to vector<64x256xf32>
    %234 = arith.mulf %233, %232 : vector<64x256xf32>
    %235 = math.tanh %234 : vector<64x256xf32>
    %cst_68 = arith.constant 1.000000e+00 : f32
    %236 = vector.broadcast %cst_68 : f32 to vector<64x256xf32>
    %237 = arith.addf %236, %235 : vector<64x256xf32>
    %238 = arith.mulf %226, %237 : vector<64x256xf32>
    %239 = arith.truncf %238 : vector<64x256xf32> to vector<64x256xbf16>
    %cst_69 = arith.constant dense<0.000000e+00> : vector<64x64xf32>
    %240 = tpu.matmul %239, %83, %cst_69 {dimension_numbers = #tpu.dot_dimension_numbers<[1], [0], [0], [1], [0, 0, 1, 1], [], []>} : vector<64x256xbf16>, vector<256x64xbf16>, vector<64x64xf32> -> vector<64x64xf32>
    %241 = vector.broadcast %80 : vector<1x64xf32> to vector<64x64xf32>
    %242 = arith.addf %240, %241 : vector<64x64xf32>
    %243 = arith.addf %200, %242 : vector<64x64xf32>
    %c80_70 = arith.constant 80 : index
    %c0_71 = arith.constant 0 : index
    %244 = vector.load %arg1[%c80_70, %c0_71] : memref<104x64xf32, #tpu.memory_space<vmem>>, vector<1x64xf32>
    %c81 = arith.constant 81 : index
    %c0_72 = arith.constant 0 : index
    %245 = vector.load %arg1[%c81, %c0_72] : memref<104x64xf32, #tpu.memory_space<vmem>>, vector<1x64xf32>
    %c82 = arith.constant 82 : index
    %c0_73 = arith.constant 0 : index
    %246 = vector.load %arg1[%c82, %c0_73] : memref<104x64xf32, #tpu.memory_space<vmem>>, vector<1x64xf32>
    %c83 = arith.constant 83 : index
    %c0_74 = arith.constant 0 : index
    %247 = vector.load %arg1[%c83, %c0_74] : memref<104x64xf32, #tpu.memory_space<vmem>>, vector<1x64xf32>
    %c84 = arith.constant 84 : index
    %c0_75 = arith.constant 0 : index
    %248 = vector.load %arg1[%c84, %c0_75] : memref<104x64xf32, #tpu.memory_space<vmem>>, vector<1x64xf32>
    %c85 = arith.constant 85 : index
    %c0_76 = arith.constant 0 : index
    %249 = vector.load %arg1[%c85, %c0_76] : memref<104x64xf32, #tpu.memory_space<vmem>>, vector<1x64xf32>
    %c86 = arith.constant 86 : index
    %c0_77 = arith.constant 0 : index
    %250 = vector.load %arg1[%c86, %c0_77] : memref<104x64xf32, #tpu.memory_space<vmem>>, vector<1x64xf32>
    %c87 = arith.constant 87 : index
    %c0_78 = arith.constant 0 : index
    %251 = vector.load %arg1[%c87, %c0_78] : memref<104x64xf32, #tpu.memory_space<vmem>>, vector<1x64xf32>
    %c88 = arith.constant 88 : index
    %c0_79 = arith.constant 0 : index
    %252 = vector.load %arg1[%c88, %c0_79] : memref<104x64xf32, #tpu.memory_space<vmem>>, vector<1x64xf32>
    %c89 = arith.constant 89 : index
    %c0_80 = arith.constant 0 : index
    %253 = vector.load %arg1[%c89, %c0_80] : memref<104x64xf32, #tpu.memory_space<vmem>>, vector<1x64xf32>
    %c90 = arith.constant 90 : index
    %c0_81 = arith.constant 0 : index
    %254 = vector.load %arg1[%c90, %c0_81] : memref<104x64xf32, #tpu.memory_space<vmem>>, vector<1x64xf32>
    %c91 = arith.constant 91 : index
    %c0_82 = arith.constant 0 : index
    %255 = vector.load %arg1[%c91, %c0_82] : memref<104x64xf32, #tpu.memory_space<vmem>>, vector<1x64xf32>
    %256 = tpu.concatenate %252, %253, %254, %255 in 1 : vector<1x64xf32>, vector<1x64xf32>, vector<1x64xf32>, vector<1x64xf32> -> vector<1x256xf32>
    %c92 = arith.constant 92 : index
    %c0_83 = arith.constant 0 : index
    %257 = vector.load %arg1[%c92, %c0_83] : memref<104x64xf32, #tpu.memory_space<vmem>>, vector<1x64xf32>
    %c64_84 = arith.constant 64 : index
    %c0_85 = arith.constant 0 : index
    %258 = vector.load %arg2[%c64_84, %c0_85] : memref<128x192xbf16, #tpu.memory_space<vmem>>, vector<64x192xbf16>
    %c336 = arith.constant 336 : index
    %c0_86 = arith.constant 0 : index
    %259 = vector.load %arg3[%c336, %c0_86] : memref<1168x64xbf16, #tpu.memory_space<vmem>>, vector<64x64xbf16>
    %c400 = arith.constant 400 : index
    %c0_87 = arith.constant 0 : index
    %260 = vector.load %arg3[%c400, %c0_87] : memref<1168x64xbf16, #tpu.memory_space<vmem>>, vector<256x64xbf16>
    %c64_88 = arith.constant 64 : index
    %c0_89 = arith.constant 0 : index
    %261 = vector.load %arg4[%c64_88, %c0_89] : memref<128x256xbf16, #tpu.memory_space<vmem>>, vector<64x256xbf16>
    %cst_90 = arith.constant dense<0.000000e+00> : vector<64xf32>
    %262 = vector.multi_reduction <add>, %243, %cst_90 [1] : vector<64x64xf32> to vector<64xf32>
    %263 = vector.shape_cast %262 : vector<64xf32> to vector<64x1xf32>
    %cst_91 = arith.constant 6.400000e+01 : f32
    %264 = vector.broadcast %cst_91 : f32 to vector<64x1xf32>
    %265 = arith.divf %263, %264 : vector<64x1xf32>
    %266 = vector.broadcast %265 : vector<64x1xf32> to vector<64x64xf32>
    %267 = arith.subf %243, %266 : vector<64x64xf32>
    %268 = arith.mulf %267, %267 : vector<64x64xf32>
    %cst_92 = arith.constant dense<0.000000e+00> : vector<64xf32>
    %269 = vector.multi_reduction <add>, %268, %cst_92 [1] : vector<64x64xf32> to vector<64xf32>
    %270 = vector.shape_cast %269 : vector<64xf32> to vector<64x1xf32>
    %cst_93 = arith.constant 6.400000e+01 : f32
    %271 = vector.broadcast %cst_93 : f32 to vector<64x1xf32>
    %272 = arith.divf %270, %271 : vector<64x1xf32>
    %cst_94 = arith.constant 9.99999974E-6 : f32
    %273 = vector.broadcast %cst_94 : f32 to vector<64x1xf32>
    %274 = arith.addf %272, %273 : vector<64x1xf32>
    %275 = math.rsqrt %274 : vector<64x1xf32>
    %276 = vector.broadcast %275 : vector<64x1xf32> to vector<64x64xf32>
    %277 = arith.mulf %267, %276 : vector<64x64xf32>
    %278 = vector.broadcast %244 : vector<1x64xf32> to vector<64x64xf32>
    %279 = arith.mulf %277, %278 : vector<64x64xf32>
    %280 = vector.broadcast %245 : vector<1x64xf32> to vector<64x64xf32>
    %281 = arith.addf %279, %280 : vector<64x64xf32>
    %282 = arith.truncf %281 : vector<64x64xf32> to vector<64x64xbf16>
    %cst_95 = arith.constant dense<0.000000e+00> : vector<64x192xf32>
    %283 = tpu.matmul %282, %258, %cst_95 {dimension_numbers = #tpu.dot_dimension_numbers<[1], [0], [0], [1], [0, 0, 1, 1], [], []>} : vector<64x64xbf16>, vector<64x192xbf16>, vector<64x192xf32> -> vector<64x192xf32>
    %284 = vector.extract_strided_slice %283 {offsets = [0, 0], sizes = [64, 64], strides = [1, 1]} : vector<64x192xf32> to vector<64x64xf32>
    %285 = vector.broadcast %246 : vector<1x64xf32> to vector<64x64xf32>
    %286 = arith.addf %284, %285 : vector<64x64xf32>
    %287 = arith.truncf %286 : vector<64x64xf32> to vector<64x64xbf16>
    %288 = vector.extract_strided_slice %283 {offsets = [0, 64], sizes = [64, 64], strides = [1, 1]} : vector<64x192xf32> to vector<64x64xf32>
    %289 = vector.broadcast %247 : vector<1x64xf32> to vector<64x64xf32>
    %290 = arith.addf %288, %289 : vector<64x64xf32>
    %291 = arith.truncf %290 : vector<64x64xf32> to vector<64x64xbf16>
    %292 = vector.extract_strided_slice %283 {offsets = [0, 128], sizes = [64, 64], strides = [1, 1]} : vector<64x192xf32> to vector<64x64xf32>
    %293 = vector.broadcast %248 : vector<1x64xf32> to vector<64x64xf32>
    %294 = arith.addf %292, %293 : vector<64x64xf32>
    %295 = arith.truncf %294 : vector<64x64xf32> to vector<64x64xbf16>
    %296 = vector.extract_strided_slice %287 {offsets = [0, 0], sizes = [64, 16], strides = [1, 1]} : vector<64x64xbf16> to vector<64x16xbf16>
    %297 = vector.extract_strided_slice %291 {offsets = [0, 0], sizes = [64, 16], strides = [1, 1]} : vector<64x64xbf16> to vector<64x16xbf16>
    %298 = vector.extract_strided_slice %295 {offsets = [0, 0], sizes = [64, 16], strides = [1, 1]} : vector<64x64xbf16> to vector<64x16xbf16>
    %cst_96 = arith.constant dense<0.000000e+00> : vector<64x64xf32>
    %299 = tpu.matmul %296, %297, %cst_96 {dimension_numbers = #tpu.dot_dimension_numbers<[1], [1], [0], [0], [0, 0, 1, 0], [], []>} : vector<64x16xbf16>, vector<64x16xbf16>, vector<64x64xf32> -> vector<64x64xf32>
    %cst_97 = arith.constant 2.500000e-01 : f32
    %300 = vector.broadcast %cst_97 : f32 to vector<64x64xf32>
    %301 = arith.mulf %299, %300 : vector<64x64xf32>
    %302 = arith.addf %301, %66 : vector<64x64xf32>
    %cst_98 = arith.constant dense<0xFF800000> : vector<64xf32>
    %303 = vector.multi_reduction <maximumf>, %302, %cst_98 [1] : vector<64x64xf32> to vector<64xf32>
    %304 = vector.shape_cast %303 : vector<64xf32> to vector<64x1xf32>
    %305 = vector.broadcast %304 : vector<64x1xf32> to vector<64x64xf32>
    %306 = arith.subf %302, %305 : vector<64x64xf32>
    %307 = math.exp %306 : vector<64x64xf32>
    %cst_99 = arith.constant dense<0.000000e+00> : vector<64xf32>
    %308 = vector.multi_reduction <add>, %307, %cst_99 [1] : vector<64x64xf32> to vector<64xf32>
    %309 = vector.shape_cast %308 : vector<64xf32> to vector<64x1xf32>
    %310 = tpu.reciprocal %309 {approx = true} : vector<64x1xf32> -> vector<64x1xf32>
    %311 = vector.broadcast %310 : vector<64x1xf32> to vector<64x64xf32>
    %312 = arith.mulf %307, %311 : vector<64x64xf32>
    %313 = arith.truncf %312 : vector<64x64xf32> to vector<64x64xbf16>
    %cst_100 = arith.constant dense<0.000000e+00> : vector<64x16xf32>
    %314 = tpu.matmul %313, %298, %cst_100 {dimension_numbers = #tpu.dot_dimension_numbers<[1], [0], [0], [1], [0, 0, 1, 1], [], []>} : vector<64x64xbf16>, vector<64x16xbf16>, vector<64x16xf32> -> vector<64x16xf32>
    %315 = vector.extract_strided_slice %287 {offsets = [0, 16], sizes = [64, 16], strides = [1, 1]} : vector<64x64xbf16> to vector<64x16xbf16>
    %316 = vector.extract_strided_slice %291 {offsets = [0, 16], sizes = [64, 16], strides = [1, 1]} : vector<64x64xbf16> to vector<64x16xbf16>
    %317 = vector.extract_strided_slice %295 {offsets = [0, 16], sizes = [64, 16], strides = [1, 1]} : vector<64x64xbf16> to vector<64x16xbf16>
    %cst_101 = arith.constant dense<0.000000e+00> : vector<64x64xf32>
    %318 = tpu.matmul %315, %316, %cst_101 {dimension_numbers = #tpu.dot_dimension_numbers<[1], [1], [0], [0], [0, 0, 1, 0], [], []>} : vector<64x16xbf16>, vector<64x16xbf16>, vector<64x64xf32> -> vector<64x64xf32>
    %cst_102 = arith.constant 2.500000e-01 : f32
    %319 = vector.broadcast %cst_102 : f32 to vector<64x64xf32>
    %320 = arith.mulf %318, %319 : vector<64x64xf32>
    %321 = arith.addf %320, %66 : vector<64x64xf32>
    %cst_103 = arith.constant dense<0xFF800000> : vector<64xf32>
    %322 = vector.multi_reduction <maximumf>, %321, %cst_103 [1] : vector<64x64xf32> to vector<64xf32>
    %323 = vector.shape_cast %322 : vector<64xf32> to vector<64x1xf32>
    %324 = vector.broadcast %323 : vector<64x1xf32> to vector<64x64xf32>
    %325 = arith.subf %321, %324 : vector<64x64xf32>
    %326 = math.exp %325 : vector<64x64xf32>
    %cst_104 = arith.constant dense<0.000000e+00> : vector<64xf32>
    %327 = vector.multi_reduction <add>, %326, %cst_104 [1] : vector<64x64xf32> to vector<64xf32>
    %328 = vector.shape_cast %327 : vector<64xf32> to vector<64x1xf32>
    %329 = tpu.reciprocal %328 {approx = true} : vector<64x1xf32> -> vector<64x1xf32>
    %330 = vector.broadcast %329 : vector<64x1xf32> to vector<64x64xf32>
    %331 = arith.mulf %326, %330 : vector<64x64xf32>
    %332 = arith.truncf %331 : vector<64x64xf32> to vector<64x64xbf16>
    %cst_105 = arith.constant dense<0.000000e+00> : vector<64x16xf32>
    %333 = tpu.matmul %332, %317, %cst_105 {dimension_numbers = #tpu.dot_dimension_numbers<[1], [0], [0], [1], [0, 0, 1, 1], [], []>} : vector<64x64xbf16>, vector<64x16xbf16>, vector<64x16xf32> -> vector<64x16xf32>
    %334 = vector.extract_strided_slice %287 {offsets = [0, 32], sizes = [64, 16], strides = [1, 1]} : vector<64x64xbf16> to vector<64x16xbf16>
    %335 = vector.extract_strided_slice %291 {offsets = [0, 32], sizes = [64, 16], strides = [1, 1]} : vector<64x64xbf16> to vector<64x16xbf16>
    %336 = vector.extract_strided_slice %295 {offsets = [0, 32], sizes = [64, 16], strides = [1, 1]} : vector<64x64xbf16> to vector<64x16xbf16>
    %cst_106 = arith.constant dense<0.000000e+00> : vector<64x64xf32>
    %337 = tpu.matmul %334, %335, %cst_106 {dimension_numbers = #tpu.dot_dimension_numbers<[1], [1], [0], [0], [0, 0, 1, 0], [], []>} : vector<64x16xbf16>, vector<64x16xbf16>, vector<64x64xf32> -> vector<64x64xf32>
    %cst_107 = arith.constant 2.500000e-01 : f32
    %338 = vector.broadcast %cst_107 : f32 to vector<64x64xf32>
    %339 = arith.mulf %337, %338 : vector<64x64xf32>
    %340 = arith.addf %339, %66 : vector<64x64xf32>
    %cst_108 = arith.constant dense<0xFF800000> : vector<64xf32>
    %341 = vector.multi_reduction <maximumf>, %340, %cst_108 [1] : vector<64x64xf32> to vector<64xf32>
    %342 = vector.shape_cast %341 : vector<64xf32> to vector<64x1xf32>
    %343 = vector.broadcast %342 : vector<64x1xf32> to vector<64x64xf32>
    %344 = arith.subf %340, %343 : vector<64x64xf32>
    %345 = math.exp %344 : vector<64x64xf32>
    %cst_109 = arith.constant dense<0.000000e+00> : vector<64xf32>
    %346 = vector.multi_reduction <add>, %345, %cst_109 [1] : vector<64x64xf32> to vector<64xf32>
    %347 = vector.shape_cast %346 : vector<64xf32> to vector<64x1xf32>
    %348 = tpu.reciprocal %347 {approx = true} : vector<64x1xf32> -> vector<64x1xf32>
    %349 = vector.broadcast %348 : vector<64x1xf32> to vector<64x64xf32>
    %350 = arith.mulf %345, %349 : vector<64x64xf32>
    %351 = arith.truncf %350 : vector<64x64xf32> to vector<64x64xbf16>
    %cst_110 = arith.constant dense<0.000000e+00> : vector<64x16xf32>
    %352 = tpu.matmul %351, %336, %cst_110 {dimension_numbers = #tpu.dot_dimension_numbers<[1], [0], [0], [1], [0, 0, 1, 1], [], []>} : vector<64x64xbf16>, vector<64x16xbf16>, vector<64x16xf32> -> vector<64x16xf32>
    %353 = vector.extract_strided_slice %287 {offsets = [0, 48], sizes = [64, 16], strides = [1, 1]} : vector<64x64xbf16> to vector<64x16xbf16>
    %354 = vector.extract_strided_slice %291 {offsets = [0, 48], sizes = [64, 16], strides = [1, 1]} : vector<64x64xbf16> to vector<64x16xbf16>
    %355 = vector.extract_strided_slice %295 {offsets = [0, 48], sizes = [64, 16], strides = [1, 1]} : vector<64x64xbf16> to vector<64x16xbf16>
    %cst_111 = arith.constant dense<0.000000e+00> : vector<64x64xf32>
    %356 = tpu.matmul %353, %354, %cst_111 {dimension_numbers = #tpu.dot_dimension_numbers<[1], [1], [0], [0], [0, 0, 1, 0], [], []>} : vector<64x16xbf16>, vector<64x16xbf16>, vector<64x64xf32> -> vector<64x64xf32>
    %cst_112 = arith.constant 2.500000e-01 : f32
    %357 = vector.broadcast %cst_112 : f32 to vector<64x64xf32>
    %358 = arith.mulf %356, %357 : vector<64x64xf32>
    %359 = arith.addf %358, %66 : vector<64x64xf32>
    %cst_113 = arith.constant dense<0xFF800000> : vector<64xf32>
    %360 = vector.multi_reduction <maximumf>, %359, %cst_113 [1] : vector<64x64xf32> to vector<64xf32>
    %361 = vector.shape_cast %360 : vector<64xf32> to vector<64x1xf32>
    %362 = vector.broadcast %361 : vector<64x1xf32> to vector<64x64xf32>
    %363 = arith.subf %359, %362 : vector<64x64xf32>
    %364 = math.exp %363 : vector<64x64xf32>
    %cst_114 = arith.constant dense<0.000000e+00> : vector<64xf32>
    %365 = vector.multi_reduction <add>, %364, %cst_114 [1] : vector<64x64xf32> to vector<64xf32>
    %366 = vector.shape_cast %365 : vector<64xf32> to vector<64x1xf32>
    %367 = tpu.reciprocal %366 {approx = true} : vector<64x1xf32> -> vector<64x1xf32>
    %368 = vector.broadcast %367 : vector<64x1xf32> to vector<64x64xf32>
    %369 = arith.mulf %364, %368 : vector<64x64xf32>
    %370 = arith.truncf %369 : vector<64x64xf32> to vector<64x64xbf16>
    %cst_115 = arith.constant dense<0.000000e+00> : vector<64x16xf32>
    %371 = tpu.matmul %370, %355, %cst_115 {dimension_numbers = #tpu.dot_dimension_numbers<[1], [0], [0], [1], [0, 0, 1, 1], [], []>} : vector<64x64xbf16>, vector<64x16xbf16>, vector<64x16xf32> -> vector<64x16xf32>
    %372 = tpu.concatenate %314, %333, %352, %371 in 1 : vector<64x16xf32>, vector<64x16xf32>, vector<64x16xf32>, vector<64x16xf32> -> vector<64x64xf32>
    %373 = arith.truncf %372 : vector<64x64xf32> to vector<64x64xbf16>
    %cst_116 = arith.constant dense<0.000000e+00> : vector<64x64xf32>
    %374 = tpu.matmul %373, %259, %cst_116 {dimension_numbers = #tpu.dot_dimension_numbers<[1], [0], [0], [1], [0, 0, 1, 1], [], []>} : vector<64x64xbf16>, vector<64x64xbf16>, vector<64x64xf32> -> vector<64x64xf32>
    %375 = vector.broadcast %249 : vector<1x64xf32> to vector<64x64xf32>
    %376 = arith.addf %374, %375 : vector<64x64xf32>
    %377 = arith.addf %243, %376 : vector<64x64xf32>
    %cst_117 = arith.constant dense<0.000000e+00> : vector<64xf32>
    %378 = vector.multi_reduction <add>, %377, %cst_117 [1] : vector<64x64xf32> to vector<64xf32>
    %379 = vector.shape_cast %378 : vector<64xf32> to vector<64x1xf32>
    %cst_118 = arith.constant 6.400000e+01 : f32
    %380 = vector.broadcast %cst_118 : f32 to vector<64x1xf32>
    %381 = arith.divf %379, %380 : vector<64x1xf32>
    %382 = vector.broadcast %381 : vector<64x1xf32> to vector<64x64xf32>
    %383 = arith.subf %377, %382 : vector<64x64xf32>
    %384 = arith.mulf %383, %383 : vector<64x64xf32>
    %cst_119 = arith.constant dense<0.000000e+00> : vector<64xf32>
    %385 = vector.multi_reduction <add>, %384, %cst_119 [1] : vector<64x64xf32> to vector<64xf32>
    %386 = vector.shape_cast %385 : vector<64xf32> to vector<64x1xf32>
    %cst_120 = arith.constant 6.400000e+01 : f32
    %387 = vector.broadcast %cst_120 : f32 to vector<64x1xf32>
    %388 = arith.divf %386, %387 : vector<64x1xf32>
    %cst_121 = arith.constant 9.99999974E-6 : f32
    %389 = vector.broadcast %cst_121 : f32 to vector<64x1xf32>
    %390 = arith.addf %388, %389 : vector<64x1xf32>
    %391 = math.rsqrt %390 : vector<64x1xf32>
    %392 = vector.broadcast %391 : vector<64x1xf32> to vector<64x64xf32>
    %393 = arith.mulf %383, %392 : vector<64x64xf32>
    %394 = vector.broadcast %250 : vector<1x64xf32> to vector<64x64xf32>
    %395 = arith.mulf %393, %394 : vector<64x64xf32>
    %396 = vector.broadcast %251 : vector<1x64xf32> to vector<64x64xf32>
    %397 = arith.addf %395, %396 : vector<64x64xf32>
    %398 = arith.truncf %397 : vector<64x64xf32> to vector<64x64xbf16>
    %cst_122 = arith.constant dense<0.000000e+00> : vector<64x256xf32>
    %399 = tpu.matmul %398, %261, %cst_122 {dimension_numbers = #tpu.dot_dimension_numbers<[1], [0], [0], [1], [0, 0, 1, 1], [], []>} : vector<64x64xbf16>, vector<64x256xbf16>, vector<64x256xf32> -> vector<64x256xf32>
    %400 = vector.broadcast %256 : vector<1x256xf32> to vector<64x256xf32>
    %401 = arith.addf %399, %400 : vector<64x256xf32>
    %cst_123 = arith.constant 5.000000e-01 : f32
    %402 = vector.broadcast %cst_123 : f32 to vector<64x256xf32>
    %403 = arith.mulf %402, %401 : vector<64x256xf32>
    %cst_124 = arith.constant 0.636619746 : f32
    %404 = math.sqrt %cst_124 : f32
    %405 = arith.mulf %401, %401 : vector<64x256xf32>
    %406 = arith.mulf %401, %405 : vector<64x256xf32>
    %cst_125 = arith.constant 4.471500e-02 : f32
    %407 = vector.broadcast %cst_125 : f32 to vector<64x256xf32>
    %408 = arith.mulf %407, %406 : vector<64x256xf32>
    %409 = arith.addf %401, %408 : vector<64x256xf32>
    %410 = vector.broadcast %404 : f32 to vector<64x256xf32>
    %411 = arith.mulf %410, %409 : vector<64x256xf32>
    %412 = math.tanh %411 : vector<64x256xf32>
    %cst_126 = arith.constant 1.000000e+00 : f32
    %413 = vector.broadcast %cst_126 : f32 to vector<64x256xf32>
    %414 = arith.addf %413, %412 : vector<64x256xf32>
    %415 = arith.mulf %403, %414 : vector<64x256xf32>
    %416 = arith.truncf %415 : vector<64x256xf32> to vector<64x256xbf16>
    %cst_127 = arith.constant dense<0.000000e+00> : vector<64x64xf32>
    %417 = tpu.matmul %416, %260, %cst_127 {dimension_numbers = #tpu.dot_dimension_numbers<[1], [0], [0], [1], [0, 0, 1, 1], [], []>} : vector<64x256xbf16>, vector<256x64xbf16>, vector<64x64xf32> -> vector<64x64xf32>
    %418 = vector.broadcast %257 : vector<1x64xf32> to vector<64x64xf32>
    %419 = arith.addf %417, %418 : vector<64x64xf32>
    %420 = arith.addf %377, %419 : vector<64x64xf32>
    %c96 = arith.constant 96 : index
    %c0_128 = arith.constant 0 : index
    %421 = vector.load %arg1[%c96, %c0_128] : memref<104x64xf32, #tpu.memory_space<vmem>>, vector<1x64xf32>
    %c97 = arith.constant 97 : index
    %c0_129 = arith.constant 0 : index
    %422 = vector.load %arg1[%c97, %c0_129] : memref<104x64xf32, #tpu.memory_space<vmem>>, vector<1x64xf32>
    %c98 = arith.constant 98 : index
    %c0_130 = arith.constant 0 : index
    %423 = vector.load %arg1[%c98, %c0_130] : memref<104x64xf32, #tpu.memory_space<vmem>>, vector<1x32xf32>
    %cst_131 = arith.constant dense<0.000000e+00> : vector<64xf32>
    %424 = vector.multi_reduction <add>, %420, %cst_131 [1] : vector<64x64xf32> to vector<64xf32>
    %425 = vector.shape_cast %424 : vector<64xf32> to vector<64x1xf32>
    %cst_132 = arith.constant 6.400000e+01 : f32
    %426 = vector.broadcast %cst_132 : f32 to vector<64x1xf32>
    %427 = arith.divf %425, %426 : vector<64x1xf32>
    %428 = vector.broadcast %427 : vector<64x1xf32> to vector<64x64xf32>
    %429 = arith.subf %420, %428 : vector<64x64xf32>
    %430 = arith.mulf %429, %429 : vector<64x64xf32>
    %cst_133 = arith.constant dense<0.000000e+00> : vector<64xf32>
    %431 = vector.multi_reduction <add>, %430, %cst_133 [1] : vector<64x64xf32> to vector<64xf32>
    %432 = vector.shape_cast %431 : vector<64xf32> to vector<64x1xf32>
    %cst_134 = arith.constant 6.400000e+01 : f32
    %433 = vector.broadcast %cst_134 : f32 to vector<64x1xf32>
    %434 = arith.divf %432, %433 : vector<64x1xf32>
    %cst_135 = arith.constant 9.99999974E-6 : f32
    %435 = vector.broadcast %cst_135 : f32 to vector<64x1xf32>
    %436 = arith.addf %434, %435 : vector<64x1xf32>
    %437 = math.rsqrt %436 : vector<64x1xf32>
    %438 = vector.broadcast %437 : vector<64x1xf32> to vector<64x64xf32>
    %439 = arith.mulf %429, %438 : vector<64x64xf32>
    %440 = vector.broadcast %421 : vector<1x64xf32> to vector<64x64xf32>
    %441 = arith.mulf %439, %440 : vector<64x64xf32>
    %442 = vector.broadcast %422 : vector<1x64xf32> to vector<64x64xf32>
    %443 = arith.addf %441, %442 : vector<64x64xf32>
    %444 = vector.extract_strided_slice %443 {offsets = [0, 0], sizes = [8, 64], strides = [1, 1]} : vector<64x64xf32> to vector<8x64xf32>
    %445 = vector.extract_strided_slice %443 {offsets = [8, 0], sizes = [8, 64], strides = [1, 1]} : vector<64x64xf32> to vector<8x64xf32>
    %446 = vector.extract_strided_slice %443 {offsets = [16, 0], sizes = [8, 64], strides = [1, 1]} : vector<64x64xf32> to vector<8x64xf32>
    %447 = vector.extract_strided_slice %443 {offsets = [24, 0], sizes = [8, 64], strides = [1, 1]} : vector<64x64xf32> to vector<8x64xf32>
    %448 = vector.extract_strided_slice %443 {offsets = [32, 0], sizes = [8, 64], strides = [1, 1]} : vector<64x64xf32> to vector<8x64xf32>
    %449 = vector.extract_strided_slice %443 {offsets = [40, 0], sizes = [8, 64], strides = [1, 1]} : vector<64x64xf32> to vector<8x64xf32>
    %450 = vector.extract_strided_slice %443 {offsets = [48, 0], sizes = [8, 64], strides = [1, 1]} : vector<64x64xf32> to vector<8x64xf32>
    %451 = vector.extract_strided_slice %443 {offsets = [56, 0], sizes = [8, 64], strides = [1, 1]} : vector<64x64xf32> to vector<8x64xf32>
    %452 = tpu.concatenate %444, %445, %446, %447, %448, %449, %450, %451 in 1 : vector<8x64xf32>, vector<8x64xf32>, vector<8x64xf32>, vector<8x64xf32>, vector<8x64xf32>, vector<8x64xf32>, vector<8x64xf32>, vector<8x64xf32> -> vector<8x512xf32>
    %c656 = arith.constant 656 : index
    %c0_136 = arith.constant 0 : index
    %453 = vector.load %arg3[%c656, %c0_136] : memref<1168x64xbf16, #tpu.memory_space<vmem>>, vector<512x64xbf16>
    %454 = arith.truncf %452 : vector<8x512xf32> to vector<8x512xbf16>
    %cst_137 = arith.constant dense<0.000000e+00> : vector<8x64xf32>
    %455 = tpu.matmul %454, %453, %cst_137 {dimension_numbers = #tpu.dot_dimension_numbers<[1], [0], [0], [1], [0, 0, 1, 1], [], []>} : vector<8x512xbf16>, vector<512x64xbf16>, vector<8x64xf32> -> vector<8x64xf32>
    %456 = vector.extract_strided_slice %455 {offsets = [0, 0], sizes = [8, 32], strides = [1, 1]} : vector<8x64xf32> to vector<8x32xf32>
    %457 = vector.broadcast %423 : vector<1x32xf32> to vector<8x32xf32>
    %458 = arith.addf %456, %457 : vector<8x32xf32>
    %459 = vector.broadcast %14 : vector<8x1xf32> to vector<8x32xf32>
    %460 = arith.mulf %458, %459 : vector<8x32xf32>
    %461 = vector.broadcast %4 : vector<8x1xf32> to vector<8x32xf32>
    %462 = arith.addf %460, %461 : vector<8x32xf32>
    %463 = vector.extract_strided_slice %462 {offsets = [0, 0], sizes = [6, 32], strides = [1, 1]} : vector<8x32xf32> to vector<6x32xf32>
    %c0_138 = arith.constant 0 : index
    %c0_139 = arith.constant 0 : index
    %464 = vector.load %arg5[%c0_138, %c0_139] : memref<6x32xf32, #tpu.memory_space<vmem>>, vector<6x32xf32>
    tpu.vector_store %arg5[%c0_138, %c0_139], %463 {strides = array<i32>} : memref<6x32xf32, #tpu.memory_space<vmem>>, vector<6x32xf32>,
    return
  }
}

</mosaic_0001>

<llo_original>
// kernel: ofa_forward.1
$region0: #{ofa_forward.1}
  #allocation0 [shape = 'u32[]', space=smem, size = 0x4, offset = 0x4, fixed_abs, tag = 'smem constant byte address 0x4 - core index']
  #allocation1 [shape = 'u32[144,128]{1,0:T(1,128)}', space=vmem, size = 0x12000, scoped, tag = 'internal scratch']
  %s0 = inlined_call_operand.vmem [shape: f32[8,64], index: 0, kind: input, shape index: {}]
  %s1 = inlined_call_operand.vmem [shape: f32[104,64], index: 1, kind: input, shape index: {}]
  %s2 = inlined_call_operand.vmem [shape: bf16[128,192], index: 2, kind: input, shape index: {}]
  %s3 = inlined_call_operand.vmem [shape: bf16[1168,64], index: 3, kind: input, shape index: {}]
  %s4 = inlined_call_operand.vmem [shape: bf16[128,256], index: 4, kind: input, shape index: {}]
  %s5 = inlined_call_operand.vmem [shape: f32[6,32], index: 5, kind: output, shape index: {}]
  %s6 = sld [smem:[#allocation0]]
  $region30: #{ofa_forward.1} parent=0
    _
  %s8 = ssub.s32 1, %s6
  %s9 = scalar_select 0, %s8, %s6
  // Predicated region
  $region2: #{ofa_forward.1} parent=0 // pred_check
    _
  $region3: #{ofa_forward.1} parent=0 // pred_check_branch
    %11 = sbr.rel (0) target = $region5
  $region4: #{ofa_forward.1} parent=0 // pred_region
    _
  $region5: #{ofa_forward.1} parent=0 // pred_fallthru
    _
  // Predicated region
  $region6: #{ofa_forward.1} parent=0 // pred_check
    _
  $region7: #{ofa_forward.1} parent=0 // pred_check_branch
    %13 = sbr.rel (0) target = $region9
  $region8: #{ofa_forward.1} parent=0 // pred_region
    _
  $region9: #{ofa_forward.1} parent=0 // pred_fallthru
    _
  // Predicated region
  $region10: #{ofa_forward.1} parent=0 // pred_check
    _
  $region11: #{ofa_forward.1} parent=0 // pred_check_branch
    %15 = sbr.rel (0) target = $region13
  $region12: #{ofa_forward.1} parent=0 // pred_region
    _
  $region13: #{ofa_forward.1} parent=0 // pred_fallthru
    _
  // Predicated region
  $region14: #{ofa_forward.1} parent=0 // pred_check
    _
  $region15: #{ofa_forward.1} parent=0 // pred_check_branch
    %17 = sbr.rel (0) target = $region17
  $region16: #{ofa_forward.1} parent=0 // pred_region
    _
  $region17: #{ofa_forward.1} parent=0 // pred_fallthru
    _
  // Predicated region
  $region18: #{ofa_forward.1} parent=0 // pred_check
    _
  $region19: #{ofa_forward.1} parent=0 // pred_check_branch
    %19 = sbr.rel (0) target = $region21
  $region20: #{ofa_forward.1} parent=0 // pred_region
    _
  $region21: #{ofa_forward.1} parent=0 // pred_fallthru
    _
  %v21 = vld [vmem:[%s0] sm:$0xff]
  %vm22 = vcmask 523264
  %v23 = vsel %vm22, %v21, 0.0
  %24 = vadd.xlane.f32.xlu0 %v23
  %v25 = vpop.xlane.xlu0 %24
  %v26 = vrcp.pop 64.0
  %v27 = vmul.f32 %v25, %v26
  %v28 = vsub.f32 %v21, %v27
  %v29 = vmul.f32 %v28, %v28
  %v30 = vsel %vm22, %v29, 0.0
  %31 = vadd.xlane.f32.xlu0 %v30
  %v32 = vpop.xlane.xlu0 %31
  %v33 = vmul.f32 %v32, %v26
  %v34 = vadd.f32 %v33, 1e-05
  %v35 = vrsqrt.pop %v34
  %v36 = vmul.f32 %v34, %v35
  %vm37 = vcmp.eq.f32.partialorder %v34, inf
  %v38 = vsel %vm37, %v34, %v36
  %vm39 = vcmp.eq.f32.partialorder %v34, 0.0
  %v40 = vand.u32 %v34, 2147483648
  %v41 = vsel %vm39, %v40, %v38
  %v42 = vrsqrt.pop %v34
  %v43 = vmul.f32 %v28, %v42
  %45 = vset.pattern.permute.xlu0 63
  %46 = vperm.xlu0 %45, %v43
  %v47 = vpop.permute.xlu0 %46
  %v49 = vsel %vm22, %v43, %v47
  %51 = vrot.lane.b32.xlu0 %v49, 120
  %v52 = vpop.permute.xlu0 %51
  %54 = vrot.lane.b32.xlu0 %v49, 112
  %v55 = vpop.permute.xlu0 %54
  %57 = vrot.lane.b32.xlu0 %v49, 104
  %v58 = vpop.permute.xlu0 %57
  %60 = vrot.lane.b32.xlu0 %v49, 96
  %v61 = vpop.permute.xlu0 %60
  %63 = vrot.lane.b32.xlu0 %v49, 88
  %v64 = vpop.permute.xlu0 %63
  %66 = vrot.lane.b32.xlu0 %v49, 80
  %v67 = vpop.permute.xlu0 %66
  %69 = vrot.lane.b32.xlu0 %v49, 72
  %v70 = vpop.permute.xlu0 %69
  %v72 = vld [vmem:[%s3] sm:$0xf]
  %v73 = vld [vmem:[%s3 + $0x4] sm:$0xf]
  %v74 = vpack.c.bf16 %v52, %v49
  %v75 = vpack.c.bf16 %v58, %v55
  %v76 = vpack.c.bf16 %v64, %v61
  %v77 = vpack.c.bf16 %v70, %v67
  %v78 = vld [vmem:[%s1] sm:$0xff]
  %v79 = vld [vmem:[%s1 + $0x8] sm:$0xff]
  %v80 = vld [vmem:[%s1 + $0x10] sm:$0xff]
  %v81 = vld [vmem:[%s1 + $0x18] sm:$0xff]
  %v82 = vld [vmem:[%s1 + $0x20] sm:$0xff]
  %v83 = vld [vmem:[%s1 + $0x28] sm:$0xff]
  %v84 = vld [vmem:[%s1 + $0x30] sm:$0xff]
  %v85 = vld [vmem:[%s1 + $0x38] sm:$0xff]
  %v88 = vunpack.c.l.b16 %v72
  %v89 = vunpack.c.l.b16 %v73
  %v90 = vpack.c.b16 %v89, %v88
  %vm92 = vcmask 130048
  %v94 = vsel %vm92, %v74, 0
  %v97 = vsel %vm92, %v75, 0
  %v100 = vsel %vm92, %v76, 0
  %v103 = vsel %vm92, %v77, 0
  %105 = vmatprep.subr.bf16.mxu0 0
  %106 = vmatpush1.bf16.msra.mxu0 0
  %107 = vmatprep.subr.bf16.mxu0 0
  %108 = vmatpush1.bf16.msra.mxu0 0
  %109 = vmatprep.subr.bf16.mxu0 0
  %110 = vmatpush1.bf16.msra.mxu0 0
  %111 = vmatprep.subr.bf16.mxu0 0
  %112 = vmatpush1.bf16.msra.mxu0 0
  %113 = vmatprep.subr.bf16.mxu0 0
  %114 = vmatpush1.bf16.msra.mxu0 0
  %115 = vmatprep.subr.bf16.mxu0 0
  %116 = vmatpush1.bf16.msra.mxu0 0
  %117 = vmatprep.subr.bf16.mxu0 0
  %118 = vmatpush1.bf16.msra.mxu0 0
  %119 = vmatprep.subr.bf16.mxu0 0
  %120 = vmatpush1.bf16.msra.mxu0 %v90
  %121 = vmatprep.subr.bf16.mxu0 0
  %122 = vmatpush2.bf16.msra.mxu0 0
  %123 = vmatprep.subr.bf16.mxu0 0
  %124 = vmatpush2.bf16.msra.mxu0 0
  %125 = vmatprep.subr.bf16.mxu0 0
  %126 = vmatpush2.bf16.msra.mxu0 0
  %127 = vmatprep.subr.bf16.mxu0 0
  %128 = vmatpush2.bf16.msra.mxu0 0
  %129 = vmatprep.subr.bf16.mxu0 0
  %130 = vmatpush2.bf16.msra.mxu0 0
  %131 = vmatprep.subr.bf16.mxu0 0
  %132 = vmatpush2.bf16.msra.mxu0 0
  %133 = vmatprep.subr.bf16.mxu0 0
  %134 = vmatpush2.bf16.msra.mxu0 0
  %135 = vmatprep.subr.bf16.mxu0 0
  %136 = vmatpush2.bf16.msra.mxu0 0
  %137 = vmatprep.mubr.bf16.mxu0 0
  %138 = vmatmul.mubr.bf16.gmra.mxu0 %v94
  %v139 = vpop.f32.mrf.mxu0
  %v140 = vadd.f32 %v78, %v139
  %v141 = vpop.f32.mrf.mxu0
  %v142 = vpop.f32.mrf.mxu0
  %v143 = vadd.f32 %v79, %v142
  %v144 = vpop.f32.mrf.mxu0
  %145 = vmatprep.mubr.bf16.mxu0 0
  %146 = vmatmul.mubr.bf16.gmra.mxu0 %v97
  %v147 = vpop.f32.mrf.mxu0
  %v148 = vadd.f32 %v80, %v147
  %v149 = vpop.f32.mrf.mxu0
  %v150 = vpop.f32.mrf.mxu0
  %v151 = vadd.f32 %v81, %v150
  %v152 = vpop.f32.mrf.mxu0
  %153 = vmatprep.mubr.bf16.mxu0 0
  %154 = vmatmul.mubr.bf16.gmra.mxu0 %v100
  %v155 = vpop.f32.mrf.mxu0
  %v156 = vadd.f32 %v82, %v155
  %v157 = vpop.f32.mrf.mxu0
  %v158 = vpop.f32.mrf.mxu0
  %v159 = vadd.f32 %v83, %v158
  %v160 = vpop.f32.mrf.mxu0
  %161 = vmatprep.mubr.bf16.mxu0 0
  %162 = vmatmul.mubr.bf16.gmra.mxu0 %v103
  %v163 = vpop.f32.mrf.mxu0
  %v164 = vadd.f32 %v84, %v163
  %v165 = vpop.f32.mrf.mxu0
  %v166 = vpop.f32.mrf.mxu0
  %v167 = vadd.f32 %v85, %v166
  %v168 = vpop.f32.mrf.mxu0
  %169 = vdwg.mxu0
  %v170 = vlaneseq
  %v171 = vshrl.u32 %v170, 7
  %v172 = vadd.s32 %v171, 8
  %v173 = vadd.s32 %v171, 16
  %v174 = vadd.s32 %v171, 24
  %v175 = vadd.s32 %v171, 32
  %v176 = vadd.s32 %v171, 40
  %v177 = vadd.s32 %v171, 48
  %v178 = vadd.s32 %v171, 56
  %v179 = vlaneseq
  %v180 = vand.u32 %v179, 127
  %v181 = vsub.s32 %v171, %v180
  %v182 = vsub.s32 %v172, %v180
  %v183 = vsub.s32 %v173, %v180
  %v184 = vsub.s32 %v174, %v180
  %v185 = vsub.s32 %v175, %v180
  %v186 = vsub.s32 %v176, %v180
  %v187 = vsub.s32 %v177, %v180
  %v188 = vsub.s32 %v178, %v180
  %vm189 = vcmp.eq.s32.totalorder %v181, 0
  %vm190 = vcmp.eq.s32.totalorder %v182, 0
  %vm191 = vcmp.eq.s32.totalorder %v183, 0
  %vm192 = vcmp.eq.s32.totalorder %v184, 0
  %vm193 = vcmp.eq.s32.totalorder %v185, 0
  %vm194 = vcmp.eq.s32.totalorder %v186, 0
  %vm195 = vcmp.eq.s32.totalorder %v187, 0
  %vm196 = vcmp.eq.s32.totalorder %v188, 0
  %vm197 = vcmp.eq.s32.totalorder %v181, 8
  %vm198 = vcmp.eq.s32.totalorder %v182, 8
  %vm199 = vcmp.eq.s32.totalorder %v183, 8
  %vm200 = vcmp.eq.s32.totalorder %v184, 8
  %vm201 = vcmp.eq.s32.totalorder %v185, 8
  %vm202 = vcmp.eq.s32.totalorder %v186, 8
  %vm203 = vcmp.eq.s32.totalorder %v187, 8
  %vm204 = vcmp.eq.s32.totalorder %v188, 8
  %vm205 = vcmp.eq.s32.totalorder %v181, 16
  %vm206 = vcmp.eq.s32.totalorder %v182, 16
  %vm207 = vcmp.eq.s32.totalorder %v183, 16
  %vm208 = vcmp.eq.s32.totalorder %v184, 16
  %vm209 = vcmp.eq.s32.totalorder %v185, 16
  %vm210 = vcmp.eq.s32.totalorder %v186, 16
  %vm211 = vcmp.eq.s32.totalorder %v187, 16
  %vm212 = vcmp.eq.s32.totalorder %v188, 16
  %vm213 = vcmp.eq.s32.totalorder %v181, 24
  %vm214 = vcmp.eq.s32.totalorder %v182, 24
  %vm215 = vcmp.eq.s32.totalorder %v183, 24
  %vm216 = vcmp.eq.s32.totalorder %v184, 24
  %vm217 = vcmp.eq.s32.totalorder %v185, 24
  %vm218 = vcmp.eq.s32.totalorder %v186, 24
  %vm219 = vcmp.eq.s32.totalorder %v187, 24
  %vm220 = vcmp.eq.s32.totalorder %v188, 24
  %vm221 = vcmp.eq.s32.totalorder %v181, 32
  %vm222 = vcmp.eq.s32.totalorder %v182, 32
  %vm223 = vcmp.eq.s32.totalorder %v183, 32
  %vm224 = vcmp.eq.s32.totalorder %v184, 32
  %vm225 = vcmp.eq.s32.totalorder %v185, 32
  %vm226 = vcmp.eq.s32.totalorder %v186, 32
  %vm227 = vcmp.eq.s32.totalorder %v187, 32
  %vm228 = vcmp.eq.s32.totalorder %v188, 32
  %vm229 = vcmp.eq.s32.totalorder %v181, 40
  %vm230 = vcmp.eq.s32.totalorder %v182, 40
  %vm231 = vcmp.eq.s32.totalorder %v183, 40
  %vm232 = vcmp.eq.s32.totalorder %v184, 40
  %vm233 = vcmp.eq.s32.totalorder %v185, 40
  %vm234 = vcmp.eq.s32.totalorder %v186, 40
  %vm235 = vcmp.eq.s32.totalorder %v187, 40
  %vm236 = vcmp.eq.s32.totalorder %v188, 40
  %vm237 = vcmp.eq.s32.totalorder %v181, 48
  %vm238 = vcmp.eq.s32.totalorder %v182, 48
  %vm239 = vcmp.eq.s32.totalorder %v183, 48
  %vm240 = vcmp.eq.s32.totalorder %v184, 48
  %vm241 = vcmp.eq.s32.totalorder %v185, 48
  %vm242 = vcmp.eq.s32.totalorder %v186, 48
  %vm243 = vcmp.eq.s32.totalorder %v187, 48
  %vm244 = vcmp.eq.s32.totalorder %v188, 48
  %vm245 = vcmp.eq.s32.totalorder %v181, 56
  %vm246 = vcmp.eq.s32.totalorder %v182, 56
  %vm247 = vcmp.eq.s32.totalorder %v183, 56
  %vm248 = vcmp.eq.s32.totalorder %v184, 56
  %vm249 = vcmp.eq.s32.totalorder %v185, 56
  %vm250 = vcmp.eq.s32.totalorder %v186, 56
  %vm251 = vcmp.eq.s32.totalorder %v187, 56
  %vm252 = vcmp.eq.s32.totalorder %v188, 56
  %vm253 = vmor %vm189, %vm197
  %vm254 = vmor %vm190, %vm198
  %vm255 = vmor %vm191, %vm199
  %vm256 = vmor %vm192, %vm200
  %vm257 = vmor %vm193, %vm201
  %vm258 = vmor %vm194, %vm202
  %vm259 = vmor %vm195, %vm203
  %vm260 = vmor %vm196, %vm204
  %vm261 = vmor %vm253, %vm205
  %vm262 = vmor %vm254, %vm206
  %vm263 = vmor %vm255, %vm207
  %vm264 = vmor %vm256, %vm208
  %vm265 = vmor %vm257, %vm209
  %vm266 = vmor %vm258, %vm210
  %vm267 = vmor %vm259, %vm211
  %vm268 = vmor %vm260, %vm212
  %vm269 = vmor %vm261, %vm213
  %vm270 = vmor %vm262, %vm214
  %vm271 = vmor %vm263, %vm215
  %vm272 = vmor %vm264, %vm216
  %vm273 = vmor %vm265, %vm217
  %vm274 = vmor %vm266, %vm218
  %vm275 = vmor %vm267, %vm219
  %vm276 = vmor %vm268, %vm220
  %vm277 = vmor %vm269, %vm221
  %vm278 = vmor %vm270, %vm222
  %vm279 = vmor %vm271, %vm223
  %vm280 = vmor %vm272, %vm224
  %vm281 = vmor %vm273, %vm225
  %vm282 = vmor %vm274, %vm226
  %vm283 = vmor %vm275, %vm227
  %vm284 = vmor %vm276, %vm228
  %vm285 = vmor %vm277, %vm229
  %vm286 = vmor %vm278, %vm230
  %vm287 = vmor %vm279, %vm231
  %vm288 = vmor %vm280, %vm232
  %vm289 = vmor %vm281, %vm233
  %vm290 = vmor %vm282, %vm234
  %vm291 = vmor %vm283, %vm235
  %vm292 = vmor %vm284, %vm236
  %vm293 = vmor %vm285, %vm237
  %vm294 = vmor %vm286, %vm238
  %vm295 = vmor %vm287, %vm239
  %vm296 = vmor %vm288, %vm240
  %vm297 = vmor %vm289, %vm241
  %vm298 = vmor %vm290, %vm242
  %vm299 = vmor %vm291, %vm243
  %vm300 = vmor %vm292, %vm244
  %vm301 = vmor %vm293, %vm245
  %vm302 = vmor %vm294, %vm246
  %vm303 = vmor %vm295, %vm247
  %vm304 = vmor %vm296, %vm248
  %vm305 = vmor %vm297, %vm249
  %vm306 = vmor %vm298, %vm250
  %vm307 = vmor %vm299, %vm251
  %vm308 = vmor %vm300, %vm252
  %v309 = vsel %vm301, 0.0, -1e+30
  %v310 = vsel %vm302, 0.0, -1e+30
  %v311 = vsel %vm303, 0.0, -1e+30
  %v312 = vsel %vm304, 0.0, -1e+30
  %v313 = vsel %vm305, 0.0, -1e+30
  %v314 = vsel %vm306, 0.0, -1e+30
  %v315 = vsel %vm307, 0.0, -1e+30
  %v316 = vsel %vm308, 0.0, -1e+30
  %v317 = vld [vmem:[%s1 + $0x40] sm:$0x1]
  %v318 = vld [vmem:[%s1 + $0x41] sm:$0x1]
  %v319 = vld [vmem:[%s1 + $0x42] sm:$0x1]
  %v320 = vld [vmem:[%s1 + $0x43] sm:$0x1]
  %v321 = vld [vmem:[%s1 + $0x44] sm:$0x1]
  %v322 = vld [vmem:[%s1 + $0x45] sm:$0x1]
  %v323 = vld [vmem:[%s1 + $0x46] sm:$0x1]
  %v324 = vld [vmem:[%s1 + $0x47] sm:$0x1]
  %v325 = vld [vmem:[%s1 + $0x48] sm:$0x1]
  %v326 = vld [vmem:[%s1 + $0x49] sm:$0x1]
  %v327 = vld [vmem:[%s1 + $0x4a] sm:$0x1]
  %v328 = vld [vmem:[%s1 + $0x4b] sm:$0x1]
  %330 = vrot.lane.b32.xlu0 %v326, 64
  %v331 = vpop.permute.xlu0 %330
  %334 = vrot.lane.b32.xlu0 %v328, 64
  %v335 = vpop.permute.xlu0 %334
  %v337 = vsel %vm22, %v325, %v331
  %v338 = vsel %vm22, %v327, %v335
  %v339 = vld [vmem:[%s1 + $0x4c] sm:$0x1]
  %v340 = vld [vmem:[%s2] sm:$0xff]
  %v341 = vld [vmem:[%s2 + $0x8] sm:$0xff]
  %v342 = vld [vmem:[%s2 + $0x10] sm:$0xff]
  %v343 = vld [vmem:[%s2 + $0x18] sm:$0xff]
  %v344 = vld [vmem:[%s2 + $0x20] sm:$0xff]
  %v345 = vld [vmem:[%s2 + $0x28] sm:$0xff]
  %v346 = vld [vmem:[%s2 + $0x30] sm:$0xff]
  %v347 = vld [vmem:[%s2 + $0x38] sm:$0xff]
  %v348 = vld [vmem:[%s3 + $0x8] sm:$0xf]
  %v349 = vld [vmem:[%s3 + $0xc] sm:$0xf]
  %v350 = vld [vmem:[%s3 + $0x10] sm:$0xf]
  %v351 = vld [vmem:[%s3 + $0x14] sm:$0xf]
  %v352 = vld [vmem:[%s3 + $0x18] sm:$0xf]
  %v353 = vld [vmem:[%s3 + $0x1c] sm:$0xf]
  %v354 = vld [vmem:[%s3 + $0x20] sm:$0xf]
  %v355 = vld [vmem:[%s3 + $0x24] sm:$0xf]
  %v356 = vld [vmem:[%s3 + $0x28] sm:$0xf]
  %v357 = vld [vmem:[%s3 + $0x2c] sm:$0xf]
  %v358 = vld [vmem:[%s3 + $0x30] sm:$0xf]
  %v359 = vld [vmem:[%s3 + $0x34] sm:$0xf]
  %v360 = vld [vmem:[%s3 + $0x38] sm:$0xf]
  %v361 = vld [vmem:[%s3 + $0x3c] sm:$0xf]
  %v362 = vld [vmem:[%s3 + $0x40] sm:$0xf]
  %v363 = vld [vmem:[%s3 + $0x44] sm:$0xf]
  %v364 = vld [vmem:[%s3 + $0x48] sm:$0xf]
  %v365 = vld [vmem:[%s3 + $0x4c] sm:$0xf]
  %v366 = vld [vmem:[%s3 + $0x50] sm:$0xf]
  %v367 = vld [vmem:[%s3 + $0x54] sm:$0xf]
  %v368 = vld [vmem:[%s3 + $0x58] sm:$0xf]
  %v369 = vld [vmem:[%s3 + $0x5c] sm:$0xf]
  %v370 = vld [vmem:[%s3 + $0x60] sm:$0xf]
  %v371 = vld [vmem:[%s3 + $0x64] sm:$0xf]
  %v372 = vld [vmem:[%s3 + $0x68] sm:$0xf]
  %v373 = vld [vmem:[%s3 + $0x6c] sm:$0xf]
  %v374 = vld [vmem:[%s3 + $0x70] sm:$0xf]
  %v375 = vld [vmem:[%s3 + $0x74] sm:$0xf]
  %v376 = vld [vmem:[%s3 + $0x78] sm:$0xf]
  %v377 = vld [vmem:[%s3 + $0x7c] sm:$0xf]
  %v378 = vld [vmem:[%s3 + $0x80] sm:$0xf]
  %v379 = vld [vmem:[%s3 + $0x84] sm:$0xf]
  %v380 = vld [vmem:[%s3 + $0x88] sm:$0xf]
  %v381 = vld [vmem:[%s3 + $0x8c] sm:$0xf]
  %v382 = vld [vmem:[%s3 + $0x90] sm:$0xf]
  %v383 = vld [vmem:[%s3 + $0x94] sm:$0xf]
  %v384 = vld [vmem:[%s3 + $0x98] sm:$0xf]
  %v385 = vld [vmem:[%s3 + $0x9c] sm:$0xf]
  %v386 = vld [vmem:[%s3 + $0xa0] sm:$0xf]
  %v387 = vld [vmem:[%s3 + $0xa4] sm:$0xf]
  %v388 = vld [vmem:[%s4] sm:$0xff]
  %v389 = vld [vmem:[%s4 + $0x8] sm:$0xff]
  %v390 = vld [vmem:[%s4 + $0x10] sm:$0xff]
  %v391 = vld [vmem:[%s4 + $0x18] sm:$0xff]
  %v392 = vld [vmem:[%s4 + $0x20] sm:$0xff]
  %v393 = vld [vmem:[%s4 + $0x28] sm:$0xff]
  %v394 = vld [vmem:[%s4 + $0x30] sm:$0xff]
  %v395 = vld [vmem:[%s4 + $0x38] sm:$0xff]
  %v396 = vsel %vm22, %v140, 0.0
  %397 = vadd.xlane.f32.xlu0 %v396
  %v398 = vpop.xlane.xlu0 %397
  %v399 = vsel %vm22, %v143, 0.0
  %400 = vadd.xlane.f32.xlu0 %v399
  %v401 = vpop.xlane.xlu0 %400
  %v402 = vsel %vm22, %v148, 0.0
  %403 = vadd.xlane.f32.xlu0 %v402
  %v404 = vpop.xlane.xlu0 %403
  %v405 = vsel %vm22, %v151, 0.0
  %406 = vadd.xlane.f32.xlu0 %v405
  %v407 = vpop.xlane.xlu0 %406
  %v408 = vsel %vm22, %v156, 0.0
  %409 = vadd.xlane.f32.xlu0 %v408
  %v410 = vpop.xlane.xlu0 %409
  %v411 = vsel %vm22, %v159, 0.0
  %412 = vadd.xlane.f32.xlu0 %v411
  %v413 = vpop.xlane.xlu0 %412
  %v414 = vsel %vm22, %v164, 0.0
  %415 = vadd.xlane.f32.xlu0 %v414
  %v416 = vpop.xlane.xlu0 %415
  %v417 = vsel %vm22, %v167, 0.0
  %418 = vadd.xlane.f32.xlu0 %v417
  %v419 = vpop.xlane.xlu0 %418
  %v420 = vmul.f32 %v398, %v26
  %v421 = vmul.f32 %v401, %v26
  %v422 = vmul.f32 %v404, %v26
  %v423 = vmul.f32 %v407, %v26
  %v424 = vmul.f32 %v410, %v26
  %v425 = vmul.f32 %v413, %v26
  %v426 = vmul.f32 %v416, %v26
  %v427 = vmul.f32 %v419, %v26
  %v428 = vsub.f32 %v140, %v420
  %v429 = vsub.f32 %v143, %v421
  %v430 = vsub.f32 %v148, %v422
  %v431 = vsub.f32 %v151, %v423
  %v432 = vsub.f32 %v156, %v424
  %v433 = vsub.f32 %v159, %v425
  %v434 = vsub.f32 %v164, %v426
  %v435 = vsub.f32 %v167, %v427
  %v436 = vmul.f32 %v428, %v428
  %v437 = vmul.f32 %v429, %v429
  %v438 = vmul.f32 %v430, %v430
  %v439 = vmul.f32 %v431, %v431
  %v440 = vmul.f32 %v432, %v432
  %v441 = vmul.f32 %v433, %v433
  %v442 = vmul.f32 %v434, %v434
  %v443 = vmul.f32 %v435, %v435
  %v444 = vsel %vm22, %v436, 0.0
  %445 = vadd.xlane.f32.xlu0 %v444
  %v446 = vpop.xlane.xlu0 %445
  %v447 = vsel %vm22, %v437, 0.0
  %448 = vadd.xlane.f32.xlu0 %v447
  %v449 = vpop.xlane.xlu0 %448
  %v450 = vsel %vm22, %v438, 0.0
  %451 = vadd.xlane.f32.xlu0 %v450
  %v452 = vpop.xlane.xlu0 %451
  %v453 = vsel %vm22, %v439, 0.0
  %454 = vadd.xlane.f32.xlu0 %v453
  %v455 = vpop.xlane.xlu0 %454
  %v456 = vsel %vm22, %v440, 0.0
  %457 = vadd.xlane.f32.xlu0 %v456
  %v458 = vpop.xlane.xlu0 %457
  %v459 = vsel %vm22, %v441, 0.0
  %460 = vadd.xlane.f32.xlu0 %v459
  %v461 = vpop.xlane.xlu0 %460
  %v462 = vsel %vm22, %v442, 0.0
  %463 = vadd.xlane.f32.xlu0 %v462
  %v464 = vpop.xlane.xlu0 %463
  %v465 = vsel %vm22, %v443, 0.0
  %466 = vadd.xlane.f32.xlu0 %v465
  %v467 = vpop.xlane.xlu0 %466
  %v468 = vmul.f32 %v446, %v26
  %v469 = vmul.f32 %v449, %v26
  %v470 = vmul.f32 %v452, %v26
  %v471 = vmul.f32 %v455, %v26
  %v472 = vmul.f32 %v458, %v26
  %v473 = vmul.f32 %v461, %v26
  %v474 = vmul.f32 %v464, %v26
  %v475 = vmul.f32 %v467, %v26
  %v476 = vadd.f32 %v468, 1e-05
  %v477 = vadd.f32 %v469, 1e-05
  %v478 = vadd.f32 %v470, 1e-05
  %v479 = vadd.f32 %v471, 1e-05
  %v480 = vadd.f32 %v472, 1e-05
  %v481 = vadd.f32 %v473, 1e-05
  %v482 = vadd.f32 %v474, 1e-05
  %v483 = vadd.f32 %v475, 1e-05
  %v484 = vrsqrt.pop %v476
  %v485 = vrsqrt.pop %v477
  %v486 = vrsqrt.pop %v478
  %v487 = vrsqrt.pop %v479
  %v488 = vrsqrt.pop %v480
  %v489 = vrsqrt.pop %v481
  %v490 = vrsqrt.pop %v482
  %v491 = vrsqrt.pop %v483
  %v492 = vmul.f32 %v428, %v484
  %v493 = vmul.f32 %v429, %v485
  %v494 = vmul.f32 %v430, %v486
  %v495 = vmul.f32 %v431, %v487
  %v496 = vmul.f32 %v432, %v488
  %v497 = vmul.f32 %v433, %v489
  %v498 = vmul.f32 %v434, %v490
  %v499 = vmul.f32 %v435, %v491
  %v500 = vlaneseq
  %v501 = vshrl.u32 %v500, 7
  %v502 = vsub.s32 0, %v501
  %v503 = vrot.slane %v317, %v502
  %v504 = vmul.f32 %v492, %v503
  %v505 = vmul.f32 %v493, %v503
  %v506 = vmul.f32 %v494, %v503
  %v507 = vmul.f32 %v495, %v503
  %v508 = vmul.f32 %v496, %v503
  %v509 = vmul.f32 %v497, %v503
  %v510 = vmul.f32 %v498, %v503
  %v511 = vmul.f32 %v499, %v503
  %v512 = vlaneseq
  %v513 = vshrl.u32 %v512, 7
  %v514 = vsub.s32 0, %v513
  %v515 = vrot.slane %v318, %v514
  %v516 = vadd.f32 %v504, %v515
  %v517 = vadd.f32 %v505, %v515
  %v518 = vadd.f32 %v506, %v515
  %v519 = vadd.f32 %v507, %v515
  %v520 = vadd.f32 %v508, %v515
  %v521 = vadd.f32 %v509, %v515
  %v522 = vadd.f32 %v510, %v515
  %v523 = vadd.f32 %v511, %v515
  %v524 = vpack.c.bf16 %v517, %v516
  %v525 = vpack.c.bf16 %v519, %v518
  %v526 = vpack.c.bf16 %v521, %v520
  %v527 = vpack.c.bf16 %v523, %v522
  %v536 = vunpack.c.l.b16 %v340
  %v537 = vunpack.c.h.b16 %v340
  %v538 = vunpack.c.l.b16 %v341
  %v539 = vunpack.c.h.b16 %v341
  %v540 = vunpack.c.l.b16 %v342
  %v541 = vunpack.c.h.b16 %v342
  %v542 = vunpack.c.l.b16 %v343
  %v543 = vunpack.c.h.b16 %v343
  %v544 = vunpack.c.l.b16 %v344
  %v545 = vunpack.c.h.b16 %v344
  %v546 = vunpack.c.l.b16 %v345
  %v547 = vunpack.c.h.b16 %v345
  %v548 = vunpack.c.l.b16 %v346
  %v549 = vunpack.c.h.b16 %v346
  %v550 = vunpack.c.l.b16 %v347
  %v551 = vunpack.c.h.b16 %v347
  %v552 = vpack.c.b16 %v538, %v536
  %v553 = vpack.c.b16 %v539, %v537
  %v554 = vpack.c.b16 %v542, %v540
  %v555 = vpack.c.b16 %v543, %v541
  %v556 = vpack.c.b16 %v546, %v544
  %v557 = vpack.c.b16 %v547, %v545
  %v558 = vpack.c.b16 %v550, %v548
  %v559 = vpack.c.b16 %v551, %v549
  %v569 = vsel %vm22, %v524, 0
  %v572 = vsel %vm22, %v525, 0
  %v575 = vsel %vm22, %v526, 0
  %v578 = vsel %vm22, %v527, 0
  %580 = vmatprep.subr.bf16.mxu0 0
  %581 = vmatpush1.bf16.msra.mxu0 0
  %582 = vmatprep.subr.bf16.mxu0 0
  %583 = vmatpush1.bf16.msra.mxu0 0
  %584 = vmatprep.subr.bf16.mxu0 0
  %585 = vmatpush1.bf16.msra.mxu0 0
  %586 = vmatprep.subr.bf16.mxu0 0
  %587 = vmatpush1.bf16.msra.mxu0 0
  %588 = vmatprep.subr.bf16.mxu0 %v559
  %589 = vmatpush1.bf16.msra.mxu0 %v558
  %590 = vmatprep.subr.bf16.mxu0 %v557
  %591 = vmatpush1.bf16.msra.mxu0 %v556
  %592 = vmatprep.subr.bf16.mxu0 %v555
  %593 = vmatpush1.bf16.msra.mxu0 %v554
  %594 = vmatprep.subr.bf16.mxu0 %v553
  %595 = vmatpush1.bf16.msra.mxu0 %v552
  %596 = vmatprep.subr.bf16.mxu0 0
  %597 = vmatpush2.bf16.msra.mxu0 0
  %598 = vmatprep.subr.bf16.mxu0 0
  %599 = vmatpush2.bf16.msra.mxu0 0
  %600 = vmatprep.subr.bf16.mxu0 0
  %601 = vmatpush2.bf16.msra.mxu0 0
  %602 = vmatprep.subr.bf16.mxu0 0
  %603 = vmatpush2.bf16.msra.mxu0 0
  %604 = vmatprep.subr.bf16.mxu0 0
  %605 = vmatpush2.bf16.msra.mxu0 0
  %606 = vmatprep.subr.bf16.mxu0 0
  %607 = vmatpush2.bf16.msra.mxu0 0
  %608 = vmatprep.subr.bf16.mxu0 0
  %609 = vmatpush2.bf16.msra.mxu0 0
  %610 = vmatprep.subr.bf16.mxu0 0
  %611 = vmatpush2.bf16.msra.mxu0 0
  %612 = vmatprep.mubr.bf16.mxu0 0
  %613 = vmatmul.mubr.bf16.gmra.mxu0 %v569
  %v614 = vpop.f32.mrf.mxu0
  %v615 = vadd.f32 0.0, %v614
  %v616 = vpop.f32.mrf.mxu0
  %v617 = vadd.f32 0.0, %v616
  %v618 = vpop.f32.mrf.mxu0
  %v619 = vadd.f32 0.0, %v618
  %v620 = vpop.f32.mrf.mxu0
  %v621 = vadd.f32 0.0, %v620
  %622 = vmatprep.mubr.bf16.mxu0 0
  %623 = vmatmul.mubr.bf16.gmra.mxu0 %v572
  %v624 = vpop.f32.mrf.mxu0
  %v625 = vadd.f32 0.0, %v624
  %v626 = vpop.f32.mrf.mxu0
  %v627 = vadd.f32 0.0, %v626
  %v628 = vpop.f32.mrf.mxu0
  %v629 = vadd.f32 0.0, %v628
  %v630 = vpop.f32.mrf.mxu0
  %v631 = vadd.f32 0.0, %v630
  %632 = vmatprep.mubr.bf16.mxu0 0
  %633 = vmatmul.mubr.bf16.gmra.mxu0 %v575
  %v634 = vpop.f32.mrf.mxu0
  %v635 = vadd.f32 0.0, %v634
  %v636 = vpop.f32.mrf.mxu0
  %v637 = vadd.f32 0.0, %v636
  %v638 = vpop.f32.mrf.mxu0
  %v639 = vadd.f32 0.0, %v638
  %v640 = vpop.f32.mrf.mxu0
  %v641 = vadd.f32 0.0, %v640
  %642 = vmatprep.mubr.bf16.mxu0 0
  %643 = vmatmul.mubr.bf16.gmra.mxu0 %v578
  %v644 = vpop.f32.mrf.mxu0
  %v645 = vadd.f32 0.0, %v644
  %v646 = vpop.f32.mrf.mxu0
  %v647 = vadd.f32 0.0, %v646
  %v648 = vpop.f32.mrf.mxu0
  %v649 = vadd.f32 0.0, %v648
  %v650 = vpop.f32.mrf.mxu0
  %v651 = vadd.f32 0.0, %v650
  %652 = vdwg.mxu0
  %v653 = vlaneseq
  %v654 = vshrl.u32 %v653, 7
  %v655 = vsub.s32 0, %v654
  %v656 = vrot.slane %v319, %v655
  %v657 = vadd.f32 %v615, %v656
  %v658 = vadd.f32 %v619, %v656
  %v659 = vadd.f32 %v625, %v656
  %v660 = vadd.f32 %v629, %v656
  %v661 = vadd.f32 %v635, %v656
  %v662 = vadd.f32 %v639, %v656
  %v663 = vadd.f32 %v645, %v656
  %v664 = vadd.f32 %v649, %v656
  %v665 = vpack.c.bf16 %v658, %v657
  %v666 = vpack.c.bf16 %v660, %v659
  %v667 = vpack.c.bf16 %v662, %v661
  %v668 = vpack.c.bf16 %v664, %v663
  %v669 = vlaneseq
  %v670 = vshrl.u32 %v669, 7
  %v671 = vsub.s32 0, %v670
  %v672 = vrot.slane %v320, %v671
  %674 = vrot.lane.b32.xlu0 %v672, 64
  %v675 = vpop.permute.xlu0 %674
  %v677 = vadd.f32 %v615, %v675
  %v678 = vadd.f32 %v619, %v675
  %v679 = vadd.f32 %v625, %v675
  %v680 = vadd.f32 %v629, %v675
  %v681 = vadd.f32 %v635, %v675
  %v682 = vadd.f32 %v639, %v675
  %v683 = vadd.f32 %v645, %v675
  %v684 = vadd.f32 %v649, %v675
  %v685 = vpack.c.bf16 %v678, %v677
  %v686 = vpack.c.bf16 %v680, %v679
  %v687 = vpack.c.bf16 %v682, %v681
  %v688 = vpack.c.bf16 %v684, %v683
  %v689 = vlaneseq
  %v690 = vshrl.u32 %v689, 7
  %v691 = vsub.s32 0, %v690
  %v692 = vrot.slane %v321, %v691
  %v693 = vadd.f32 %v617, %v692
  %v694 = vadd.f32 %v621, %v692
  %v695 = vadd.f32 %v627, %v692
  %v696 = vadd.f32 %v631, %v692
  %v697 = vadd.f32 %v637, %v692
  %v698 = vadd.f32 %v641, %v692
  %v699 = vadd.f32 %v647, %v692
  %v700 = vadd.f32 %v651, %v692
  %v701 = vpack.c.bf16 %v694, %v693
  %v702 = vpack.c.bf16 %v696, %v695
  %v703 = vpack.c.bf16 %v698, %v697
  %v704 = vpack.c.bf16 %v700, %v699
  %709 = vrot.lane.b32.xlu0 %v685, 64
  %v710 = vpop.permute.xlu0 %709
  %711 = vrot.lane.b32.xlu0 %v686, 64
  %v712 = vpop.permute.xlu0 %711
  %713 = vrot.lane.b32.xlu0 %v687, 64
  %v714 = vpop.permute.xlu0 %713
  %715 = vrot.lane.b32.xlu0 %v688, 64
  %v716 = vpop.permute.xlu0 %715
  %v718 = vsel %vm92, %v665, 0
  %v721 = vsel %vm92, %v666, 0
  %v724 = vsel %vm92, %v667, 0
  %v727 = vsel %vm92, %v668, 0
  %v730 = vsel %vm92, %v710, 0
  %v733 = vsel %vm92, %v712, 0
  %v736 = vsel %vm92, %v714, 0
  %v739 = vsel %vm92, %v716, 0
  %741 = vmatprep.subr.bf16.mxu0 0
  %742 = vmatpush1.bf16.xpose.msra.mxu0 0
  %743 = vmatprep.subr.bf16.mxu0 0
  %744 = vmatpush1.bf16.xpose.msra.mxu0 0
  %745 = vmatprep.subr.bf16.mxu0 0
  %746 = vmatpush1.bf16.xpose.msra.mxu0 0
  %747 = vmatprep.subr.bf16.mxu0 0
  %748 = vmatpush1.bf16.xpose.msra.mxu0 0
  %749 = vmatprep.subr.bf16.mxu0 0
  %750 = vmatpush1.bf16.xpose.msra.mxu0 %v739
  %751 = vmatprep.subr.bf16.mxu0 0
  %752 = vmatpush1.bf16.xpose.msra.mxu0 %v736
  %753 = vmatprep.subr.bf16.mxu0 0
  %754 = vmatpush1.bf16.xpose.msra.mxu0 %v733
  %755 = vmatprep.subr.bf16.mxu0 0
  %756 = vmatpush1.bf16.xpose.msra.mxu0 %v730
  %757 = vmatprep.subr.bf16.mxu0 0
  %758 = vmatpush2.bf16.xpose.msra.mxu0 0
  %759 = vmatprep.subr.bf16.mxu0 0
  %760 = vmatpush2.bf16.xpose.msra.mxu0 0
  %761 = vmatprep.subr.bf16.mxu0 0
  %762 = vmatpush2.bf16.xpose.msra.mxu0 0
  %763 = vmatprep.subr.bf16.mxu0 0
  %764 = vmatpush2.bf16.xpose.msra.mxu0 0
  %765 = vmatprep.subr.bf16.mxu0 0
  %766 = vmatpush2.bf16.xpose.msra.mxu0 0
  %767 = vmatprep.subr.bf16.mxu0 0
  %768 = vmatpush2.bf16.xpose.msra.mxu0 0
  %769 = vmatprep.subr.bf16.mxu0 0
  %770 = vmatpush2.bf16.xpose.msra.mxu0 0
  %771 = vmatprep.subr.bf16.mxu0 0
  %772 = vmatpush2.bf16.xpose.msra.mxu0 0
  %773 = vmatprep.mubr.bf16.mxu0 0
  %774 = vmatmul.mubr.bf16.gmra.mxu0 %v718
  %v775 = vpop.f32.mrf.mxu0
  %v776 = vadd.f32 0.0, %v775
  %v777 = vpop.f32.mrf.mxu0
  %v778 = vpop.f32.mrf.mxu0
  %v779 = vadd.f32 0.0, %v778
  %v780 = vpop.f32.mrf.mxu0
  %781 = vmatprep.mubr.bf16.mxu0 0
  %782 = vmatmul.mubr.bf16.gmra.mxu0 %v721
  %v783 = vpop.f32.mrf.mxu0
  %v784 = vadd.f32 0.0, %v783
  %v785 = vpop.f32.mrf.mxu0
  %v786 = vpop.f32.mrf.mxu0
  %v787 = vadd.f32 0.0, %v786
  %v788 = vpop.f32.mrf.mxu0
  %789 = vmatprep.mubr.bf16.mxu0 0
  %790 = vmatmul.mubr.bf16.gmra.mxu0 %v724
  %v791 = vpop.f32.mrf.mxu0
  %v792 = vadd.f32 0.0, %v791
  %v793 = vpop.f32.mrf.mxu0
  %v794 = vpop.f32.mrf.mxu0
  %v795 = vadd.f32 0.0, %v794
  %v796 = vpop.f32.mrf.mxu0
  %797 = vmatprep.mubr.bf16.mxu0 0
  %798 = vmatmul.mubr.bf16.gmra.mxu0 %v727
  %v799 = vpop.f32.mrf.mxu0
  %v800 = vadd.f32 0.0, %v799
  %v801 = vpop.f32.mrf.mxu0
  %v802 = vpop.f32.mrf.mxu0
  %v803 = vadd.f32 0.0, %v802
  %v804 = vpop.f32.mrf.mxu0
  %805 = vdwg.mxu0
  %v806 = vmul.f32 %v776, 0.25
  %v807 = vmul.f32 %v779, 0.25
  %v808 = vmul.f32 %v784, 0.25
  %v809 = vmul.f32 %v787, 0.25
  %v810 = vmul.f32 %v792, 0.25
  %v811 = vmul.f32 %v795, 0.25
  %v812 = vmul.f32 %v800, 0.25
  %v813 = vmul.f32 %v803, 0.25
  %v814 = vadd.f32 %v806, %v309
  %v815 = vadd.f32 %v807, %v310
  %v816 = vadd.f32 %v808, %v311
  %v817 = vadd.f32 %v809, %v312
  %v818 = vadd.f32 %v810, %v313
  %v819 = vadd.f32 %v811, %v314
  %v820 = vadd.f32 %v812, %v315
  %v821 = vadd.f32 %v813, %v316
  %v822 = vsel %vm22, %v814, -inf
  %823 = vmax.xlane.f32.xlu0 %v822
  %v824 = vpop.xlane.xlu0 %823
  %v825 = vsel %vm22, %v815, -inf
  %826 = vmax.xlane.f32.xlu0 %v825
  %v827 = vpop.xlane.xlu0 %826
  %v828 = vsel %vm22, %v816, -inf
  %829 = vmax.xlane.f32.xlu0 %v828
  %v830 = vpop.xlane.xlu0 %829
  %v831 = vsel %vm22, %v817, -inf
  %832 = vmax.xlane.f32.xlu0 %v831
  %v833 = vpop.xlane.xlu0 %832
  %v834 = vsel %vm22, %v818, -inf
  %835 = vmax.xlane.f32.xlu0 %v834
  %v836 = vpop.xlane.xlu0 %835
  %v837 = vsel %vm22, %v819, -inf
  %838 = vmax.xlane.f32.xlu0 %v837
  %v839 = vpop.xlane.xlu0 %838
  %v840 = vsel %vm22, %v820, -inf
  %841 = vmax.xlane.f32.xlu0 %v840
  %v842 = vpop.xlane.xlu0 %841
  %v843 = vsel %vm22, %v821, -inf
  %844 = vmax.xlane.f32.xlu0 %v843
  %v845 = vpop.xlane.xlu0 %844
  %v846 = vsub.f32 %v814, %v824
  %v847 = vsub.f32 %v815, %v827
  %v848 = vsub.f32 %v816, %v830
  %v849 = vsub.f32 %v817, %v833
  %v850 = vsub.f32 %v818, %v836
  %v851 = vsub.f32 %v819, %v839
  %v852 = vsub.f32 %v820, %v842
  %v853 = vsub.f32 %v821, %v845
  %v854 = vmul.f32 %v846, 1.442695
  %v855 = vpow.pop %v854
  %v856 = vmul.f32 %v847, 1.442695
  %v857 = vpow.pop %v856
  %v858 = vmul.f32 %v848, 1.442695
  %v859 = vpow.pop %v858
  %v860 = vmul.f32 %v849, 1.442695
  %v861 = vpow.pop %v860
  %v862 = vmul.f32 %v850, 1.442695
  %v863 = vpow.pop %v862
  %v864 = vmul.f32 %v851, 1.442695
  %v865 = vpow.pop %v864
  %v866 = vmul.f32 %v852, 1.442695
  %v867 = vpow.pop %v866
  %v868 = vmul.f32 %v853, 1.442695
  %v869 = vpow.pop %v868
  %v870 = vsel %vm22, %v855, 0.0
  %871 = vadd.xlane.f32.xlu0 %v870
  %v872 = vpop.xlane.xlu0 %871
  %v873 = vsel %vm22, %v857, 0.0
  %874 = vadd.xlane.f32.xlu0 %v873
  %v875 = vpop.xlane.xlu0 %874
  %v876 = vsel %vm22, %v859, 0.0
  %877 = vadd.xlane.f32.xlu0 %v876
  %v878 = vpop.xlane.xlu0 %877
  %v879 = vsel %vm22, %v861, 0.0
  %880 = vadd.xlane.f32.xlu0 %v879
  %v881 = vpop.xlane.xlu0 %880
  %v882 = vsel %vm22, %v863, 0.0
  %883 = vadd.xlane.f32.xlu0 %v882
  %v884 = vpop.xlane.xlu0 %883
  %v885 = vsel %vm22, %v865, 0.0
  %886 = vadd.xlane.f32.xlu0 %v885
  %v887 = vpop.xlane.xlu0 %886
  %v888 = vsel %vm22, %v867, 0.0
  %889 = vadd.xlane.f32.xlu0 %v888
  %v890 = vpop.xlane.xlu0 %889
  %v891 = vsel %vm22, %v869, 0.0
  %892 = vadd.xlane.f32.xlu0 %v891
  %v893 = vpop.xlane.xlu0 %892
  %v894 = vrcp.pop %v872
  %v895 = vrcp.pop %v875
  %v896 = vrcp.pop %v878
  %v897 = vrcp.pop %v881
  %v898 = vrcp.pop %v884
  %v899 = vrcp.pop %v887
  %v900 = vrcp.pop %v890
  %v901 = vrcp.pop %v893
  %v902 = vmul.f32 %v855, %v894
  %v903 = vmul.f32 %v857, %v895
  %v904 = vmul.f32 %v859, %v896
  %v905 = vmul.f32 %v861, %v897
  %v906 = vmul.f32 %v863, %v898
  %v907 = vmul.f32 %v865, %v899
  %v908 = vmul.f32 %v867, %v900
  %v909 = vmul.f32 %v869, %v901
  %v910 = vpack.c.bf16 %v903, %v902
  %v911 = vpack.c.bf16 %v905, %v904
  %v912 = vpack.c.bf16 %v907, %v906
  %v913 = vpack.c.bf16 %v909, %v908
  %v915 = vsel %vm22, %v910, 0
  %v918 = vsel %vm22, %v911, 0
  %v921 = vsel %vm22, %v912, 0
  %v924 = vsel %vm22, %v913, 0
  %926 = vmatprep.subr.bf16.mxu0 0
  %927 = vmatpush1.bf16.msra.mxu0 0
  %928 = vmatprep.subr.bf16.mxu0 0
  %929 = vmatpush1.bf16.msra.mxu0 0
  %930 = vmatprep.subr.bf16.mxu0 0
  %931 = vmatpush1.bf16.msra.mxu0 0
  %932 = vmatprep.subr.bf16.mxu0 0
  %933 = vmatpush1.bf16.msra.mxu0 0
  %934 = vmatprep.subr.bf16.mxu0 0
  %935 = vmatpush1.bf16.msra.mxu0 %v704
  %936 = vmatprep.subr.bf16.mxu0 0
  %937 = vmatpush1.bf16.msra.mxu0 %v703
  %938 = vmatprep.subr.bf16.mxu0 0
  %939 = vmatpush1.bf16.msra.mxu0 %v702
  %940 = vmatprep.subr.bf16.mxu0 0
  %941 = vmatpush1.bf16.msra.mxu0 %v701
  %942 = vmatprep.subr.bf16.mxu0 0
  %943 = vmatpush2.bf16.msra.mxu0 0
  %944 = vmatprep.subr.bf16.mxu0 0
  %945 = vmatpush2.bf16.msra.mxu0 0
  %946 = vmatprep.subr.bf16.mxu0 0
  %947 = vmatpush2.bf16.msra.mxu0 0
  %948 = vmatprep.subr.bf16.mxu0 0
  %949 = vmatpush2.bf16.msra.mxu0 0
  %950 = vmatprep.subr.bf16.mxu0 0
  %951 = vmatpush2.bf16.msra.mxu0 0
  %952 = vmatprep.subr.bf16.mxu0 0
  %953 = vmatpush2.bf16.msra.mxu0 0
  %954 = vmatprep.subr.bf16.mxu0 0
  %955 = vmatpush2.bf16.msra.mxu0 0
  %956 = vmatprep.subr.bf16.mxu0 0
  %957 = vmatpush2.bf16.msra.mxu0 0
  %958 = vmatprep.mubr.bf16.mxu0 0
  %959 = vmatmul.mubr.bf16.gmra.mxu0 %v915
  %v960 = vpop.f32.mrf.mxu0
  %v961 = vadd.f32 0.0, %v960
  %v962 = vpop.f32.mrf.mxu0
  %v963 = vpop.f32.mrf.mxu0
  %v964 = vadd.f32 0.0, %v963
  %v965 = vpop.f32.mrf.mxu0
  %966 = vmatprep.mubr.bf16.mxu0 0
  %967 = vmatmul.mubr.bf16.gmra.mxu0 %v918
  %v968 = vpop.f32.mrf.mxu0
  %v969 = vadd.f32 0.0, %v968
  %v970 = vpop.f32.mrf.mxu0
  %v971 = vpop.f32.mrf.mxu0
  %v972 = vadd.f32 0.0, %v971
  %v973 = vpop.f32.mrf.mxu0
  %974 = vmatprep.mubr.bf16.mxu0 0
  %975 = vmatmul.mubr.bf16.gmra.mxu0 %v921
  %v976 = vpop.f32.mrf.mxu0
  %v977 = vadd.f32 0.0, %v976
  %v978 = vpop.f32.mrf.mxu0
  %v979 = vpop.f32.mrf.mxu0
  %v980 = vadd.f32 0.0, %v979
  %v981 = vpop.f32.mrf.mxu0
  %982 = vmatprep.mubr.bf16.mxu0 0
  %983 = vmatmul.mubr.bf16.gmra.mxu0 %v924
  %v984 = vpop.f32.mrf.mxu0
  %v985 = vadd.f32 0.0, %v984
  %v986 = vpop.f32.mrf.mxu0
  %v987 = vpop.f32.mrf.mxu0
  %v988 = vadd.f32 0.0, %v987
  %v989 = vpop.f32.mrf.mxu0
  %990 = vdwg.mxu0
  %995 = vrot.lane.b32.xlu0 %v665, 112
  %v996 = vpop.permute.xlu0 %995
  %997 = vrot.lane.b32.xlu0 %v666, 112
  %v998 = vpop.permute.xlu0 %997
  %999 = vrot.lane.b32.xlu0 %v667, 112
  %v1000 = vpop.permute.xlu0 %999
  %1001 = vrot.lane.b32.xlu0 %v668, 112
  %v1002 = vpop.permute.xlu0 %1001
  %1003 = vrot.lane.b32.xlu0 %v685, 48
  %v1004 = vpop.permute.xlu0 %1003
  %1005 = vrot.lane.b32.xlu0 %v686, 48
  %v1006 = vpop.permute.xlu0 %1005
  %1007 = vrot.lane.b32.xlu0 %v687, 48
  %v1008 = vpop.permute.xlu0 %1007
  %1009 = vrot.lane.b32.xlu0 %v688, 48
  %v1010 = vpop.permute.xlu0 %1009
  %v1012 = vsel %vm92, %v996, 0
  %v1015 = vsel %vm92, %v998, 0
  %v1018 = vsel %vm92, %v1000, 0
  %v1021 = vsel %vm92, %v1002, 0
  %v1024 = vsel %vm92, %v1004, 0
  %v1027 = vsel %vm92, %v1006, 0
  %v1030 = vsel %vm92, %v1008, 0
  %v1033 = vsel %vm92, %v1010, 0
  %1035 = vmatprep.subr.bf16.mxu0 0
  %1036 = vmatpush1.bf16.xpose.msra.mxu0 0
  %1037 = vmatprep.subr.bf16.mxu0 0
  %1038 = vmatpush1.bf16.xpose.msra.mxu0 0
  %1039 = vmatprep.subr.bf16.mxu0 0
  %1040 = vmatpush1.bf16.xpose.msra.mxu0 0
  %1041 = vmatprep.subr.bf16.mxu0 0
  %1042 = vmatpush1.bf16.xpose.msra.mxu0 0
  %1043 = vmatprep.subr.bf16.mxu0 0
  %1044 = vmatpush1.bf16.xpose.msra.mxu0 %v1033
  %1045 = vmatprep.subr.bf16.mxu0 0
  %1046 = vmatpush1.bf16.xpose.msra.mxu0 %v1030
  %1047 = vmatprep.subr.bf16.mxu0 0
  %1048 = vmatpush1.bf16.xpose.msra.mxu0 %v1027
  %1049 = vmatprep.subr.bf16.mxu0 0
  %1050 = vmatpush1.bf16.xpose.msra.mxu0 %v1024
  %1051 = vmatprep.subr.bf16.mxu0 0
  %1052 = vmatpush2.bf16.xpose.msra.mxu0 0
  %1053 = vmatprep.subr.bf16.mxu0 0
  %1054 = vmatpush2.bf16.xpose.msra.mxu0 0
  %1055 = vmatprep.subr.bf16.mxu0 0
  %1056 = vmatpush2.bf16.xpose.msra.mxu0 0
  %1057 = vmatprep.subr.bf16.mxu0 0
  %1058 = vmatpush2.bf16.xpose.msra.mxu0 0
  %1059 = vmatprep.subr.bf16.mxu0 0
  %1060 = vmatpush2.bf16.xpose.msra.mxu0 0
  %1061 = vmatprep.subr.bf16.mxu0 0
  %1062 = vmatpush2.bf16.xpose.msra.mxu0 0
  %1063 = vmatprep.subr.bf16.mxu0 0
  %1064 = vmatpush2.bf16.xpose.msra.mxu0 0
  %1065 = vmatprep.subr.bf16.mxu0 0
  %1066 = vmatpush2.bf16.xpose.msra.mxu0 0
  %1067 = vmatprep.mubr.bf16.mxu0 0
  %1068 = vmatmul.mubr.bf16.gmra.mxu0 %v1012
  %v1069 = vpop.f32.mrf.mxu0
  %v1070 = vadd.f32 0.0, %v1069
  %v1071 = vpop.f32.mrf.mxu0
  %v1072 = vpop.f32.mrf.mxu0
  %v1073 = vadd.f32 0.0, %v1072
  %v1074 = vpop.f32.mrf.mxu0
  %1075 = vmatprep.mubr.bf16.mxu0 0
  %1076 = vmatmul.mubr.bf16.gmra.mxu0 %v1015
  %v1077 = vpop.f32.mrf.mxu0
  %v1078 = vadd.f32 0.0, %v1077
  %v1079 = vpop.f32.mrf.mxu0
  %v1080 = vpop.f32.mrf.mxu0
  %v1081 = vadd.f32 0.0, %v1080
  %v1082 = vpop.f32.mrf.mxu0
  %1083 = vmatprep.mubr.bf16.mxu0 0
  %1084 = vmatmul.mubr.bf16.gmra.mxu0 %v1018
  %v1085 = vpop.f32.mrf.mxu0
  %v1086 = vadd.f32 0.0, %v1085
  %v1087 = vpop.f32.mrf.mxu0
  %v1088 = vpop.f32.mrf.mxu0
  %v1089 = vadd.f32 0.0, %v1088
  %v1090 = vpop.f32.mrf.mxu0
  %1091 = vmatprep.mubr.bf16.mxu0 0
  %1092 = vmatmul.mubr.bf16.gmra.mxu0 %v1021
  %v1093 = vpop.f32.mrf.mxu0
  %v1094 = vadd.f32 0.0, %v1093
  %v1095 = vpop.f32.mrf.mxu0
  %v1096 = vpop.f32.mrf.mxu0
  %v1097 = vadd.f32 0.0, %v1096
  %v1098 = vpop.f32.mrf.mxu0
  %1099 = vdwg.mxu0
  %v1100 = vmul.f32 %v1070, 0.25
  %v1101 = vmul.f32 %v1073, 0.25
  %v1102 = vmul.f32 %v1078, 0.25
  %v1103 = vmul.f32 %v1081, 0.25
  %v1104 = vmul.f32 %v1086, 0.25
  %v1105 = vmul.f32 %v1089, 0.25
  %v1106 = vmul.f32 %v1094, 0.25
  %v1107 = vmul.f32 %v1097, 0.25
  %v1108 = vadd.f32 %v1100, %v309
  %v1109 = vadd.f32 %v1101, %v310
  %v1110 = vadd.f32 %v1102, %v311
  %v1111 = vadd.f32 %v1103, %v312
  %v1112 = vadd.f32 %v1104, %v313
  %v1113 = vadd.f32 %v1105, %v314
  %v1114 = vadd.f32 %v1106, %v315
  %v1115 = vadd.f32 %v1107, %v316
  %v1116 = vsel %vm22, %v1108, -inf
  %1117 = vmax.xlane.f32.xlu0 %v1116
  %v1118 = vpop.xlane.xlu0 %1117
  %v1119 = vsel %vm22, %v1109, -inf
  %1120 = vmax.xlane.f32.xlu0 %v1119
  %v1121 = vpop.xlane.xlu0 %1120
  %v1122 = vsel %vm22, %v1110, -inf
  %1123 = vmax.xlane.f32.xlu0 %v1122
  %v1124 = vpop.xlane.xlu0 %1123
  %v1125 = vsel %vm22, %v1111, -inf
  %1126 = vmax.xlane.f32.xlu0 %v1125
  %v1127 = vpop.xlane.xlu0 %1126
  %v1128 = vsel %vm22, %v1112, -inf
  %1129 = vmax.xlane.f32.xlu0 %v1128
  %v1130 = vpop.xlane.xlu0 %1129
  %v1131 = vsel %vm22, %v1113, -inf
  %1132 = vmax.xlane.f32.xlu0 %v1131
  %v1133 = vpop.xlane.xlu0 %1132
  %v1134 = vsel %vm22, %v1114, -inf
  %1135 = vmax.xlane.f32.xlu0 %v1134
  %v1136 = vpop.xlane.xlu0 %1135
  %v1137 = vsel %vm22, %v1115, -inf
  %1138 = vmax.xlane.f32.xlu0 %v1137
  %v1139 = vpop.xlane.xlu0 %1138
  %v1140 = vsub.f32 %v1108, %v1118
  %v1141 = vsub.f32 %v1109, %v1121
  %v1142 = vsub.f32 %v1110, %v1124
  %v1143 = vsub.f32 %v1111, %v1127
  %v1144 = vsub.f32 %v1112, %v1130
  %v1145 = vsub.f32 %v1113, %v1133
  %v1146 = vsub.f32 %v1114, %v1136
  %v1147 = vsub.f32 %v1115, %v1139
  %v1148 = vmul.f32 %v1140, 1.442695
  %v1149 = vpow.pop %v1148
  %v1150 = vmul.f32 %v1141, 1.442695
  %v1151 = vpow.pop %v1150
  %v1152 = vmul.f32 %v1142, 1.442695
  %v1153 = vpow.pop %v1152
  %v1154 = vmul.f32 %v1143, 1.442695
  %v1155 = vpow.pop %v1154
  %v1156 = vmul.f32 %v1144, 1.442695
  %v1157 = vpow.pop %v1156
  %v1158 = vmul.f32 %v1145, 1.442695
  %v1159 = vpow.pop %v1158
  %v1160 = vmul.f32 %v1146, 1.442695
  %v1161 = vpow.pop %v1160
  %v1162 = vmul.f32 %v1147, 1.442695
  %v1163 = vpow.pop %v1162
  %v1164 = vsel %vm22, %v1149, 0.0
  %1165 = vadd.xlane.f32.xlu0 %v1164
  %v1166 = vpop.xlane.xlu0 %1165
  %v1167 = vsel %vm22, %v1151, 0.0
  %1168 = vadd.xlane.f32.xlu0 %v1167
  %v1169 = vpop.xlane.xlu0 %1168
  %v1170 = vsel %vm22, %v1153, 0.0
  %1171 = vadd.xlane.f32.xlu0 %v1170
  %v1172 = vpop.xlane.xlu0 %1171
  %v1173 = vsel %vm22, %v1155, 0.0
  %1174 = vadd.xlane.f32.xlu0 %v1173
  %v1175 = vpop.xlane.xlu0 %1174
  %v1176 = vsel %vm22, %v1157, 0.0
  %1177 = vadd.xlane.f32.xlu0 %v1176
  %v1178 = vpop.xlane.xlu0 %1177
  %v1179 = vsel %vm22, %v1159, 0.0
  %1180 = vadd.xlane.f32.xlu0 %v1179
  %v1181 = vpop.xlane.xlu0 %1180
  %v1182 = vsel %vm22, %v1161, 0.0
  %1183 = vadd.xlane.f32.xlu0 %v1182
  %v1184 = vpop.xlane.xlu0 %1183
  %v1185 = vsel %vm22, %v1163, 0.0
  %1186 = vadd.xlane.f32.xlu0 %v1185
  %v1187 = vpop.xlane.xlu0 %1186
  %v1188 = vrcp.pop %v1166
  %v1189 = vrcp.pop %v1169
  %v1190 = vrcp.pop %v1172
  %v1191 = vrcp.pop %v1175
  %v1192 = vrcp.pop %v1178
  %v1193 = vrcp.pop %v1181
  %v1194 = vrcp.pop %v1184
  %v1195 = vrcp.pop %v1187
  %v1196 = vmul.f32 %v1149, %v1188
  %v1197 = vmul.f32 %v1151, %v1189
  %v1198 = vmul.f32 %v1153, %v1190
  %v1199 = vmul.f32 %v1155, %v1191
  %v1200 = vmul.f32 %v1157, %v1192
  %v1201 = vmul.f32 %v1159, %v1193
  %v1202 = vmul.f32 %v1161, %v1194
  %v1203 = vmul.f32 %v1163, %v1195
  %v1204 = vpack.c.bf16 %v1197, %v1196
  %v1205 = vpack.c.bf16 %v1199, %v1198
  %v1206 = vpack.c.bf16 %v1201, %v1200
  %v1207 = vpack.c.bf16 %v1203, %v1202
  %1212 = vrot.lane.b32.xlu0 %v701, 112
  %v1213 = vpop.permute.xlu0 %1212
  %1214 = vrot.lane.b32.xlu0 %v702, 112
  %v1215 = vpop.permute.xlu0 %1214
  %1216 = vrot.lane.b32.xlu0 %v703, 112
  %v1217 = vpop.permute.xlu0 %1216
  %1218 = vrot.lane.b32.xlu0 %v704, 112
  %v1219 = vpop.permute.xlu0 %1218
  %v1225 = vsel %vm22, %v1204, 0
  %v1228 = vsel %vm22, %v1205, 0
  %v1231 = vsel %vm22, %v1206, 0
  %v1234 = vsel %vm22, %v1207, 0
  %1236 = vmatprep.subr.bf16.mxu0 0
  %1237 = vmatpush1.bf16.msra.mxu0 0
  %1238 = vmatprep.subr.bf16.mxu0 0
  %1239 = vmatpush1.bf16.msra.mxu0 0
  %1240 = vmatprep.subr.bf16.mxu0 0
  %1241 = vmatpush1.bf16.msra.mxu0 0
  %1242 = vmatprep.subr.bf16.mxu0 0
  %1243 = vmatpush1.bf16.msra.mxu0 0
  %1244 = vmatprep.subr.bf16.mxu0 0
  %1245 = vmatpush1.bf16.msra.mxu0 %v1219
  %1246 = vmatprep.subr.bf16.mxu0 0
  %1247 = vmatpush1.bf16.msra.mxu0 %v1217
  %1248 = vmatprep.subr.bf16.mxu0 0
  %1249 = vmatpush1.bf16.msra.mxu0 %v1215
  %1250 = vmatprep.subr.bf16.mxu0 0
  %1251 = vmatpush1.bf16.msra.mxu0 %v1213
  %1252 = vmatprep.subr.bf16.mxu0 0
  %1253 = vmatpush2.bf16.msra.mxu0 0
  %1254 = vmatprep.subr.bf16.mxu0 0
  %1255 = vmatpush2.bf16.msra.mxu0 0
  %1256 = vmatprep.subr.bf16.mxu0 0
  %1257 = vmatpush2.bf16.msra.mxu0 0
  %1258 = vmatprep.subr.bf16.mxu0 0
  %1259 = vmatpush2.bf16.msra.mxu0 0
  %1260 = vmatprep.subr.bf16.mxu0 0
  %1261 = vmatpush2.bf16.msra.mxu0 0
  %1262 = vmatprep.subr.bf16.mxu0 0
  %1263 = vmatpush2.bf16.msra.mxu0 0
  %1264 = vmatprep.subr.bf16.mxu0 0
  %1265 = vmatpush2.bf16.msra.mxu0 0
  %1266 = vmatprep.subr.bf16.mxu0 0
  %1267 = vmatpush2.bf16.msra.mxu0 0
  %1268 = vmatprep.mubr.bf16.mxu0 0
  %1269 = vmatmul.mubr.bf16.gmra.mxu0 %v1225
  %v1270 = vpop.f32.mrf.mxu0
  %v1271 = vadd.f32 0.0, %v1270
  %v1272 = vpop.f32.mrf.mxu0
  %v1273 = vpop.f32.mrf.mxu0
  %v1274 = vadd.f32 0.0, %v1273
  %v1275 = vpop.f32.mrf.mxu0
  %1276 = vmatprep.mubr.bf16.mxu0 0
  %1277 = vmatmul.mubr.bf16.gmra.mxu0 %v1228
  %v1278 = vpop.f32.mrf.mxu0
  %v1279 = vadd.f32 0.0, %v1278
  %v1280 = vpop.f32.mrf.mxu0
  %v1281 = vpop.f32.mrf.mxu0
  %v1282 = vadd.f32 0.0, %v1281
  %v1283 = vpop.f32.mrf.mxu0
  %1284 = vmatprep.mubr.bf16.mxu0 0
  %1285 = vmatmul.mubr.bf16.gmra.mxu0 %v1231
  %v1286 = vpop.f32.mrf.mxu0
  %v1287 = vadd.f32 0.0, %v1286
  %v1288 = vpop.f32.mrf.mxu0
  %v1289 = vpop.f32.mrf.mxu0
  %v1290 = vadd.f32 0.0, %v1289
  %v1291 = vpop.f32.mrf.mxu0
  %1292 = vmatprep.mubr.bf16.mxu0 0
  %1293 = vmatmul.mubr.bf16.gmra.mxu0 %v1234
  %v1294 = vpop.f32.mrf.mxu0
  %v1295 = vadd.f32 0.0, %v1294
  %v1296 = vpop.f32.mrf.mxu0
  %v1297 = vpop.f32.mrf.mxu0
  %v1298 = vadd.f32 0.0, %v1297
  %v1299 = vpop.f32.mrf.mxu0
  %1300 = vdwg.mxu0
  %1301 = vrot.lane.b32.xlu0 %v665, 96
  %v1302 = vpop.permute.xlu0 %1301
  %1303 = vrot.lane.b32.xlu0 %v666, 96
  %v1304 = vpop.permute.xlu0 %1303
  %1305 = vrot.lane.b32.xlu0 %v667, 96
  %v1306 = vpop.permute.xlu0 %1305
  %1307 = vrot.lane.b32.xlu0 %v668, 96
  %v1308 = vpop.permute.xlu0 %1307
  %1309 = vrot.lane.b32.xlu0 %v685, 32
  %v1310 = vpop.permute.xlu0 %1309
  %1311 = vrot.lane.b32.xlu0 %v686, 32
  %v1312 = vpop.permute.xlu0 %1311
  %1313 = vrot.lane.b32.xlu0 %v687, 32
  %v1314 = vpop.permute.xlu0 %1313
  %1315 = vrot.lane.b32.xlu0 %v688, 32
  %v1316 = vpop.permute.xlu0 %1315
  %v1318 = vsel %vm92, %v1302, 0
  %v1321 = vsel %vm92, %v1304, 0
  %v1324 = vsel %vm92, %v1306, 0
  %v1327 = vsel %vm92, %v1308, 0
  %v1330 = vsel %vm92, %v1310, 0
  %v1333 = vsel %vm92, %v1312, 0
  %v1336 = vsel %vm92, %v1314, 0
  %v1339 = vsel %vm92, %v1316, 0
  %1341 = vmatprep.subr.bf16.mxu0 0
  %1342 = vmatpush1.bf16.xpose.msra.mxu0 0
  %1343 = vmatprep.subr.bf16.mxu0 0
  %1344 = vmatpush1.bf16.xpose.msra.mxu0 0
  %1345 = vmatprep.subr.bf16.mxu0 0
  %1346 = vmatpush1.bf16.xpose.msra.mxu0 0
  %1347 = vmatprep.subr.bf16.mxu0 0
  %1348 = vmatpush1.bf16.xpose.msra.mxu0 0
  %1349 = vmatprep.subr.bf16.mxu0 0
  %1350 = vmatpush1.bf16.xpose.msra.mxu0 %v1339
  %1351 = vmatprep.subr.bf16.mxu0 0
  %1352 = vmatpush1.bf16.xpose.msra.mxu0 %v1336
  %1353 = vmatprep.subr.bf16.mxu0 0
  %1354 = vmatpush1.bf16.xpose.msra.mxu0 %v1333
  %1355 = vmatprep.subr.bf16.mxu0 0
  %1356 = vmatpush1.bf16.xpose.msra.mxu0 %v1330
  %1357 = vmatprep.subr.bf16.mxu0 0
  %1358 = vmatpush2.bf16.xpose.msra.mxu0 0
  %1359 = vmatprep.subr.bf16.mxu0 0
  %1360 = vmatpush2.bf16.xpose.msra.mxu0 0
  %1361 = vmatprep.subr.bf16.mxu0 0
  %1362 = vmatpush2.bf16.xpose.msra.mxu0 0
  %1363 = vmatprep.subr.bf16.mxu0 0
  %1364 = vmatpush2.bf16.xpose.msra.mxu0 0
  %1365 = vmatprep.subr.bf16.mxu0 0
  %1366 = vmatpush2.bf16.xpose.msra.mxu0 0
  %1367 = vmatprep.subr.bf16.mxu0 0
  %1368 = vmatpush2.bf16.xpose.msra.mxu0 0
  %1369 = vmatprep.subr.bf16.mxu0 0
  %1370 = vmatpush2.bf16.xpose.msra.mxu0 0
  %1371 = vmatprep.subr.bf16.mxu0 0
  %1372 = vmatpush2.bf16.xpose.msra.mxu0 0
  %1373 = vmatprep.mubr.bf16.mxu0 0
  %1374 = vmatmul.mubr.bf16.gmra.mxu0 %v1318
  %v1375 = vpop.f32.mrf.mxu0
  %v1376 = vadd.f32 0.0, %v1375
  %v1377 = vpop.f32.mrf.mxu0
  %v1378 = vpop.f32.mrf.mxu0
  %v1379 = vadd.f32 0.0, %v1378
  %v1380 = vpop.f32.mrf.mxu0
  %1381 = vmatprep.mubr.bf16.mxu0 0
  %1382 = vmatmul.mubr.bf16.gmra.mxu0 %v1321
  %v1383 = vpop.f32.mrf.mxu0
  %v1384 = vadd.f32 0.0, %v1383
  %v1385 = vpop.f32.mrf.mxu0
  %v1386 = vpop.f32.mrf.mxu0
  %v1387 = vadd.f32 0.0, %v1386
  %v1388 = vpop.f32.mrf.mxu0
  %1389 = vmatprep.mubr.bf16.mxu0 0
  %1390 = vmatmul.mubr.bf16.gmra.mxu0 %v1324
  %v1391 = vpop.f32.mrf.mxu0
  %v1392 = vadd.f32 0.0, %v1391
  %v1393 = vpop.f32.mrf.mxu0
  %v1394 = vpop.f32.mrf.mxu0
  %v1395 = vadd.f32 0.0, %v1394
  %v1396 = vpop.f32.mrf.mxu0
  %1397 = vmatprep.mubr.bf16.mxu0 0
  %1398 = vmatmul.mubr.bf16.gmra.mxu0 %v1327
  %v1399 = vpop.f32.mrf.mxu0
  %v1400 = vadd.f32 0.0, %v1399
  %v1401 = vpop.f32.mrf.mxu0
  %v1402 = vpop.f32.mrf.mxu0
  %v1403 = vadd.f32 0.0, %v1402
  %v1404 = vpop.f32.mrf.mxu0
  %1405 = vdwg.mxu0
  %v1406 = vmul.f32 %v1376, 0.25
  %v1407 = vmul.f32 %v1379, 0.25
  %v1408 = vmul.f32 %v1384, 0.25
  %v1409 = vmul.f32 %v1387, 0.25
  %v1410 = vmul.f32 %v1392, 0.25
  %v1411 = vmul.f32 %v1395, 0.25
  %v1412 = vmul.f32 %v1400, 0.25
  %v1413 = vmul.f32 %v1403, 0.25
  %v1414 = vadd.f32 %v1406, %v309
  %v1415 = vadd.f32 %v1407, %v310
  %v1416 = vadd.f32 %v1408, %v311
  %v1417 = vadd.f32 %v1409, %v312
  %v1418 = vadd.f32 %v1410, %v313
  %v1419 = vadd.f32 %v1411, %v314
  %v1420 = vadd.f32 %v1412, %v315
  %v1421 = vadd.f32 %v1413, %v316
  %v1422 = vsel %vm22, %v1414, -inf
  %1423 = vmax.xlane.f32.xlu0 %v1422
  %v1424 = vpop.xlane.xlu0 %1423
  %v1425 = vsel %vm22, %v1415, -inf
  %1426 = vmax.xlane.f32.xlu0 %v1425
  %v1427 = vpop.xlane.xlu0 %1426
  %v1428 = vsel %vm22, %v1416, -inf
  %1429 = vmax.xlane.f32.xlu0 %v1428
  %v1430 = vpop.xlane.xlu0 %1429
  %v1431 = vsel %vm22, %v1417, -inf
  %1432 = vmax.xlane.f32.xlu0 %v1431
  %v1433 = vpop.xlane.xlu0 %1432
  %v1434 = vsel %vm22, %v1418, -inf
  %1435 = vmax.xlane.f32.xlu0 %v1434
  %v1436 = vpop.xlane.xlu0 %1435
  %v1437 = vsel %vm22, %v1419, -inf
  %1438 = vmax.xlane.f32.xlu0 %v1437
  %v1439 = vpop.xlane.xlu0 %1438
  %v1440 = vsel %vm22, %v1420, -inf
  %1441 = vmax.xlane.f32.xlu0 %v1440
  %v1442 = vpop.xlane.xlu0 %1441
  %v1443 = vsel %vm22, %v1421, -inf
  %1444 = vmax.xlane.f32.xlu0 %v1443
  %v1445 = vpop.xlane.xlu0 %1444
  %v1446 = vsub.f32 %v1414, %v1424
  %v1447 = vsub.f32 %v1415, %v1427
  %v1448 = vsub.f32 %v1416, %v1430
  %v1449 = vsub.f32 %v1417, %v1433
  %v1450 = vsub.f32 %v1418, %v1436
  %v1451 = vsub.f32 %v1419, %v1439
  %v1452 = vsub.f32 %v1420, %v1442
  %v1453 = vsub.f32 %v1421, %v1445
  %v1454 = vmul.f32 %v1446, 1.442695
  %v1455 = vpow.pop %v1454
  %v1456 = vmul.f32 %v1447, 1.442695
  %v1457 = vpow.pop %v1456
  %v1458 = vmul.f32 %v1448, 1.442695
  %v1459 = vpow.pop %v1458
  %v1460 = vmul.f32 %v1449, 1.442695
  %v1461 = vpow.pop %v1460
  %v1462 = vmul.f32 %v1450, 1.442695
  %v1463 = vpow.pop %v1462
  %v1464 = vmul.f32 %v1451, 1.442695
  %v1465 = vpow.pop %v1464
  %v1466 = vmul.f32 %v1452, 1.442695
  %v1467 = vpow.pop %v1466
  %v1468 = vmul.f32 %v1453, 1.442695
  %v1469 = vpow.pop %v1468
  %v1470 = vsel %vm22, %v1455, 0.0
  %1471 = vadd.xlane.f32.xlu0 %v1470
  %v1472 = vpop.xlane.xlu0 %1471
  %v1473 = vsel %vm22, %v1457, 0.0
  %1474 = vadd.xlane.f32.xlu0 %v1473
  %v1475 = vpop.xlane.xlu0 %1474
  %v1476 = vsel %vm22, %v1459, 0.0
  %1477 = vadd.xlane.f32.xlu0 %v1476
  %v1478 = vpop.xlane.xlu0 %1477
  %v1479 = vsel %vm22, %v1461, 0.0
  %1480 = vadd.xlane.f32.xlu0 %v1479
  %v1481 = vpop.xlane.xlu0 %1480
  %v1482 = vsel %vm22, %v1463, 0.0
  %1483 = vadd.xlane.f32.xlu0 %v1482
  %v1484 = vpop.xlane.xlu0 %1483
  %v1485 = vsel %vm22, %v1465, 0.0
  %1486 = vadd.xlane.f32.xlu0 %v1485
  %v1487 = vpop.xlane.xlu0 %1486
  %v1488 = vsel %vm22, %v1467, 0.0
  %1489 = vadd.xlane.f32.xlu0 %v1488
  %v1490 = vpop.xlane.xlu0 %1489
  %v1491 = vsel %vm22, %v1469, 0.0
  %1492 = vadd.xlane.f32.xlu0 %v1491
  %v1493 = vpop.xlane.xlu0 %1492
  %v1494 = vrcp.pop %v1472
  %v1495 = vrcp.pop %v1475
  %v1496 = vrcp.pop %v1478
  %v1497 = vrcp.pop %v1481
  %v1498 = vrcp.pop %v1484
  %v1499 = vrcp.pop %v1487
  %v1500 = vrcp.pop %v1490
  %v1501 = vrcp.pop %v1493
  %v1502 = vmul.f32 %v1455, %v1494
  %v1503 = vmul.f32 %v1457, %v1495
  %v1504 = vmul.f32 %v1459, %v1496
  %v1505 = vmul.f32 %v1461, %v1497
  %v1506 = vmul.f32 %v1463, %v1498
  %v1507 = vmul.f32 %v1465, %v1499
  %v1508 = vmul.f32 %v1467, %v1500
  %v1509 = vmul.f32 %v1469, %v1501
  %v1510 = vpack.c.bf16 %v1503, %v1502
  %v1511 = vpack.c.bf16 %v1505, %v1504
  %v1512 = vpack.c.bf16 %v1507, %v1506
  %v1513 = vpack.c.bf16 %v1509, %v1508
  %1514 = vrot.lane.b32.xlu0 %v701, 96
  %v1515 = vpop.permute.xlu0 %1514
  %1516 = vrot.lane.b32.xlu0 %v702, 96
  %v1517 = vpop.permute.xlu0 %1516
  %1518 = vrot.lane.b32.xlu0 %v703, 96
  %v1519 = vpop.permute.xlu0 %1518
  %1520 = vrot.lane.b32.xlu0 %v704, 96
  %v1521 = vpop.permute.xlu0 %1520
  %v1527 = vsel %vm22, %v1510, 0
  %v1530 = vsel %vm22, %v1511, 0
  %v1533 = vsel %vm22, %v1512, 0
  %v1536 = vsel %vm22, %v1513, 0
  %1538 = vmatprep.subr.bf16.mxu0 0
  %1539 = vmatpush1.bf16.msra.mxu0 0
  %1540 = vmatprep.subr.bf16.mxu0 0
  %1541 = vmatpush1.bf16.msra.mxu0 0
  %1542 = vmatprep.subr.bf16.mxu0 0
  %1543 = vmatpush1.bf16.msra.mxu0 0
  %1544 = vmatprep.subr.bf16.mxu0 0
  %1545 = vmatpush1.bf16.msra.mxu0 0
  %1546 = vmatprep.subr.bf16.mxu0 0
  %1547 = vmatpush1.bf16.msra.mxu0 %v1521
  %1548 = vmatprep.subr.bf16.mxu0 0
  %1549 = vmatpush1.bf16.msra.mxu0 %v1519
  %1550 = vmatprep.subr.bf16.mxu0 0
  %1551 = vmatpush1.bf16.msra.mxu0 %v1517
  %1552 = vmatprep.subr.bf16.mxu0 0
  %1553 = vmatpush1.bf16.msra.mxu0 %v1515
  %1554 = vmatprep.subr.bf16.mxu0 0
  %1555 = vmatpush2.bf16.msra.mxu0 0
  %1556 = vmatprep.subr.bf16.mxu0 0
  %1557 = vmatpush2.bf16.msra.mxu0 0
  %1558 = vmatprep.subr.bf16.mxu0 0
  %1559 = vmatpush2.bf16.msra.mxu0 0
  %1560 = vmatprep.subr.bf16.mxu0 0
  %1561 = vmatpush2.bf16.msra.mxu0 0
  %1562 = vmatprep.subr.bf16.mxu0 0
  %1563 = vmatpush2.bf16.msra.mxu0 0
  %1564 = vmatprep.subr.bf16.mxu0 0
  %1565 = vmatpush2.bf16.msra.mxu0 0
  %1566 = vmatprep.subr.bf16.mxu0 0
  %1567 = vmatpush2.bf16.msra.mxu0 0
  %1568 = vmatprep.subr.bf16.mxu0 0
  %1569 = vmatpush2.bf16.msra.mxu0 0
  %1570 = vmatprep.mubr.bf16.mxu0 0
  %1571 = vmatmul.mubr.bf16.gmra.mxu0 %v1527
  %v1572 = vpop.f32.mrf.mxu0
  %v1573 = vadd.f32 0.0, %v1572
  %v1574 = vpop.f32.mrf.mxu0
  %v1575 = vpop.f32.mrf.mxu0
  %v1576 = vadd.f32 0.0, %v1575
  %v1577 = vpop.f32.mrf.mxu0
  %1578 = vmatprep.mubr.bf16.mxu0 0
  %1579 = vmatmul.mubr.bf16.gmra.mxu0 %v1530
  %v1580 = vpop.f32.mrf.mxu0
  %v1581 = vadd.f32 0.0, %v1580
  %v1582 = vpop.f32.mrf.mxu0
  %v1583 = vpop.f32.mrf.mxu0
  %v1584 = vadd.f32 0.0, %v1583
  %v1585 = vpop.f32.mrf.mxu0
  %1586 = vmatprep.mubr.bf16.mxu0 0
  %1587 = vmatmul.mubr.bf16.gmra.mxu0 %v1533
  %v1588 = vpop.f32.mrf.mxu0
  %v1589 = vadd.f32 0.0, %v1588
  %v1590 = vpop.f32.mrf.mxu0
  %v1591 = vpop.f32.mrf.mxu0
  %v1592 = vadd.f32 0.0, %v1591
  %v1593 = vpop.f32.mrf.mxu0
  %1594 = vmatprep.mubr.bf16.mxu0 0
  %1595 = vmatmul.mubr.bf16.gmra.mxu0 %v1536
  %v1596 = vpop.f32.mrf.mxu0
  %v1597 = vadd.f32 0.0, %v1596
  %v1598 = vpop.f32.mrf.mxu0
  %v1599 = vpop.f32.mrf.mxu0
  %v1600 = vadd.f32 0.0, %v1599
  %v1601 = vpop.f32.mrf.mxu0
  %1602 = vdwg.mxu0
  %1603 = vrot.lane.b32.xlu0 %v665, 80
  %v1604 = vpop.permute.xlu0 %1603
  %1605 = vrot.lane.b32.xlu0 %v666, 80
  %v1606 = vpop.permute.xlu0 %1605
  %1607 = vrot.lane.b32.xlu0 %v667, 80
  %v1608 = vpop.permute.xlu0 %1607
  %1609 = vrot.lane.b32.xlu0 %v668, 80
  %v1610 = vpop.permute.xlu0 %1609
  %1611 = vrot.lane.b32.xlu0 %v685, 16
  %v1612 = vpop.permute.xlu0 %1611
  %1613 = vrot.lane.b32.xlu0 %v686, 16
  %v1614 = vpop.permute.xlu0 %1613
  %1615 = vrot.lane.b32.xlu0 %v687, 16
  %v1616 = vpop.permute.xlu0 %1615
  %1617 = vrot.lane.b32.xlu0 %v688, 16
  %v1618 = vpop.permute.xlu0 %1617
  %v1620 = vsel %vm92, %v1604, 0
  %v1623 = vsel %vm92, %v1606, 0
  %v1626 = vsel %vm92, %v1608, 0
  %v1629 = vsel %vm92, %v1610, 0
  %v1632 = vsel %vm92, %v1612, 0
  %v1635 = vsel %vm92, %v1614, 0
  %v1638 = vsel %vm92, %v1616, 0
  %v1641 = vsel %vm92, %v1618, 0
  %1643 = vmatprep.subr.bf16.mxu0 0
  %1644 = vmatpush1.bf16.xpose.msra.mxu0 0
  %1645 = vmatprep.subr.bf16.mxu0 0
  %1646 = vmatpush1.bf16.xpose.msra.mxu0 0
  %1647 = vmatprep.subr.bf16.mxu0 0
  %1648 = vmatpush1.bf16.xpose.msra.mxu0 0
  %1649 = vmatprep.subr.bf16.mxu0 0
  %1650 = vmatpush1.bf16.xpose.msra.mxu0 0
  %1651 = vmatprep.subr.bf16.mxu0 0
  %1652 = vmatpush1.bf16.xpose.msra.mxu0 %v1641
  %1653 = vmatprep.subr.bf16.mxu0 0
  %1654 = vmatpush1.bf16.xpose.msra.mxu0 %v1638
  %1655 = vmatprep.subr.bf16.mxu0 0
  %1656 = vmatpush1.bf16.xpose.msra.mxu0 %v1635
  %1657 = vmatprep.subr.bf16.mxu0 0
  %1658 = vmatpush1.bf16.xpose.msra.mxu0 %v1632
  %1659 = vmatprep.subr.bf16.mxu0 0
  %1660 = vmatpush2.bf16.xpose.msra.mxu0 0
  %1661 = vmatprep.subr.bf16.mxu0 0
  %1662 = vmatpush2.bf16.xpose.msra.mxu0 0
  %1663 = vmatprep.subr.bf16.mxu0 0
  %1664 = vmatpush2.bf16.xpose.msra.mxu0 0
  %1665 = vmatprep.subr.bf16.mxu0 0
  %1666 = vmatpush2.bf16.xpose.msra.mxu0 0
  %1667 = vmatprep.subr.bf16.mxu0 0
  %1668 = vmatpush2.bf16.xpose.msra.mxu0 0
  %1669 = vmatprep.subr.bf16.mxu0 0
  %1670 = vmatpush2.bf16.xpose.msra.mxu0 0
  %1671 = vmatprep.subr.bf16.mxu0 0
  %1672 = vmatpush2.bf16.xpose.msra.mxu0 0
  %1673 = vmatprep.subr.bf16.mxu0 0
  %1674 = vmatpush2.bf16.xpose.msra.mxu0 0
  %1675 = vmatprep.mubr.bf16.mxu0 0
  %1676 = vmatmul.mubr.bf16.gmra.mxu0 %v1620
  %v1677 = vpop.f32.mrf.mxu0
  %v1678 = vadd.f32 0.0, %v1677
  %v1679 = vpop.f32.mrf.mxu0
  %v1680 = vpop.f32.mrf.mxu0
  %v1681 = vadd.f32 0.0, %v1680
  %v1682 = vpop.f32.mrf.mxu0
  %1683 = vmatprep.mubr.bf16.mxu0 0
  %1684 = vmatmul.mubr.bf16.gmra.mxu0 %v1623
  %v1685 = vpop.f32.mrf.mxu0
  %v1686 = vadd.f32 0.0, %v1685
  %v1687 = vpop.f32.mrf.mxu0
  %v1688 = vpop.f32.mrf.mxu0
  %v1689 = vadd.f32 0.0, %v1688
  %v1690 = vpop.f32.mrf.mxu0
  %1691 = vmatprep.mubr.bf16.mxu0 0
  %1692 = vmatmul.mubr.bf16.gmra.mxu0 %v1626
  %v1693 = vpop.f32.mrf.mxu0
  %v1694 = vadd.f32 0.0, %v1693
  %v1695 = vpop.f32.mrf.mxu0
  %v1696 = vpop.f32.mrf.mxu0
  %v1697 = vadd.f32 0.0, %v1696
  %v1698 = vpop.f32.mrf.mxu0
  %1699 = vmatprep.mubr.bf16.mxu0 0
  %1700 = vmatmul.mubr.bf16.gmra.mxu0 %v1629
  %v1701 = vpop.f32.mrf.mxu0
  %v1702 = vadd.f32 0.0, %v1701
  %v1703 = vpop.f32.mrf.mxu0
  %v1704 = vpop.f32.mrf.mxu0
  %v1705 = vadd.f32 0.0, %v1704
  %v1706 = vpop.f32.mrf.mxu0
  %1707 = vdwg.mxu0
  %v1708 = vmul.f32 %v1678, 0.25
  %v1709 = vmul.f32 %v1681, 0.25
  %v1710 = vmul.f32 %v1686, 0.25
  %v1711 = vmul.f32 %v1689, 0.25
  %v1712 = vmul.f32 %v1694, 0.25
  %v1713 = vmul.f32 %v1697, 0.25
  %v1714 = vmul.f32 %v1702, 0.25
  %v1715 = vmul.f32 %v1705, 0.25
  %v1716 = vadd.f32 %v1708, %v309
  %v1717 = vadd.f32 %v1709, %v310
  %v1718 = vadd.f32 %v1710, %v311
  %v1719 = vadd.f32 %v1711, %v312
  %v1720 = vadd.f32 %v1712, %v313
  %v1721 = vadd.f32 %v1713, %v314
  %v1722 = vadd.f32 %v1714, %v315
  %v1723 = vadd.f32 %v1715, %v316
  %v1724 = vsel %vm22, %v1716, -inf
  %1725 = vmax.xlane.f32.xlu0 %v1724
  %v1726 = vpop.xlane.xlu0 %1725
  %v1727 = vsel %vm22, %v1717, -inf
  %1728 = vmax.xlane.f32.xlu0 %v1727
  %v1729 = vpop.xlane.xlu0 %1728
  %v1730 = vsel %vm22, %v1718, -inf
  %1731 = vmax.xlane.f32.xlu0 %v1730
  %v1732 = vpop.xlane.xlu0 %1731
  %v1733 = vsel %vm22, %v1719, -inf
  %1734 = vmax.xlane.f32.xlu0 %v1733
  %v1735 = vpop.xlane.xlu0 %1734
  %v1736 = vsel %vm22, %v1720, -inf
  %1737 = vmax.xlane.f32.xlu0 %v1736
  %v1738 = vpop.xlane.xlu0 %1737
  %v1739 = vsel %vm22, %v1721, -inf
  %1740 = vmax.xlane.f32.xlu0 %v1739
  %v1741 = vpop.xlane.xlu0 %1740
  %v1742 = vsel %vm22, %v1722, -inf
  %1743 = vmax.xlane.f32.xlu0 %v1742
  %v1744 = vpop.xlane.xlu0 %1743
  %v1745 = vsel %vm22, %v1723, -inf
  %1746 = vmax.xlane.f32.xlu0 %v1745
  %v1747 = vpop.xlane.xlu0 %1746
  %v1748 = vsub.f32 %v1716, %v1726
  %v1749 = vsub.f32 %v1717, %v1729
  %v1750 = vsub.f32 %v1718, %v1732
  %v1751 = vsub.f32 %v1719, %v1735
  %v1752 = vsub.f32 %v1720, %v1738
  %v1753 = vsub.f32 %v1721, %v1741
  %v1754 = vsub.f32 %v1722, %v1744
  %v1755 = vsub.f32 %v1723, %v1747
  %v1756 = vmul.f32 %v1748, 1.442695
  %v1757 = vpow.pop %v1756
  %v1758 = vmul.f32 %v1749, 1.442695
  %v1759 = vpow.pop %v1758
  %v1760 = vmul.f32 %v1750, 1.442695
  %v1761 = vpow.pop %v1760
  %v1762 = vmul.f32 %v1751, 1.442695
  %v1763 = vpow.pop %v1762
  %v1764 = vmul.f32 %v1752, 1.442695
  %v1765 = vpow.pop %v1764
  %v1766 = vmul.f32 %v1753, 1.442695
  %v1767 = vpow.pop %v1766
  %v1768 = vmul.f32 %v1754, 1.442695
  %v1769 = vpow.pop %v1768
  %v1770 = vmul.f32 %v1755, 1.442695
  %v1771 = vpow.pop %v1770
  %v1772 = vsel %vm22, %v1757, 0.0
  %1773 = vadd.xlane.f32.xlu0 %v1772
  %v1774 = vpop.xlane.xlu0 %1773
  %v1775 = vsel %vm22, %v1759, 0.0
  %1776 = vadd.xlane.f32.xlu0 %v1775
  %v1777 = vpop.xlane.xlu0 %1776
  %v1778 = vsel %vm22, %v1761, 0.0
  %1779 = vadd.xlane.f32.xlu0 %v1778
  %v1780 = vpop.xlane.xlu0 %1779
  %v1781 = vsel %vm22, %v1763, 0.0
  %1782 = vadd.xlane.f32.xlu0 %v1781
  %v1783 = vpop.xlane.xlu0 %1782
  %v1784 = vsel %vm22, %v1765, 0.0
  %1785 = vadd.xlane.f32.xlu0 %v1784
  %v1786 = vpop.xlane.xlu0 %1785
  %v1787 = vsel %vm22, %v1767, 0.0
  %1788 = vadd.xlane.f32.xlu0 %v1787
  %v1789 = vpop.xlane.xlu0 %1788
  %v1790 = vsel %vm22, %v1769, 0.0
  %1791 = vadd.xlane.f32.xlu0 %v1790
  %v1792 = vpop.xlane.xlu0 %1791
  %v1793 = vsel %vm22, %v1771, 0.0
  %1794 = vadd.xlane.f32.xlu0 %v1793
  %v1795 = vpop.xlane.xlu0 %1794
  %v1796 = vrcp.pop %v1774
  %v1797 = vrcp.pop %v1777
  %v1798 = vrcp.pop %v1780
  %v1799 = vrcp.pop %v1783
  %v1800 = vrcp.pop %v1786
  %v1801 = vrcp.pop %v1789
  %v1802 = vrcp.pop %v1792
  %v1803 = vrcp.pop %v1795
  %v1804 = vmul.f32 %v1757, %v1796
  %v1805 = vmul.f32 %v1759, %v1797
  %v1806 = vmul.f32 %v1761, %v1798
  %v1807 = vmul.f32 %v1763, %v1799
  %v1808 = vmul.f32 %v1765, %v1800
  %v1809 = vmul.f32 %v1767, %v1801
  %v1810 = vmul.f32 %v1769, %v1802
  %v1811 = vmul.f32 %v1771, %v1803
  %v1812 = vpack.c.bf16 %v1805, %v1804
  %v1813 = vpack.c.bf16 %v1807, %v1806
  %v1814 = vpack.c.bf16 %v1809, %v1808
  %v1815 = vpack.c.bf16 %v1811, %v1810
  %1816 = vrot.lane.b32.xlu0 %v701, 80
  %v1817 = vpop.permute.xlu0 %1816
  %1818 = vrot.lane.b32.xlu0 %v702, 80
  %v1819 = vpop.permute.xlu0 %1818
  %1820 = vrot.lane.b32.xlu0 %v703, 80
  %v1821 = vpop.permute.xlu0 %1820
  %1822 = vrot.lane.b32.xlu0 %v704, 80
  %v1823 = vpop.permute.xlu0 %1822
  %v1829 = vsel %vm22, %v1812, 0
  %v1832 = vsel %vm22, %v1813, 0
  %v1835 = vsel %vm22, %v1814, 0
  %v1838 = vsel %vm22, %v1815, 0
  %1840 = vmatprep.subr.bf16.mxu0 0
  %1841 = vmatpush1.bf16.msra.mxu0 0
  %1842 = vmatprep.subr.bf16.mxu0 0
  %1843 = vmatpush1.bf16.msra.mxu0 0
  %1844 = vmatprep.subr.bf16.mxu0 0
  %1845 = vmatpush1.bf16.msra.mxu0 0
  %1846 = vmatprep.subr.bf16.mxu0 0
  %1847 = vmatpush1.bf16.msra.mxu0 0
  %1848 = vmatprep.subr.bf16.mxu0 0
  %1849 = vmatpush1.bf16.msra.mxu0 %v1823
  %1850 = vmatprep.subr.bf16.mxu0 0
  %1851 = vmatpush1.bf16.msra.mxu0 %v1821
  %1852 = vmatprep.subr.bf16.mxu0 0
  %1853 = vmatpush1.bf16.msra.mxu0 %v1819
  %1854 = vmatprep.subr.bf16.mxu0 0
  %1855 = vmatpush1.bf16.msra.mxu0 %v1817
  %1856 = vmatprep.subr.bf16.mxu0 0
  %1857 = vmatpush2.bf16.msra.mxu0 0
  %1858 = vmatprep.subr.bf16.mxu0 0
  %1859 = vmatpush2.bf16.msra.mxu0 0
  %1860 = vmatprep.subr.bf16.mxu0 0
  %1861 = vmatpush2.bf16.msra.mxu0 0
  %1862 = vmatprep.subr.bf16.mxu0 0
  %1863 = vmatpush2.bf16.msra.mxu0 0
  %1864 = vmatprep.subr.bf16.mxu0 0
  %1865 = vmatpush2.bf16.msra.mxu0 0
  %1866 = vmatprep.subr.bf16.mxu0 0
  %1867 = vmatpush2.bf16.msra.mxu0 0
  %1868 = vmatprep.subr.bf16.mxu0 0
  %1869 = vmatpush2.bf16.msra.mxu0 0
  %1870 = vmatprep.subr.bf16.mxu0 0
  %1871 = vmatpush2.bf16.msra.mxu0 0
  %1872 = vmatprep.mubr.bf16.mxu0 0
  %1873 = vmatmul.mubr.bf16.gmra.mxu0 %v1829
  %v1874 = vpop.f32.mrf.mxu0
  %v1875 = vadd.f32 0.0, %v1874
  %v1876 = vpop.f32.mrf.mxu0
  %v1877 = vpop.f32.mrf.mxu0
  %v1878 = vadd.f32 0.0, %v1877
  %v1879 = vpop.f32.mrf.mxu0
  %1880 = vmatprep.mubr.bf16.mxu0 0
  %1881 = vmatmul.mubr.bf16.gmra.mxu0 %v1832
  %v1882 = vpop.f32.mrf.mxu0
  %v1883 = vadd.f32 0.0, %v1882
  %v1884 = vpop.f32.mrf.mxu0
  %v1885 = vpop.f32.mrf.mxu0
  %v1886 = vadd.f32 0.0, %v1885
  %v1887 = vpop.f32.mrf.mxu0
  %1888 = vmatprep.mubr.bf16.mxu0 0
  %1889 = vmatmul.mubr.bf16.gmra.mxu0 %v1835
  %v1890 = vpop.f32.mrf.mxu0
  %v1891 = vadd.f32 0.0, %v1890
  %v1892 = vpop.f32.mrf.mxu0
  %v1893 = vpop.f32.mrf.mxu0
  %v1894 = vadd.f32 0.0, %v1893
  %v1895 = vpop.f32.mrf.mxu0
  %1896 = vmatprep.mubr.bf16.mxu0 0
  %1897 = vmatmul.mubr.bf16.gmra.mxu0 %v1838
  %v1898 = vpop.f32.mrf.mxu0
  %v1899 = vadd.f32 0.0, %v1898
  %v1900 = vpop.f32.mrf.mxu0
  %v1901 = vpop.f32.mrf.mxu0
  %v1902 = vadd.f32 0.0, %v1901
  %v1903 = vpop.f32.mrf.mxu0
  %1904 = vdwg.mxu0
  %1913 = vrot.lane.b32.xlu0 %v1271, 16
  %v1914 = vpop.permute.xlu0 %1913
  %1915 = vrot.lane.b32.xlu0 %v1274, 16
  %v1916 = vpop.permute.xlu0 %1915
  %1917 = vrot.lane.b32.xlu0 %v1279, 16
  %v1918 = vpop.permute.xlu0 %1917
  %1919 = vrot.lane.b32.xlu0 %v1282, 16
  %v1920 = vpop.permute.xlu0 %1919
  %1921 = vrot.lane.b32.xlu0 %v1287, 16
  %v1922 = vpop.permute.xlu0 %1921
  %1923 = vrot.lane.b32.xlu0 %v1290, 16
  %v1924 = vpop.permute.xlu0 %1923
  %1925 = vrot.lane.b32.xlu0 %v1295, 16
  %v1926 = vpop.permute.xlu0 %1925
  %1927 = vrot.lane.b32.xlu0 %v1298, 16
  %v1928 = vpop.permute.xlu0 %1927
  %1945 = vrot.lane.b32.xlu0 %v1573, 32
  %v1946 = vpop.permute.xlu0 %1945
  %1947 = vrot.lane.b32.xlu0 %v1576, 32
  %v1948 = vpop.permute.xlu0 %1947
  %1949 = vrot.lane.b32.xlu0 %v1581, 32
  %v1950 = vpop.permute.xlu0 %1949
  %1951 = vrot.lane.b32.xlu0 %v1584, 32
  %v1952 = vpop.permute.xlu0 %1951
  %1953 = vrot.lane.b32.xlu0 %v1589, 32
  %v1954 = vpop.permute.xlu0 %1953
  %1955 = vrot.lane.b32.xlu0 %v1592, 32
  %v1956 = vpop.permute.xlu0 %1955
  %1957 = vrot.lane.b32.xlu0 %v1597, 32
  %v1958 = vpop.permute.xlu0 %1957
  %1959 = vrot.lane.b32.xlu0 %v1600, 32
  %v1960 = vpop.permute.xlu0 %1959
  %1977 = vrot.lane.b32.xlu0 %v1875, 48
  %v1978 = vpop.permute.xlu0 %1977
  %1979 = vrot.lane.b32.xlu0 %v1878, 48
  %v1980 = vpop.permute.xlu0 %1979
  %1981 = vrot.lane.b32.xlu0 %v1883, 48
  %v1982 = vpop.permute.xlu0 %1981
  %1983 = vrot.lane.b32.xlu0 %v1886, 48
  %v1984 = vpop.permute.xlu0 %1983
  %1985 = vrot.lane.b32.xlu0 %v1891, 48
  %v1986 = vpop.permute.xlu0 %1985
  %1987 = vrot.lane.b32.xlu0 %v1894, 48
  %v1988 = vpop.permute.xlu0 %1987
  %1989 = vrot.lane.b32.xlu0 %v1899, 48
  %v1990 = vpop.permute.xlu0 %1989
  %1991 = vrot.lane.b32.xlu0 %v1902, 48
  %v1992 = vpop.permute.xlu0 %1991
  %v2001 = vsel %vm92, %v961, %v1914
  %v2002 = vsel %vm92, %v964, %v1916
  %v2003 = vsel %vm92, %v969, %v1918
  %v2004 = vsel %vm92, %v972, %v1920
  %v2005 = vsel %vm92, %v977, %v1922
  %v2006 = vsel %vm92, %v980, %v1924
  %v2007 = vsel %vm92, %v985, %v1926
  %v2008 = vsel %vm92, %v988, %v1928
  %vm2009 = vcmask 261120
  %v2010 = vsel %vm2009, %v2001, %v1946
  %v2011 = vsel %vm2009, %v2002, %v1948
  %v2012 = vsel %vm2009, %v2003, %v1950
  %v2013 = vsel %vm2009, %v2004, %v1952
  %v2014 = vsel %vm2009, %v2005, %v1954
  %v2015 = vsel %vm2009, %v2006, %v1956
  %v2016 = vsel %vm2009, %v2007, %v1958
  %v2017 = vsel %vm2009, %v2008, %v1960
  %vm2018 = vcmask 392192
  %v2019 = vsel %vm2018, %v2010, %v1978
  %v2020 = vsel %vm2018, %v2011, %v1980
  %v2021 = vsel %vm2018, %v2012, %v1982
  %v2022 = vsel %vm2018, %v2013, %v1984
  %v2023 = vsel %vm2018, %v2014, %v1986
  %v2024 = vsel %vm2018, %v2015, %v1988
  %v2025 = vsel %vm2018, %v2016, %v1990
  %v2026 = vsel %vm2018, %v2017, %v1992
  %v2027 = vpack.c.bf16 %v2020, %v2019
  %v2028 = vpack.c.bf16 %v2022, %v2021
  %v2029 = vpack.c.bf16 %v2024, %v2023
  %v2030 = vpack.c.bf16 %v2026, %v2025
  %v2031 = vlaneseq
  %v2032 = vshrl.u32 %v2031, 7
  %v2033 = vsub.s32 0, %v2032
  %v2034 = vrot.slane %v322, %v2033
  %v2043 = vunpack.c.l.b16 %v348
  %v2044 = vunpack.c.l.b16 %v349
  %v2045 = vunpack.c.l.b16 %v350
  %v2046 = vunpack.c.l.b16 %v351
  %v2047 = vunpack.c.l.b16 %v352
  %v2048 = vunpack.c.l.b16 %v353
  %v2049 = vunpack.c.l.b16 %v354
  %v2050 = vunpack.c.l.b16 %v355
  %v2051 = vpack.c.b16 %v2044, %v2043
  %v2052 = vpack.c.b16 %v2046, %v2045
  %v2053 = vpack.c.b16 %v2048, %v2047
  %v2054 = vpack.c.b16 %v2050, %v2049
  %v2060 = vsel %vm22, %v2027, 0
  %v2063 = vsel %vm22, %v2028, 0
  %v2066 = vsel %vm22, %v2029, 0
  %v2069 = vsel %vm22, %v2030, 0
  %2071 = vmatprep.subr.bf16.mxu0 0
  %2072 = vmatpush1.bf16.msra.mxu0 0
  %2073 = vmatprep.subr.bf16.mxu0 0
  %2074 = vmatpush1.bf16.msra.mxu0 0
  %2075 = vmatprep.subr.bf16.mxu0 0
  %2076 = vmatpush1.bf16.msra.mxu0 0
  %2077 = vmatprep.subr.bf16.mxu0 0
  %2078 = vmatpush1.bf16.msra.mxu0 0
  %2079 = vmatprep.subr.bf16.mxu0 0
  %2080 = vmatpush1.bf16.msra.mxu0 %v2054
  %2081 = vmatprep.subr.bf16.mxu0 0
  %2082 = vmatpush1.bf16.msra.mxu0 %v2053
  %2083 = vmatprep.subr.bf16.mxu0 0
  %2084 = vmatpush1.bf16.msra.mxu0 %v2052
  %2085 = vmatprep.subr.bf16.mxu0 0
  %2086 = vmatpush1.bf16.msra.mxu0 %v2051
  %2087 = vmatprep.subr.bf16.mxu0 0
  %2088 = vmatpush2.bf16.msra.mxu0 0
  %2089 = vmatprep.subr.bf16.mxu0 0
  %2090 = vmatpush2.bf16.msra.mxu0 0
  %2091 = vmatprep.subr.bf16.mxu0 0
  %2092 = vmatpush2.bf16.msra.mxu0 0
  %2093 = vmatprep.subr.bf16.mxu0 0
  %2094 = vmatpush2.bf16.msra.mxu0 0
  %2095 = vmatprep.subr.bf16.mxu0 0
  %2096 = vmatpush2.bf16.msra.mxu0 0
  %2097 = vmatprep.subr.bf16.mxu0 0
  %2098 = vmatpush2.bf16.msra.mxu0 0
  %2099 = vmatprep.subr.bf16.mxu0 0
  %2100 = vmatpush2.bf16.msra.mxu0 0
  %2101 = vmatprep.subr.bf16.mxu0 0
  %2102 = vmatpush2.bf16.msra.mxu0 0
  %2103 = vmatprep.mubr.bf16.mxu0 0
  %2104 = vmatmul.mubr.bf16.gmra.mxu0 %v2060
  %v2105 = vpop.f32.mrf.mxu0
  %v2106 = vadd.f32 %v2034, %v2105
  %v2107 = vpop.f32.mrf.mxu0
  %v2108 = vpop.f32.mrf.mxu0
  %v2109 = vadd.f32 %v2034, %v2108
  %v2110 = vpop.f32.mrf.mxu0
  %2111 = vmatprep.mubr.bf16.mxu0 0
  %2112 = vmatmul.mubr.bf16.gmra.mxu0 %v2063
  %v2113 = vpop.f32.mrf.mxu0
  %v2114 = vadd.f32 %v2034, %v2113
  %v2115 = vpop.f32.mrf.mxu0
  %v2116 = vpop.f32.mrf.mxu0
  %v2117 = vadd.f32 %v2034, %v2116
  %v2118 = vpop.f32.mrf.mxu0
  %2119 = vmatprep.mubr.bf16.mxu0 0
  %2120 = vmatmul.mubr.bf16.gmra.mxu0 %v2066
  %v2121 = vpop.f32.mrf.mxu0
  %v2122 = vadd.f32 %v2034, %v2121
  %v2123 = vpop.f32.mrf.mxu0
  %v2124 = vpop.f32.mrf.mxu0
  %v2125 = vadd.f32 %v2034, %v2124
  %v2126 = vpop.f32.mrf.mxu0
  %2127 = vmatprep.mubr.bf16.mxu0 0
  %2128 = vmatmul.mubr.bf16.gmra.mxu0 %v2069
  %v2129 = vpop.f32.mrf.mxu0
  %v2130 = vadd.f32 %v2034, %v2129
  %v2131 = vpop.f32.mrf.mxu0
  %v2132 = vpop.f32.mrf.mxu0
  %v2133 = vadd.f32 %v2034, %v2132
  %v2134 = vpop.f32.mrf.mxu0
  %2135 = vdwg.mxu0
  %v2136 = vadd.f32 %v140, %v2106
  %v2137 = vadd.f32 %v143, %v2109
  %v2138 = vadd.f32 %v148, %v2114
  %v2139 = vadd.f32 %v151, %v2117
  %v2140 = vadd.f32 %v156, %v2122
  %v2141 = vadd.f32 %v159, %v2125
  %v2142 = vadd.f32 %v164, %v2130
  %v2143 = vadd.f32 %v167, %v2133
  %v2144 = vsel %vm22, %v2136, 0.0
  %2145 = vadd.xlane.f32.xlu0 %v2144
  %v2146 = vpop.xlane.xlu0 %2145
  %v2147 = vsel %vm22, %v2137, 0.0
  %2148 = vadd.xlane.f32.xlu0 %v2147
  %v2149 = vpop.xlane.xlu0 %2148
  %v2150 = vsel %vm22, %v2138, 0.0
  %2151 = vadd.xlane.f32.xlu0 %v2150
  %v2152 = vpop.xlane.xlu0 %2151
  %v2153 = vsel %vm22, %v2139, 0.0
  %2154 = vadd.xlane.f32.xlu0 %v2153
  %v2155 = vpop.xlane.xlu0 %2154
  %v2156 = vsel %vm22, %v2140, 0.0
  %2157 = vadd.xlane.f32.xlu0 %v2156
  %v2158 = vpop.xlane.xlu0 %2157
  %v2159 = vsel %vm22, %v2141, 0.0
  %2160 = vadd.xlane.f32.xlu0 %v2159
  %v2161 = vpop.xlane.xlu0 %2160
  %v2162 = vsel %vm22, %v2142, 0.0
  %2163 = vadd.xlane.f32.xlu0 %v2162
  %v2164 = vpop.xlane.xlu0 %2163
  %v2165 = vsel %vm22, %v2143, 0.0
  %2166 = vadd.xlane.f32.xlu0 %v2165
  %v2167 = vpop.xlane.xlu0 %2166
  %v2168 = vmul.f32 %v2146, %v26
  %v2169 = vmul.f32 %v2149, %v26
  %v2170 = vmul.f32 %v2152, %v26
  %v2171 = vmul.f32 %v2155, %v26
  %v2172 = vmul.f32 %v2158, %v26
  %v2173 = vmul.f32 %v2161, %v26
  %v2174 = vmul.f32 %v2164, %v26
  %v2175 = vmul.f32 %v2167, %v26
  %v2176 = vsub.f32 %v2136, %v2168
  %v2177 = vsub.f32 %v2137, %v2169
  %v2178 = vsub.f32 %v2138, %v2170
  %v2179 = vsub.f32 %v2139, %v2171
  %v2180 = vsub.f32 %v2140, %v2172
  %v2181 = vsub.f32 %v2141, %v2173
  %v2182 = vsub.f32 %v2142, %v2174
  %v2183 = vsub.f32 %v2143, %v2175
  %v2184 = vmul.f32 %v2176, %v2176
  %v2185 = vmul.f32 %v2177, %v2177
  %v2186 = vmul.f32 %v2178, %v2178
  %v2187 = vmul.f32 %v2179, %v2179
  %v2188 = vmul.f32 %v2180, %v2180
  %v2189 = vmul.f32 %v2181, %v2181
  %v2190 = vmul.f32 %v2182, %v2182
  %v2191 = vmul.f32 %v2183, %v2183
  %v2192 = vsel %vm22, %v2184, 0.0
  %2193 = vadd.xlane.f32.xlu0 %v2192
  %v2194 = vpop.xlane.xlu0 %2193
  %v2195 = vsel %vm22, %v2185, 0.0
  %2196 = vadd.xlane.f32.xlu0 %v2195
  %v2197 = vpop.xlane.xlu0 %2196
  %v2198 = vsel %vm22, %v2186, 0.0
  %2199 = vadd.xlane.f32.xlu0 %v2198
  %v2200 = vpop.xlane.xlu0 %2199
  %v2201 = vsel %vm22, %v2187, 0.0
  %2202 = vadd.xlane.f32.xlu0 %v2201
  %v2203 = vpop.xlane.xlu0 %2202
  %v2204 = vsel %vm22, %v2188, 0.0
  %2205 = vadd.xlane.f32.xlu0 %v2204
  %v2206 = vpop.xlane.xlu0 %2205
  %v2207 = vsel %vm22, %v2189, 0.0
  %2208 = vadd.xlane.f32.xlu0 %v2207
  %v2209 = vpop.xlane.xlu0 %2208
  %v2210 = vsel %vm22, %v2190, 0.0
  %2211 = vadd.xlane.f32.xlu0 %v2210
  %v2212 = vpop.xlane.xlu0 %2211
  %v2213 = vsel %vm22, %v2191, 0.0
  %2214 = vadd.xlane.f32.xlu0 %v2213
  %v2215 = vpop.xlane.xlu0 %2214
  %v2216 = vmul.f32 %v2194, %v26
  %v2217 = vmul.f32 %v2197, %v26
  %v2218 = vmul.f32 %v2200, %v26
  %v2219 = vmul.f32 %v2203, %v26
  %v2220 = vmul.f32 %v2206, %v26
  %v2221 = vmul.f32 %v2209, %v26
  %v2222 = vmul.f32 %v2212, %v26
  %v2223 = vmul.f32 %v2215, %v26
  %v2224 = vadd.f32 %v2216, 1e-05
  %v2225 = vadd.f32 %v2217, 1e-05
  %v2226 = vadd.f32 %v2218, 1e-05
  %v2227 = vadd.f32 %v2219, 1e-05
  %v2228 = vadd.f32 %v2220, 1e-05
  %v2229 = vadd.f32 %v2221, 1e-05
  %v2230 = vadd.f32 %v2222, 1e-05
  %v2231 = vadd.f32 %v2223, 1e-05
  %v2232 = vrsqrt.pop %v2224
  %v2233 = vrsqrt.pop %v2225
  %v2234 = vrsqrt.pop %v2226
  %v2235 = vrsqrt.pop %v2227
  %v2236 = vrsqrt.pop %v2228
  %v2237 = vrsqrt.pop %v2229
  %v2238 = vrsqrt.pop %v2230
  %v2239 = vrsqrt.pop %v2231
  %v2240 = vmul.f32 %v2176, %v2232
  %v2241 = vmul.f32 %v2177, %v2233
  %v2242 = vmul.f32 %v2178, %v2234
  %v2243 = vmul.f32 %v2179, %v2235
  %v2244 = vmul.f32 %v2180, %v2236
  %v2245 = vmul.f32 %v2181, %v2237
  %v2246 = vmul.f32 %v2182, %v2238
  %v2247 = vmul.f32 %v2183, %v2239
  %v2248 = vlaneseq
  %v2249 = vshrl.u32 %v2248, 7
  %v2250 = vsub.s32 0, %v2249
  %v2251 = vrot.slane %v323, %v2250
  %v2252 = vmul.f32 %v2240, %v2251
  %v2253 = vmul.f32 %v2241, %v2251
  %v2254 = vmul.f32 %v2242, %v2251
  %v2255 = vmul.f32 %v2243, %v2251
  %v2256 = vmul.f32 %v2244, %v2251
  %v2257 = vmul.f32 %v2245, %v2251
  %v2258 = vmul.f32 %v2246, %v2251
  %v2259 = vmul.f32 %v2247, %v2251
  %v2260 = vlaneseq
  %v2261 = vshrl.u32 %v2260, 7
  %v2262 = vsub.s32 0, %v2261
  %v2263 = vrot.slane %v324, %v2262
  %v2264 = vadd.f32 %v2252, %v2263
  %v2265 = vadd.f32 %v2253, %v2263
  %v2266 = vadd.f32 %v2254, %v2263
  %v2267 = vadd.f32 %v2255, %v2263
  %v2268 = vadd.f32 %v2256, %v2263
  %v2269 = vadd.f32 %v2257, %v2263
  %v2270 = vadd.f32 %v2258, %v2263
  %v2271 = vadd.f32 %v2259, %v2263
  %v2272 = vpack.c.bf16 %v2265, %v2264
  %v2273 = vpack.c.bf16 %v2267, %v2266
  %v2274 = vpack.c.bf16 %v2269, %v2268
  %v2275 = vpack.c.bf16 %v2271, %v2270
  %v2276 = vlaneseq
  %v2277 = vshrl.u32 %v2276, 7
  %v2278 = vsub.s32 0, %v2277
  %v2279 = vrot.slane %v337, %v2278
  %v2280 = vlaneseq
  %v2281 = vshrl.u32 %v2280, 7
  %v2282 = vsub.s32 0, %v2281
  %v2283 = vrot.slane %v338, %v2282
  %v2292 = vunpack.c.l.b16 %v388
  %v2293 = vunpack.c.h.b16 %v388
  %v2294 = vunpack.c.l.b16 %v389
  %v2295 = vunpack.c.h.b16 %v389
  %v2296 = vunpack.c.l.b16 %v390
  %v2297 = vunpack.c.h.b16 %v390
  %v2298 = vunpack.c.l.b16 %v391
  %v2299 = vunpack.c.h.b16 %v391
  %v2300 = vunpack.c.l.b16 %v392
  %v2301 = vunpack.c.h.b16 %v392
  %v2302 = vunpack.c.l.b16 %v393
  %v2303 = vunpack.c.h.b16 %v393
  %v2304 = vunpack.c.l.b16 %v394
  %v2305 = vunpack.c.h.b16 %v394
  %v2306 = vunpack.c.l.b16 %v395
  %v2307 = vunpack.c.h.b16 %v395
  %v2308 = vpack.c.b16 %v2294, %v2292
  %v2309 = vpack.c.b16 %v2295, %v2293
  %v2310 = vpack.c.b16 %v2298, %v2296
  %v2311 = vpack.c.b16 %v2299, %v2297
  %v2312 = vpack.c.b16 %v2302, %v2300
  %v2313 = vpack.c.b16 %v2303, %v2301
  %v2314 = vpack.c.b16 %v2306, %v2304
  %v2315 = vpack.c.b16 %v2307, %v2305
  %v2325 = vsel %vm22, %v2272, 0
  %v2328 = vsel %vm22, %v2273, 0
  %v2331 = vsel %vm22, %v2274, 0
  %v2334 = vsel %vm22, %v2275, 0
  %2336 = vmatprep.subr.bf16.mxu0 0
  %2337 = vmatpush1.bf16.msra.mxu0 0
  %2338 = vmatprep.subr.bf16.mxu0 0
  %2339 = vmatpush1.bf16.msra.mxu0 0
  %2340 = vmatprep.subr.bf16.mxu0 0
  %2341 = vmatpush1.bf16.msra.mxu0 0
  %2342 = vmatprep.subr.bf16.mxu0 0
  %2343 = vmatpush1.bf16.msra.mxu0 0
  %2344 = vmatprep.subr.bf16.mxu0 %v2315
  %2345 = vmatpush1.bf16.msra.mxu0 %v2314
  %2346 = vmatprep.subr.bf16.mxu0 %v2313
  %2347 = vmatpush1.bf16.msra.mxu0 %v2312
  %2348 = vmatprep.subr.bf16.mxu0 %v2311
  %2349 = vmatpush1.bf16.msra.mxu0 %v2310
  %2350 = vmatprep.subr.bf16.mxu0 %v2309
  %2351 = vmatpush1.bf16.msra.mxu0 %v2308
  %2352 = vmatprep.subr.bf16.mxu0 0
  %2353 = vmatpush2.bf16.msra.mxu0 0
  %2354 = vmatprep.subr.bf16.mxu0 0
  %2355 = vmatpush2.bf16.msra.mxu0 0
  %2356 = vmatprep.subr.bf16.mxu0 0
  %2357 = vmatpush2.bf16.msra.mxu0 0
  %2358 = vmatprep.subr.bf16.mxu0 0
  %2359 = vmatpush2.bf16.msra.mxu0 0
  %2360 = vmatprep.subr.bf16.mxu0 0
  %2361 = vmatpush2.bf16.msra.mxu0 0
  %2362 = vmatprep.subr.bf16.mxu0 0
  %2363 = vmatpush2.bf16.msra.mxu0 0
  %2364 = vmatprep.subr.bf16.mxu0 0
  %2365 = vmatpush2.bf16.msra.mxu0 0
  %2366 = vmatprep.subr.bf16.mxu0 0
  %2367 = vmatpush2.bf16.msra.mxu0 0
  %2368 = vmatprep.mubr.bf16.mxu0 0
  %2369 = vmatmul.mubr.bf16.gmra.mxu0 %v2325
  %v2370 = vpop.f32.mrf.mxu0
  %v2371 = vadd.f32 %v2279, %v2370
  %v2372 = vpop.f32.mrf.mxu0
  %v2373 = vadd.f32 %v2283, %v2372
  %v2374 = vpop.f32.mrf.mxu0
  %v2375 = vadd.f32 %v2279, %v2374
  %v2376 = vpop.f32.mrf.mxu0
  %v2377 = vadd.f32 %v2283, %v2376
  %2378 = vmatprep.mubr.bf16.mxu0 0
  %2379 = vmatmul.mubr.bf16.gmra.mxu0 %v2328
  %v2380 = vpop.f32.mrf.mxu0
  %v2381 = vadd.f32 %v2279, %v2380
  %v2382 = vpop.f32.mrf.mxu0
  %v2383 = vadd.f32 %v2283, %v2382
  %v2384 = vpop.f32.mrf.mxu0
  %v2385 = vadd.f32 %v2279, %v2384
  %v2386 = vpop.f32.mrf.mxu0
  %v2387 = vadd.f32 %v2283, %v2386
  %2388 = vmatprep.mubr.bf16.mxu0 0
  %2389 = vmatmul.mubr.bf16.gmra.mxu0 %v2331
  %v2390 = vpop.f32.mrf.mxu0
  %v2391 = vadd.f32 %v2279, %v2390
  %v2392 = vpop.f32.mrf.mxu0
  %v2393 = vadd.f32 %v2283, %v2392
  %v2394 = vpop.f32.mrf.mxu0
  %v2395 = vadd.f32 %v2279, %v2394
  %v2396 = vpop.f32.mrf.mxu0
  %v2397 = vadd.f32 %v2283, %v2396
  %2398 = vmatprep.mubr.bf16.mxu0 0
  %2399 = vmatmul.mubr.bf16.gmra.mxu0 %v2334
  %v2400 = vpop.f32.mrf.mxu0
  %v2401 = vadd.f32 %v2279, %v2400
  %v2402 = vpop.f32.mrf.mxu0
  %v2403 = vadd.f32 %v2283, %v2402
  %v2404 = vpop.f32.mrf.mxu0
  %v2405 = vadd.f32 %v2279, %v2404
  %v2406 = vpop.f32.mrf.mxu0
  %v2407 = vadd.f32 %v2283, %v2406
  %2408 = vdwg.mxu0
  %v2409 = vmul.f32 %v2371, 0.5
  %v2410 = vmul.f32 %v2373, 0.5
  %v2411 = vmul.f32 %v2375, 0.5
  %v2412 = vmul.f32 %v2377, 0.5
  %v2413 = vmul.f32 %v2381, 0.5
  %v2414 = vmul.f32 %v2383, 0.5
  %v2415 = vmul.f32 %v2385, 0.5
  %v2416 = vmul.f32 %v2387, 0.5
  %v2417 = vmul.f32 %v2391, 0.5
  %v2418 = vmul.f32 %v2393, 0.5
  %v2419 = vmul.f32 %v2395, 0.5
  %v2420 = vmul.f32 %v2397, 0.5
  %v2421 = vmul.f32 %v2401, 0.5
  %v2422 = vmul.f32 %v2403, 0.5
  %v2423 = vmul.f32 %v2405, 0.5
  %v2424 = vmul.f32 %v2407, 0.5
  %v2425 = vmul.f32 %v2371, %v2371
  %v2426 = vmul.f32 %v2373, %v2373
  %v2427 = vmul.f32 %v2375, %v2375
  %v2428 = vmul.f32 %v2377, %v2377
  %v2429 = vmul.f32 %v2381, %v2381
  %v2430 = vmul.f32 %v2383, %v2383
  %v2431 = vmul.f32 %v2385, %v2385
  %v2432 = vmul.f32 %v2387, %v2387
  %v2433 = vmul.f32 %v2391, %v2391
  %v2434 = vmul.f32 %v2393, %v2393
  %v2435 = vmul.f32 %v2395, %v2395
  %v2436 = vmul.f32 %v2397, %v2397
  %v2437 = vmul.f32 %v2401, %v2401
  %v2438 = vmul.f32 %v2403, %v2403
  %v2439 = vmul.f32 %v2405, %v2405
  %v2440 = vmul.f32 %v2407, %v2407
  %v2441 = vmul.f32 %v2371, %v2425
  %v2442 = vmul.f32 %v2373, %v2426
  %v2443 = vmul.f32 %v2375, %v2427
  %v2444 = vmul.f32 %v2377, %v2428
  %v2445 = vmul.f32 %v2381, %v2429
  %v2446 = vmul.f32 %v2383, %v2430
  %v2447 = vmul.f32 %v2385, %v2431
  %v2448 = vmul.f32 %v2387, %v2432
  %v2449 = vmul.f32 %v2391, %v2433
  %v2450 = vmul.f32 %v2393, %v2434
  %v2451 = vmul.f32 %v2395, %v2435
  %v2452 = vmul.f32 %v2397, %v2436
  %v2453 = vmul.f32 %v2401, %v2437
  %v2454 = vmul.f32 %v2403, %v2438
  %v2455 = vmul.f32 %v2405, %v2439
  %v2456 = vmul.f32 %v2407, %v2440
  %v2457 = vmul.f32 %v2441, 0.044715
  %v2458 = vmul.f32 %v2442, 0.044715
  %v2459 = vmul.f32 %v2443, 0.044715
  %v2460 = vmul.f32 %v2444, 0.044715
  %v2461 = vmul.f32 %v2445, 0.044715
  %v2462 = vmul.f32 %v2446, 0.044715
  %v2463 = vmul.f32 %v2447, 0.044715
  %v2464 = vmul.f32 %v2448, 0.044715
  %v2465 = vmul.f32 %v2449, 0.044715
  %v2466 = vmul.f32 %v2450, 0.044715
  %v2467 = vmul.f32 %v2451, 0.044715
  %v2468 = vmul.f32 %v2452, 0.044715
  %v2469 = vmul.f32 %v2453, 0.044715
  %v2470 = vmul.f32 %v2454, 0.044715
  %v2471 = vmul.f32 %v2455, 0.044715
  %v2472 = vmul.f32 %v2456, 0.044715
  %v2473 = vadd.f32 %v2371, %v2457
  %v2474 = vadd.f32 %v2373, %v2458
  %v2475 = vadd.f32 %v2375, %v2459
  %v2476 = vadd.f32 %v2377, %v2460
  %v2477 = vadd.f32 %v2381, %v2461
  %v2478 = vadd.f32 %v2383, %v2462
  %v2479 = vadd.f32 %v2385, %v2463
  %v2480 = vadd.f32 %v2387, %v2464
  %v2481 = vadd.f32 %v2391, %v2465
  %v2482 = vadd.f32 %v2393, %v2466
  %v2483 = vadd.f32 %v2395, %v2467
  %v2484 = vadd.f32 %v2397, %v2468
  %v2485 = vadd.f32 %v2401, %v2469
  %v2486 = vadd.f32 %v2403, %v2470
  %v2487 = vadd.f32 %v2405, %v2471
  %v2488 = vadd.f32 %v2407, %v2472
  %v2489 = vmul.f32 %v2473, 0.7978845
  %v2490 = vmul.f32 %v2474, 0.7978845
  %v2491 = vmul.f32 %v2475, 0.7978845
  %v2492 = vmul.f32 %v2476, 0.7978845
  %v2493 = vmul.f32 %v2477, 0.7978845
  %v2494 = vmul.f32 %v2478, 0.7978845
  %v2495 = vmul.f32 %v2479, 0.7978845
  %v2496 = vmul.f32 %v2480, 0.7978845
  %v2497 = vmul.f32 %v2481, 0.7978845
  %v2498 = vmul.f32 %v2482, 0.7978845
  %v2499 = vmul.f32 %v2483, 0.7978845
  %v2500 = vmul.f32 %v2484, 0.7978845
  %v2501 = vmul.f32 %v2485, 0.7978845
  %v2502 = vmul.f32 %v2486, 0.7978845
  %v2503 = vmul.f32 %v2487, 0.7978845
  %v2504 = vmul.f32 %v2488, 0.7978845
  %v2505 = vtanh.pop %v2489
  %v2506 = vtanh.pop %v2490
  %v2507 = vtanh.pop %v2491
  %v2508 = vtanh.pop %v2492
  %v2509 = vtanh.pop %v2493
  %v2510 = vtanh.pop %v2494
  %v2511 = vtanh.pop %v2495
  %v2512 = vtanh.pop %v2496
  %v2513 = vtanh.pop %v2497
  %v2514 = vtanh.pop %v2498
  %v2515 = vtanh.pop %v2499
  %v2516 = vtanh.pop %v2500
  %v2517 = vtanh.pop %v2501
  %v2518 = vtanh.pop %v2502
  %v2519 = vtanh.pop %v2503
  %v2520 = vtanh.pop %v2504
  %v2521 = vadd.f32 %v2505, 1.0
  %v2522 = vadd.f32 %v2506, 1.0
  %v2523 = vadd.f32 %v2507, 1.0
  %v2524 = vadd.f32 %v2508, 1.0
  %v2525 = vadd.f32 %v2509, 1.0
  %v2526 = vadd.f32 %v2510, 1.0
  %v2527 = vadd.f32 %v2511, 1.0
  %v2528 = vadd.f32 %v2512, 1.0
  %v2529 = vadd.f32 %v2513, 1.0
  %v2530 = vadd.f32 %v2514, 1.0
  %v2531 = vadd.f32 %v2515, 1.0
  %v2532 = vadd.f32 %v2516, 1.0
  %v2533 = vadd.f32 %v2517, 1.0
  %v2534 = vadd.f32 %v2518, 1.0
  %v2535 = vadd.f32 %v2519, 1.0
  %v2536 = vadd.f32 %v2520, 1.0
  %v2537 = vmul.f32 %v2409, %v2521
  %v2538 = vmul.f32 %v2410, %v2522
  %v2539 = vmul.f32 %v2411, %v2523
  %v2540 = vmul.f32 %v2412, %v2524
  %v2541 = vmul.f32 %v2413, %v2525
  %v2542 = vmul.f32 %v2414, %v2526
  %v2543 = vmul.f32 %v2415, %v2527
  %v2544 = vmul.f32 %v2416, %v2528
  %v2545 = vmul.f32 %v2417, %v2529
  %v2546 = vmul.f32 %v2418, %v2530
  %v2547 = vmul.f32 %v2419, %v2531
  %v2548 = vmul.f32 %v2420, %v2532
  %v2549 = vmul.f32 %v2421, %v2533
  %v2550 = vmul.f32 %v2422, %v2534
  %v2551 = vmul.f32 %v2423, %v2535
  %v2552 = vmul.f32 %v2424, %v2536
  %v2553 = vpack.c.bf16 %v2539, %v2537
  %v2554 = vpack.c.bf16 %v2540, %v2538
  %v2555 = vpack.c.bf16 %v2543, %v2541
  %v2556 = vpack.c.bf16 %v2544, %v2542
  %v2557 = vpack.c.bf16 %v2547, %v2545
  %v2558 = vpack.c.bf16 %v2548, %v2546
  %v2559 = vpack.c.bf16 %v2551, %v2549
  %v2560 = vpack.c.bf16 %v2552, %v2550
  %v2561 = vlaneseq
  %v2562 = vshrl.u32 %v2561, 7
  %v2563 = vsub.s32 0, %v2562
  %v2564 = vrot.slane %v339, %v2563
  %v2597 = vunpack.c.l.b16 %v356
  %v2598 = vunpack.c.l.b16 %v357
  %v2599 = vunpack.c.l.b16 %v358
  %v2600 = vunpack.c.l.b16 %v359
  %v2601 = vunpack.c.l.b16 %v360
  %v2602 = vunpack.c.l.b16 %v361
  %v2603 = vunpack.c.l.b16 %v362
  %v2604 = vunpack.c.l.b16 %v363
  %v2605 = vunpack.c.l.b16 %v364
  %v2606 = vunpack.c.l.b16 %v365
  %v2607 = vunpack.c.l.b16 %v366
  %v2608 = vunpack.c.l.b16 %v367
  %v2609 = vunpack.c.l.b16 %v368
  %v2610 = vunpack.c.l.b16 %v369
  %v2611 = vunpack.c.l.b16 %v370
  %v2612 = vunpack.c.l.b16 %v371
  %v2613 = vunpack.c.l.b16 %v372
  %v2614 = vunpack.c.l.b16 %v373
  %v2615 = vunpack.c.l.b16 %v374
  %v2616 = vunpack.c.l.b16 %v375
  %v2617 = vunpack.c.l.b16 %v376
  %v2618 = vunpack.c.l.b16 %v377
  %v2619 = vunpack.c.l.b16 %v378
  %v2620 = vunpack.c.l.b16 %v379
  %v2621 = vunpack.c.l.b16 %v380
  %v2622 = vunpack.c.l.b16 %v381
  %v2623 = vunpack.c.l.b16 %v382
  %v2624 = vunpack.c.l.b16 %v383
  %v2625 = vunpack.c.l.b16 %v384
  %v2626 = vunpack.c.l.b16 %v385
  %v2627 = vunpack.c.l.b16 %v386
  %v2628 = vunpack.c.l.b16 %v387
  %v2629 = vpack.c.b16 %v2598, %v2597
  %v2630 = vpack.c.b16 %v2600, %v2599
  %v2631 = vpack.c.b16 %v2602, %v2601
  %v2632 = vpack.c.b16 %v2604, %v2603
  %v2633 = vpack.c.b16 %v2606, %v2605
  %v2634 = vpack.c.b16 %v2608, %v2607
  %v2635 = vpack.c.b16 %v2610, %v2609
  %v2636 = vpack.c.b16 %v2612, %v2611
  %v2637 = vpack.c.b16 %v2614, %v2613
  %v2638 = vpack.c.b16 %v2616, %v2615
  %v2639 = vpack.c.b16 %v2618, %v2617
  %v2640 = vpack.c.b16 %v2620, %v2619
  %v2641 = vpack.c.b16 %v2622, %v2621
  %v2642 = vpack.c.b16 %v2624, %v2623
  %v2643 = vpack.c.b16 %v2626, %v2625
  %v2644 = vpack.c.b16 %v2628, %v2627
  %2661 = vmatprep.subr.bf16.mxu0 0
  %2662 = vmatpush1.bf16.msra.mxu0 %v2636
  %2663 = vmatprep.subr.bf16.mxu0 0
  %2664 = vmatpush1.bf16.msra.mxu0 %v2635
  %2665 = vmatprep.subr.bf16.mxu0 0
  %2666 = vmatpush1.bf16.msra.mxu0 %v2634
  %2667 = vmatprep.subr.bf16.mxu0 0
  %2668 = vmatpush1.bf16.msra.mxu0 %v2633
  %2669 = vmatprep.subr.bf16.mxu0 0
  %2670 = vmatpush1.bf16.msra.mxu0 %v2632
  %2671 = vmatprep.subr.bf16.mxu0 0
  %2672 = vmatpush1.bf16.msra.mxu0 %v2631
  %2673 = vmatprep.subr.bf16.mxu0 0
  %2674 = vmatpush1.bf16.msra.mxu0 %v2630
  %2675 = vmatprep.subr.bf16.mxu0 0
  %2676 = vmatpush1.bf16.msra.mxu0 %v2629
  %2677 = vmatprep.subr.bf16.mxu0 0
  %2678 = vmatpush2.bf16.msra.mxu0 %v2644
  %2679 = vmatprep.subr.bf16.mxu0 0
  %2680 = vmatpush2.bf16.msra.mxu0 %v2643
  %2681 = vmatprep.subr.bf16.mxu0 0
  %2682 = vmatpush2.bf16.msra.mxu0 %v2642
  %2683 = vmatprep.subr.bf16.mxu0 0
  %2684 = vmatpush2.bf16.msra.mxu0 %v2641
  %2685 = vmatprep.subr.bf16.mxu0 0
  %2686 = vmatpush2.bf16.msra.mxu0 %v2640
  %2687 = vmatprep.subr.bf16.mxu0 0
  %2688 = vmatpush2.bf16.msra.mxu0 %v2639
  %2689 = vmatprep.subr.bf16.mxu0 0
  %2690 = vmatpush2.bf16.msra.mxu0 %v2638
  %2691 = vmatprep.subr.bf16.mxu0 0
  %2692 = vmatpush2.bf16.msra.mxu0 %v2637
  %2693 = vmatprep.mubr.bf16.mxu0 %v2554
  %2694 = vmatmul.mubr.bf16.gmra.mxu0 %v2553
  %v2695 = vpop.f32.mrf.mxu0
  %v2696 = vadd.f32 %v2564, %v2695
  %v2697 = vpop.f32.mrf.mxu0
  %v2698 = vpop.f32.mrf.mxu0
  %v2699 = vadd.f32 %v2564, %v2698
  %v2700 = vpop.f32.mrf.mxu0
  %2701 = vmatprep.mubr.bf16.mxu0 %v2556
  %2702 = vmatmul.mubr.bf16.gmra.mxu0 %v2555
  %v2703 = vpop.f32.mrf.mxu0
  %v2704 = vadd.f32 %v2564, %v2703
  %v2705 = vpop.f32.mrf.mxu0
  %v2706 = vpop.f32.mrf.mxu0
  %v2707 = vadd.f32 %v2564, %v2706
  %v2708 = vpop.f32.mrf.mxu0
  %2709 = vmatprep.mubr.bf16.mxu0 %v2558
  %2710 = vmatmul.mubr.bf16.gmra.mxu0 %v2557
  %v2711 = vpop.f32.mrf.mxu0
  %v2712 = vadd.f32 %v2564, %v2711
  %v2713 = vpop.f32.mrf.mxu0
  %v2714 = vpop.f32.mrf.mxu0
  %v2715 = vadd.f32 %v2564, %v2714
  %v2716 = vpop.f32.mrf.mxu0
  %2717 = vmatprep.mubr.bf16.mxu0 %v2560
  %2718 = vmatmul.mubr.bf16.gmra.mxu0 %v2559
  %v2719 = vpop.f32.mrf.mxu0
  %v2720 = vadd.f32 %v2564, %v2719
  %v2721 = vpop.f32.mrf.mxu0
  %v2722 = vpop.f32.mrf.mxu0
  %v2723 = vadd.f32 %v2564, %v2722
  %v2724 = vpop.f32.mrf.mxu0
  %2725 = vdwg.mxu0
  %v2726 = vadd.f32 %v2136, %v2696
  %v2727 = vadd.f32 %v2137, %v2699
  %v2728 = vadd.f32 %v2138, %v2704
  %v2729 = vadd.f32 %v2139, %v2707
  %v2730 = vadd.f32 %v2140, %v2712
  %v2731 = vadd.f32 %v2141, %v2715
  %v2732 = vadd.f32 %v2142, %v2720
  %v2733 = vadd.f32 %v2143, %v2723
  %v2734 = vld [vmem:[%s1 + $0x50] sm:$0x1]
  %v2735 = vld [vmem:[%s1 + $0x51] sm:$0x1]
  %v2736 = vld [vmem:[%s1 + $0x52] sm:$0x1]
  %v2737 = vld [vmem:[%s1 + $0x53] sm:$0x1]
  %v2738 = vld [vmem:[%s1 + $0x54] sm:$0x1]
  %v2739 = vld [vmem:[%s1 + $0x55] sm:$0x1]
  %v2740 = vld [vmem:[%s1 + $0x56] sm:$0x1]
  %v2741 = vld [vmem:[%s1 + $0x57] sm:$0x1]
  %v2742 = vld [vmem:[%s1 + $0x58] sm:$0x1]
  %v2743 = vld [vmem:[%s1 + $0x59] sm:$0x1]
  %v2744 = vld [vmem:[%s1 + $0x5a] sm:$0x1]
  %v2745 = vld [vmem:[%s1 + $0x5b] sm:$0x1]
  %2747 = vrot.lane.b32.xlu0 %v2743, 64
  %v2748 = vpop.permute.xlu0 %2747
  %2751 = vrot.lane.b32.xlu0 %v2745, 64
  %v2752 = vpop.permute.xlu0 %2751
  %v2754 = vsel %vm22, %v2742, %v2748
  %v2755 = vsel %vm22, %v2744, %v2752
  %v2756 = vld [vmem:[%s1 + $0x5c] sm:$0x1]
  %v2757 = vld [vmem:[%s2 + $0x40] sm:$0xff]
  %v2758 = vld [vmem:[%s2 + $0x48] sm:$0xff]
  %v2759 = vld [vmem:[%s2 + $0x50] sm:$0xff]
  %v2760 = vld [vmem:[%s2 + $0x58] sm:$0xff]
  %v2761 = vld [vmem:[%s2 + $0x60] sm:$0xff]
  %v2762 = vld [vmem:[%s2 + $0x68] sm:$0xff]
  %v2763 = vld [vmem:[%s2 + $0x70] sm:$0xff]
  %v2764 = vld [vmem:[%s2 + $0x78] sm:$0xff]
  %v2765 = vld [vmem:[%s3 + $0xa8] sm:$0xf]
  %v2766 = vld [vmem:[%s3 + $0xac] sm:$0xf]
  %v2767 = vld [vmem:[%s3 + $0xb0] sm:$0xf]
  %v2768 = vld [vmem:[%s3 + $0xb4] sm:$0xf]
  %v2769 = vld [vmem:[%s3 + $0xb8] sm:$0xf]
  %v2770 = vld [vmem:[%s3 + $0xbc] sm:$0xf]
  %v2771 = vld [vmem:[%s3 + $0xc0] sm:$0xf]
  %v2772 = vld [vmem:[%s3 + $0xc4] sm:$0xf]
  %v2773 = vld [vmem:[%s3 + $0xc8] sm:$0xf]
  %v2774 = vld [vmem:[%s3 + $0xcc] sm:$0xf]
  %v2775 = vld [vmem:[%s3 + $0xd0] sm:$0xf]
  %v2776 = vld [vmem:[%s3 + $0xd4] sm:$0xf]
  %v2777 = vld [vmem:[%s3 + $0xd8] sm:$0xf]
  %v2778 = vld [vmem:[%s3 + $0xdc] sm:$0xf]
  %v2779 = vld [vmem:[%s3 + $0xe0] sm:$0xf]
  %v2780 = vld [vmem:[%s3 + $0xe4] sm:$0xf]
  %v2781 = vld [vmem:[%s3 + $0xe8] sm:$0xf]
  %v2782 = vld [vmem:[%s3 + $0xec] sm:$0xf]
  %v2783 = vld [vmem:[%s3 + $0xf0] sm:$0xf]
  %v2784 = vld [vmem:[%s3 + $0xf4] sm:$0xf]
  %v2785 = vld [vmem:[%s3 + $0xf8] sm:$0xf]
  %v2786 = vld [vmem:[%s3 + $0xfc] sm:$0xf]
  %v2787 = vld [vmem:[%s3 + $0x100] sm:$0xf]
  %v2788 = vld [vmem:[%s3 + $0x104] sm:$0xf]
  %v2789 = vld [vmem:[%s3 + $0x108] sm:$0xf]
  %v2790 = vld [vmem:[%s3 + $0x10c] sm:$0xf]
  %v2791 = vld [vmem:[%s3 + $0x110] sm:$0xf]
  %v2792 = vld [vmem:[%s3 + $0x114] sm:$0xf]
  %v2793 = vld [vmem:[%s3 + $0x118] sm:$0xf]
  %v2794 = vld [vmem:[%s3 + $0x11c] sm:$0xf]
  %v2795 = vld [vmem:[%s3 + $0x120] sm:$0xf]
  %v2796 = vld [vmem:[%s3 + $0x124] sm:$0xf]
  %v2797 = vld [vmem:[%s3 + $0x128] sm:$0xf]
  %v2798 = vld [vmem:[%s3 + $0x12c] sm:$0xf]
  %v2799 = vld [vmem:[%s3 + $0x130] sm:$0xf]
  %v2800 = vld [vmem:[%s3 + $0x134] sm:$0xf]
  %v2801 = vld [vmem:[%s3 + $0x138] sm:$0xf]
  %v2802 = vld [vmem:[%s3 + $0x13c] sm:$0xf]
  %v2803 = vld [vmem:[%s3 + $0x140] sm:$0xf]
  %v2804 = vld [vmem:[%s3 + $0x144] sm:$0xf]
  %v2805 = vld [vmem:[%s4 + $0x40] sm:$0xff]
  %v2806 = vld [vmem:[%s4 + $0x48] sm:$0xff]
  %v2807 = vld [vmem:[%s4 + $0x50] sm:$0xff]
  %v2808 = vld [vmem:[%s4 + $0x58] sm:$0xff]
  %v2809 = vld [vmem:[%s4 + $0x60] sm:$0xff]
  %v2810 = vld [vmem:[%s4 + $0x68] sm:$0xff]
  %v2811 = vld [vmem:[%s4 + $0x70] sm:$0xff]
  %v2812 = vld [vmem:[%s4 + $0x78] sm:$0xff]
  %v2813 = vsel %vm22, %v2726, 0.0
  %2814 = vadd.xlane.f32.xlu0 %v2813
  %v2815 = vpop.xlane.xlu0 %2814
  %v2816 = vsel %vm22, %v2727, 0.0
  %2817 = vadd.xlane.f32.xlu0 %v2816
  %v2818 = vpop.xlane.xlu0 %2817
  %v2819 = vsel %vm22, %v2728, 0.0
  %2820 = vadd.xlane.f32.xlu0 %v2819
  %v2821 = vpop.xlane.xlu0 %2820
  %v2822 = vsel %vm22, %v2729, 0.0
  %2823 = vadd.xlane.f32.xlu0 %v2822
  %v2824 = vpop.xlane.xlu0 %2823
  %v2825 = vsel %vm22, %v2730, 0.0
  %2826 = vadd.xlane.f32.xlu0 %v2825
  %v2827 = vpop.xlane.xlu0 %2826
  %v2828 = vsel %vm22, %v2731, 0.0
  %2829 = vadd.xlane.f32.xlu0 %v2828
  %v2830 = vpop.xlane.xlu0 %2829
  %v2831 = vsel %vm22, %v2732, 0.0
  %2832 = vadd.xlane.f32.xlu0 %v2831
  %v2833 = vpop.xlane.xlu0 %2832
  %v2834 = vsel %vm22, %v2733, 0.0
  %2835 = vadd.xlane.f32.xlu0 %v2834
  %v2836 = vpop.xlane.xlu0 %2835
  %v2837 = vmul.f32 %v2815, %v26
  %v2838 = vmul.f32 %v2818, %v26
  %v2839 = vmul.f32 %v2821, %v26
  %v2840 = vmul.f32 %v2824, %v26
  %v2841 = vmul.f32 %v2827, %v26
  %v2842 = vmul.f32 %v2830, %v26
  %v2843 = vmul.f32 %v2833, %v26
  %v2844 = vmul.f32 %v2836, %v26
  %v2845 = vsub.f32 %v2726, %v2837
  %v2846 = vsub.f32 %v2727, %v2838
  %v2847 = vsub.f32 %v2728, %v2839
  %v2848 = vsub.f32 %v2729, %v2840
  %v2849 = vsub.f32 %v2730, %v2841
  %v2850 = vsub.f32 %v2731, %v2842
  %v2851 = vsub.f32 %v2732, %v2843
  %v2852 = vsub.f32 %v2733, %v2844
  %v2853 = vmul.f32 %v2845, %v2845
  %v2854 = vmul.f32 %v2846, %v2846
  %v2855 = vmul.f32 %v2847, %v2847
  %v2856 = vmul.f32 %v2848, %v2848
  %v2857 = vmul.f32 %v2849, %v2849
  %v2858 = vmul.f32 %v2850, %v2850
  %v2859 = vmul.f32 %v2851, %v2851
  %v2860 = vmul.f32 %v2852, %v2852
  %v2861 = vsel %vm22, %v2853, 0.0
  %2862 = vadd.xlane.f32.xlu0 %v2861
  %v2863 = vpop.xlane.xlu0 %2862
  %v2864 = vsel %vm22, %v2854, 0.0
  %2865 = vadd.xlane.f32.xlu0 %v2864
  %v2866 = vpop.xlane.xlu0 %2865
  %v2867 = vsel %vm22, %v2855, 0.0
  %2868 = vadd.xlane.f32.xlu0 %v2867
  %v2869 = vpop.xlane.xlu0 %2868
  %v2870 = vsel %vm22, %v2856, 0.0
  %2871 = vadd.xlane.f32.xlu0 %v2870
  %v2872 = vpop.xlane.xlu0 %2871
  %v2873 = vsel %vm22, %v2857, 0.0
  %2874 = vadd.xlane.f32.xlu0 %v2873
  %v2875 = vpop.xlane.xlu0 %2874
  %v2876 = vsel %vm22, %v2858, 0.0
  %2877 = vadd.xlane.f32.xlu0 %v2876
  %v2878 = vpop.xlane.xlu0 %2877
  %v2879 = vsel %vm22, %v2859, 0.0
  %2880 = vadd.xlane.f32.xlu0 %v2879
  %v2881 = vpop.xlane.xlu0 %2880
  %v2882 = vsel %vm22, %v2860, 0.0
  %2883 = vadd.xlane.f32.xlu0 %v2882
  %v2884 = vpop.xlane.xlu0 %2883
  %v2885 = vmul.f32 %v2863, %v26
  %v2886 = vmul.f32 %v2866, %v26
  %v2887 = vmul.f32 %v2869, %v26
  %v2888 = vmul.f32 %v2872, %v26
  %v2889 = vmul.f32 %v2875, %v26
  %v2890 = vmul.f32 %v2878, %v26
  %v2891 = vmul.f32 %v2881, %v26
  %v2892 = vmul.f32 %v2884, %v26
  %v2893 = vadd.f32 %v2885, 1e-05
  %v2894 = vadd.f32 %v2886, 1e-05
  %v2895 = vadd.f32 %v2887, 1e-05
  %v2896 = vadd.f32 %v2888, 1e-05
  %v2897 = vadd.f32 %v2889, 1e-05
  %v2898 = vadd.f32 %v2890, 1e-05
  %v2899 = vadd.f32 %v2891, 1e-05
  %v2900 = vadd.f32 %v2892, 1e-05
  %v2901 = vrsqrt.pop %v2893
  %v2902 = vrsqrt.pop %v2894
  %v2903 = vrsqrt.pop %v2895
  %v2904 = vrsqrt.pop %v2896
  %v2905 = vrsqrt.pop %v2897
  %v2906 = vrsqrt.pop %v2898
  %v2907 = vrsqrt.pop %v2899
  %v2908 = vrsqrt.pop %v2900
  %v2909 = vmul.f32 %v2845, %v2901
  %v2910 = vmul.f32 %v2846, %v2902
  %v2911 = vmul.f32 %v2847, %v2903
  %v2912 = vmul.f32 %v2848, %v2904
  %v2913 = vmul.f32 %v2849, %v2905
  %v2914 = vmul.f32 %v2850, %v2906
  %v2915 = vmul.f32 %v2851, %v2907
  %v2916 = vmul.f32 %v2852, %v2908
  %v2917 = vlaneseq
  %v2918 = vshrl.u32 %v2917, 7
  %v2919 = vsub.s32 0, %v2918
  %v2920 = vrot.slane %v2734, %v2919
  %v2921 = vmul.f32 %v2909, %v2920
  %v2922 = vmul.f32 %v2910, %v2920
  %v2923 = vmul.f32 %v2911, %v2920
  %v2924 = vmul.f32 %v2912, %v2920
  %v2925 = vmul.f32 %v2913, %v2920
  %v2926 = vmul.f32 %v2914, %v2920
  %v2927 = vmul.f32 %v2915, %v2920
  %v2928 = vmul.f32 %v2916, %v2920
  %v2929 = vlaneseq
  %v2930 = vshrl.u32 %v2929, 7
  %v2931 = vsub.s32 0, %v2930
  %v2932 = vrot.slane %v2735, %v2931
  %v2933 = vadd.f32 %v2921, %v2932
  %v2934 = vadd.f32 %v2922, %v2932
  %v2935 = vadd.f32 %v2923, %v2932
  %v2936 = vadd.f32 %v2924, %v2932
  %v2937 = vadd.f32 %v2925, %v2932
  %v2938 = vadd.f32 %v2926, %v2932
  %v2939 = vadd.f32 %v2927, %v2932
  %v2940 = vadd.f32 %v2928, %v2932
  %v2941 = vpack.c.bf16 %v2934, %v2933
  %v2942 = vpack.c.bf16 %v2936, %v2935
  %v2943 = vpack.c.bf16 %v2938, %v2937
  %v2944 = vpack.c.bf16 %v2940, %v2939
  %v2953 = vunpack.c.l.b16 %v2757
  %v2954 = vunpack.c.h.b16 %v2757
  %v2955 = vunpack.c.l.b16 %v2758
  %v2956 = vunpack.c.h.b16 %v2758
  %v2957 = vunpack.c.l.b16 %v2759
  %v2958 = vunpack.c.h.b16 %v2759
  %v2959 = vunpack.c.l.b16 %v2760
  %v2960 = vunpack.c.h.b16 %v2760
  %v2961 = vunpack.c.l.b16 %v2761
  %v2962 = vunpack.c.h.b16 %v2761
  %v2963 = vunpack.c.l.b16 %v2762
  %v2964 = vunpack.c.h.b16 %v2762
  %v2965 = vunpack.c.l.b16 %v2763
  %v2966 = vunpack.c.h.b16 %v2763
  %v2967 = vunpack.c.l.b16 %v2764
  %v2968 = vunpack.c.h.b16 %v2764
  %v2969 = vpack.c.b16 %v2955, %v2953
  %v2970 = vpack.c.b16 %v2956, %v2954
  %v2971 = vpack.c.b16 %v2959, %v2957
  %v2972 = vpack.c.b16 %v2960, %v2958
  %v2973 = vpack.c.b16 %v2963, %v2961
  %v2974 = vpack.c.b16 %v2964, %v2962
  %v2975 = vpack.c.b16 %v2967, %v2965
  %v2976 = vpack.c.b16 %v2968, %v2966
  %v2986 = vsel %vm22, %v2941, 0
  %v2989 = vsel %vm22, %v2942, 0
  %v2992 = vsel %vm22, %v2943, 0
  %v2995 = vsel %vm22, %v2944, 0
  %2997 = vmatprep.subr.bf16.mxu0 0
  %2998 = vmatpush1.bf16.msra.mxu0 0
  %2999 = vmatprep.subr.bf16.mxu0 0
  %3000 = vmatpush1.bf16.msra.mxu0 0
  %3001 = vmatprep.subr.bf16.mxu0 0
  %3002 = vmatpush1.bf16.msra.mxu0 0
  %3003 = vmatprep.subr.bf16.mxu0 0
  %3004 = vmatpush1.bf16.msra.mxu0 0
  %3005 = vmatprep.subr.bf16.mxu0 %v2976
  %3006 = vmatpush1.bf16.msra.mxu0 %v2975
  %3007 = vmatprep.subr.bf16.mxu0 %v2974
  %3008 = vmatpush1.bf16.msra.mxu0 %v2973
  %3009 = vmatprep.subr.bf16.mxu0 %v2972
  %3010 = vmatpush1.bf16.msra.mxu0 %v2971
  %3011 = vmatprep.subr.bf16.mxu0 %v2970
  %3012 = vmatpush1.bf16.msra.mxu0 %v2969
  %3013 = vmatprep.subr.bf16.mxu0 0
  %3014 = vmatpush2.bf16.msra.mxu0 0
  %3015 = vmatprep.subr.bf16.mxu0 0
  %3016 = vmatpush2.bf16.msra.mxu0 0
  %3017 = vmatprep.subr.bf16.mxu0 0
  %3018 = vmatpush2.bf16.msra.mxu0 0
  %3019 = vmatprep.subr.bf16.mxu0 0
  %3020 = vmatpush2.bf16.msra.mxu0 0
  %3021 = vmatprep.subr.bf16.mxu0 0
  %3022 = vmatpush2.bf16.msra.mxu0 0
  %3023 = vmatprep.subr.bf16.mxu0 0
  %3024 = vmatpush2.bf16.msra.mxu0 0
  %3025 = vmatprep.subr.bf16.mxu0 0
  %3026 = vmatpush2.bf16.msra.mxu0 0
  %3027 = vmatprep.subr.bf16.mxu0 0
  %3028 = vmatpush2.bf16.msra.mxu0 0
  %3029 = vmatprep.mubr.bf16.mxu0 0
  %3030 = vmatmul.mubr.bf16.gmra.mxu0 %v2986
  %v3031 = vpop.f32.mrf.mxu0
  %v3032 = vadd.f32 0.0, %v3031
  %v3033 = vpop.f32.mrf.mxu0
  %v3034 = vadd.f32 0.0, %v3033
  %v3035 = vpop.f32.mrf.mxu0
  %v3036 = vadd.f32 0.0, %v3035
  %v3037 = vpop.f32.mrf.mxu0
  %v3038 = vadd.f32 0.0, %v3037
  %3039 = vmatprep.mubr.bf16.mxu0 0
  %3040 = vmatmul.mubr.bf16.gmra.mxu0 %v2989
  %v3041 = vpop.f32.mrf.mxu0
  %v3042 = vadd.f32 0.0, %v3041
  %v3043 = vpop.f32.mrf.mxu0
  %v3044 = vadd.f32 0.0, %v3043
  %v3045 = vpop.f32.mrf.mxu0
  %v3046 = vadd.f32 0.0, %v3045
  %v3047 = vpop.f32.mrf.mxu0
  %v3048 = vadd.f32 0.0, %v3047
  %3049 = vmatprep.mubr.bf16.mxu0 0
  %3050 = vmatmul.mubr.bf16.gmra.mxu0 %v2992
  %v3051 = vpop.f32.mrf.mxu0
  %v3052 = vadd.f32 0.0, %v3051
  %v3053 = vpop.f32.mrf.mxu0
  %v3054 = vadd.f32 0.0, %v3053
  %v3055 = vpop.f32.mrf.mxu0
  %v3056 = vadd.f32 0.0, %v3055
  %v3057 = vpop.f32.mrf.mxu0
  %v3058 = vadd.f32 0.0, %v3057
  %3059 = vmatprep.mubr.bf16.mxu0 0
  %3060 = vmatmul.mubr.bf16.gmra.mxu0 %v2995
  %v3061 = vpop.f32.mrf.mxu0
  %v3062 = vadd.f32 0.0, %v3061
  %v3063 = vpop.f32.mrf.mxu0
  %v3064 = vadd.f32 0.0, %v3063
  %v3065 = vpop.f32.mrf.mxu0
  %v3066 = vadd.f32 0.0, %v3065
  %v3067 = vpop.f32.mrf.mxu0
  %v3068 = vadd.f32 0.0, %v3067
  %3069 = vdwg.mxu0
  %v3070 = vlaneseq
  %v3071 = vshrl.u32 %v3070, 7
  %v3072 = vsub.s32 0, %v3071
  %v3073 = vrot.slane %v2736, %v3072
  %v3074 = vadd.f32 %v3032, %v3073
  %v3075 = vadd.f32 %v3036, %v3073
  %v3076 = vadd.f32 %v3042, %v3073
  %v3077 = vadd.f32 %v3046, %v3073
  %v3078 = vadd.f32 %v3052, %v3073
  %v3079 = vadd.f32 %v3056, %v3073
  %v3080 = vadd.f32 %v3062, %v3073
  %v3081 = vadd.f32 %v3066, %v3073
  %v3082 = vpack.c.bf16 %v3075, %v3074
  %v3083 = vpack.c.bf16 %v3077, %v3076
  %v3084 = vpack.c.bf16 %v3079, %v3078
  %v3085 = vpack.c.bf16 %v3081, %v3080
  %v3086 = vlaneseq
  %v3087 = vshrl.u32 %v3086, 7
  %v3088 = vsub.s32 0, %v3087
  %v3089 = vrot.slane %v2737, %v3088
  %3091 = vrot.lane.b32.xlu0 %v3089, 64
  %v3092 = vpop.permute.xlu0 %3091
  %v3094 = vadd.f32 %v3032, %v3092
  %v3095 = vadd.f32 %v3036, %v3092
  %v3096 = vadd.f32 %v3042, %v3092
  %v3097 = vadd.f32 %v3046, %v3092
  %v3098 = vadd.f32 %v3052, %v3092
  %v3099 = vadd.f32 %v3056, %v3092
  %v3100 = vadd.f32 %v3062, %v3092
  %v3101 = vadd.f32 %v3066, %v3092
  %v3102 = vpack.c.bf16 %v3095, %v3094
  %v3103 = vpack.c.bf16 %v3097, %v3096
  %v3104 = vpack.c.bf16 %v3099, %v3098
  %v3105 = vpack.c.bf16 %v3101, %v3100
  %v3106 = vlaneseq
  %v3107 = vshrl.u32 %v3106, 7
  %v3108 = vsub.s32 0, %v3107
  %v3109 = vrot.slane %v2738, %v3108
  %v3110 = vadd.f32 %v3034, %v3109
  %v3111 = vadd.f32 %v3038, %v3109
  %v3112 = vadd.f32 %v3044, %v3109
  %v3113 = vadd.f32 %v3048, %v3109
  %v3114 = vadd.f32 %v3054, %v3109
  %v3115 = vadd.f32 %v3058, %v3109
  %v3116 = vadd.f32 %v3064, %v3109
  %v3117 = vadd.f32 %v3068, %v3109
  %v3118 = vpack.c.bf16 %v3111, %v3110
  %v3119 = vpack.c.bf16 %v3113, %v3112
  %v3120 = vpack.c.bf16 %v3115, %v3114
  %v3121 = vpack.c.bf16 %v3117, %v3116
  %3126 = vrot.lane.b32.xlu0 %v3102, 64
  %v3127 = vpop.permute.xlu0 %3126
  %3128 = vrot.lane.b32.xlu0 %v3103, 64
  %v3129 = vpop.permute.xlu0 %3128
  %3130 = vrot.lane.b32.xlu0 %v3104, 64
  %v3131 = vpop.permute.xlu0 %3130
  %3132 = vrot.lane.b32.xlu0 %v3105, 64
  %v3133 = vpop.permute.xlu0 %3132
  %v3135 = vsel %vm92, %v3082, 0
  %v3138 = vsel %vm92, %v3083, 0
  %v3141 = vsel %vm92, %v3084, 0
  %v3144 = vsel %vm92, %v3085, 0
  %v3147 = vsel %vm92, %v3127, 0
  %v3150 = vsel %vm92, %v3129, 0
  %v3153 = vsel %vm92, %v3131, 0
  %v3156 = vsel %vm92, %v3133, 0
  %3158 = vmatprep.subr.bf16.mxu0 0
  %3159 = vmatpush1.bf16.xpose.msra.mxu0 0
  %3160 = vmatprep.subr.bf16.mxu0 0
  %3161 = vmatpush1.bf16.xpose.msra.mxu0 0
  %3162 = vmatprep.subr.bf16.mxu0 0
  %3163 = vmatpush1.bf16.xpose.msra.mxu0 0
  %3164 = vmatprep.subr.bf16.mxu0 0
  %3165 = vmatpush1.bf16.xpose.msra.mxu0 0
  %3166 = vmatprep.subr.bf16.mxu0 0
  %3167 = vmatpush1.bf16.xpose.msra.mxu0 %v3156
  %3168 = vmatprep.subr.bf16.mxu0 0
  %3169 = vmatpush1.bf16.xpose.msra.mxu0 %v3153
  %3170 = vmatprep.subr.bf16.mxu0 0
  %3171 = vmatpush1.bf16.xpose.msra.mxu0 %v3150
  %3172 = vmatprep.subr.bf16.mxu0 0
  %3173 = vmatpush1.bf16.xpose.msra.mxu0 %v3147
  %3174 = vmatprep.subr.bf16.mxu0 0
  %3175 = vmatpush2.bf16.xpose.msra.mxu0 0
  %3176 = vmatprep.subr.bf16.mxu0 0
  %3177 = vmatpush2.bf16.xpose.msra.mxu0 0
  %3178 = vmatprep.subr.bf16.mxu0 0
  %3179 = vmatpush2.bf16.xpose.msra.mxu0 0
  %3180 = vmatprep.subr.bf16.mxu0 0
  %3181 = vmatpush2.bf16.xpose.msra.mxu0 0
  %3182 = vmatprep.subr.bf16.mxu0 0
  %3183 = vmatpush2.bf16.xpose.msra.mxu0 0
  %3184 = vmatprep.subr.bf16.mxu0 0
  %3185 = vmatpush2.bf16.xpose.msra.mxu0 0
  %3186 = vmatprep.subr.bf16.mxu0 0
  %3187 = vmatpush2.bf16.xpose.msra.mxu0 0
  %3188 = vmatprep.subr.bf16.mxu0 0
  %3189 = vmatpush2.bf16.xpose.msra.mxu0 0
  %3190 = vmatprep.mubr.bf16.mxu0 0
  %3191 = vmatmul.mubr.bf16.gmra.mxu0 %v3135
  %v3192 = vpop.f32.mrf.mxu0
  %v3193 = vadd.f32 0.0, %v3192
  %v3194 = vpop.f32.mrf.mxu0
  %v3195 = vpop.f32.mrf.mxu0
  %v3196 = vadd.f32 0.0, %v3195
  %v3197 = vpop.f32.mrf.mxu0
  %3198 = vmatprep.mubr.bf16.mxu0 0
  %3199 = vmatmul.mubr.bf16.gmra.mxu0 %v3138
  %v3200 = vpop.f32.mrf.mxu0
  %v3201 = vadd.f32 0.0, %v3200
  %v3202 = vpop.f32.mrf.mxu0
  %v3203 = vpop.f32.mrf.mxu0
  %v3204 = vadd.f32 0.0, %v3203
  %v3205 = vpop.f32.mrf.mxu0
  %3206 = vmatprep.mubr.bf16.mxu0 0
  %3207 = vmatmul.mubr.bf16.gmra.mxu0 %v3141
  %v3208 = vpop.f32.mrf.mxu0
  %v3209 = vadd.f32 0.0, %v3208
  %v3210 = vpop.f32.mrf.mxu0
  %v3211 = vpop.f32.mrf.mxu0
  %v3212 = vadd.f32 0.0, %v3211
  %v3213 = vpop.f32.mrf.mxu0
  %3214 = vmatprep.mubr.bf16.mxu0 0
  %3215 = vmatmul.mubr.bf16.gmra.mxu0 %v3144
  %v3216 = vpop.f32.mrf.mxu0
  %v3217 = vadd.f32 0.0, %v3216
  %v3218 = vpop.f32.mrf.mxu0
  %v3219 = vpop.f32.mrf.mxu0
  %v3220 = vadd.f32 0.0, %v3219
  %v3221 = vpop.f32.mrf.mxu0
  %3222 = vdwg.mxu0
  %v3223 = vmul.f32 %v3193, 0.25
  %v3224 = vmul.f32 %v3196, 0.25
  %v3225 = vmul.f32 %v3201, 0.25
  %v3226 = vmul.f32 %v3204, 0.25
  %v3227 = vmul.f32 %v3209, 0.25
  %v3228 = vmul.f32 %v3212, 0.25
  %v3229 = vmul.f32 %v3217, 0.25
  %v3230 = vmul.f32 %v3220, 0.25
  %v3231 = vadd.f32 %v3223, %v309
  %v3232 = vadd.f32 %v3224, %v310
  %v3233 = vadd.f32 %v3225, %v311
  %v3234 = vadd.f32 %v3226, %v312
  %v3235 = vadd.f32 %v3227, %v313
  %v3236 = vadd.f32 %v3228, %v314
  %v3237 = vadd.f32 %v3229, %v315
  %v3238 = vadd.f32 %v3230, %v316
  %v3239 = vsel %vm22, %v3231, -inf
  %3240 = vmax.xlane.f32.xlu0 %v3239
  %v3241 = vpop.xlane.xlu0 %3240
  %v3242 = vsel %vm22, %v3232, -inf
  %3243 = vmax.xlane.f32.xlu0 %v3242
  %v3244 = vpop.xlane.xlu0 %3243
  %v3245 = vsel %vm22, %v3233, -inf
  %3246 = vmax.xlane.f32.xlu0 %v3245
  %v3247 = vpop.xlane.xlu0 %3246
  %v3248 = vsel %vm22, %v3234, -inf
  %3249 = vmax.xlane.f32.xlu0 %v3248
  %v3250 = vpop.xlane.xlu0 %3249
  %v3251 = vsel %vm22, %v3235, -inf
  %3252 = vmax.xlane.f32.xlu0 %v3251
  %v3253 = vpop.xlane.xlu0 %3252
  %v3254 = vsel %vm22, %v3236, -inf
  %3255 = vmax.xlane.f32.xlu0 %v3254
  %v3256 = vpop.xlane.xlu0 %3255
  %v3257 = vsel %vm22, %v3237, -inf
  %3258 = vmax.xlane.f32.xlu0 %v3257
  %v3259 = vpop.xlane.xlu0 %3258
  %v3260 = vsel %vm22, %v3238, -inf
  %3261 = vmax.xlane.f32.xlu0 %v3260
  %v3262 = vpop.xlane.xlu0 %3261
  %v3263 = vsub.f32 %v3231, %v3241
  %v3264 = vsub.f32 %v3232, %v3244
  %v3265 = vsub.f32 %v3233, %v3247
  %v3266 = vsub.f32 %v3234, %v3250
  %v3267 = vsub.f32 %v3235, %v3253
  %v3268 = vsub.f32 %v3236, %v3256
  %v3269 = vsub.f32 %v3237, %v3259
  %v3270 = vsub.f32 %v3238, %v3262
  %v3271 = vmul.f32 %v3263, 1.442695
  %v3272 = vpow.pop %v3271
  %v3273 = vmul.f32 %v3264, 1.442695
  %v3274 = vpow.pop %v3273
  %v3275 = vmul.f32 %v3265, 1.442695
  %v3276 = vpow.pop %v3275
  %v3277 = vmul.f32 %v3266, 1.442695
  %v3278 = vpow.pop %v3277
  %v3279 = vmul.f32 %v3267, 1.442695
  %v3280 = vpow.pop %v3279
  %v3281 = vmul.f32 %v3268, 1.442695
  %v3282 = vpow.pop %v3281
  %v3283 = vmul.f32 %v3269, 1.442695
  %v3284 = vpow.pop %v3283
  %v3285 = vmul.f32 %v3270, 1.442695
  %v3286 = vpow.pop %v3285
  %v3287 = vsel %vm22, %v3272, 0.0
  %3288 = vadd.xlane.f32.xlu0 %v3287
  %v3289 = vpop.xlane.xlu0 %3288
  %v3290 = vsel %vm22, %v3274, 0.0
  %3291 = vadd.xlane.f32.xlu0 %v3290
  %v3292 = vpop.xlane.xlu0 %3291
  %v3293 = vsel %vm22, %v3276, 0.0
  %3294 = vadd.xlane.f32.xlu0 %v3293
  %v3295 = vpop.xlane.xlu0 %3294
  %v3296 = vsel %vm22, %v3278, 0.0
  %3297 = vadd.xlane.f32.xlu0 %v3296
  %v3298 = vpop.xlane.xlu0 %3297
  %v3299 = vsel %vm22, %v3280, 0.0
  %3300 = vadd.xlane.f32.xlu0 %v3299
  %v3301 = vpop.xlane.xlu0 %3300
  %v3302 = vsel %vm22, %v3282, 0.0
  %3303 = vadd.xlane.f32.xlu0 %v3302
  %v3304 = vpop.xlane.xlu0 %3303
  %v3305 = vsel %vm22, %v3284, 0.0
  %3306 = vadd.xlane.f32.xlu0 %v3305
  %v3307 = vpop.xlane.xlu0 %3306
  %v3308 = vsel %vm22, %v3286, 0.0
  %3309 = vadd.xlane.f32.xlu0 %v3308
  %v3310 = vpop.xlane.xlu0 %3309
  %v3311 = vrcp.pop %v3289
  %v3312 = vrcp.pop %v3292
  %v3313 = vrcp.pop %v3295
  %v3314 = vrcp.pop %v3298
  %v3315 = vrcp.pop %v3301
  %v3316 = vrcp.pop %v3304
  %v3317 = vrcp.pop %v3307
  %v3318 = vrcp.pop %v3310
  %v3319 = vmul.f32 %v3272, %v3311
  %v3320 = vmul.f32 %v3274, %v3312
  %v3321 = vmul.f32 %v3276, %v3313
  %v3322 = vmul.f32 %v3278, %v3314
  %v3323 = vmul.f32 %v3280, %v3315
  %v3324 = vmul.f32 %v3282, %v3316
  %v3325 = vmul.f32 %v3284, %v3317
  %v3326 = vmul.f32 %v3286, %v3318
  %v3327 = vpack.c.bf16 %v3320, %v3319
  %v3328 = vpack.c.bf16 %v3322, %v3321
  %v3329 = vpack.c.bf16 %v3324, %v3323
  %v3330 = vpack.c.bf16 %v3326, %v3325
  %v3332 = vsel %vm22, %v3327, 0
  %v3335 = vsel %vm22, %v3328, 0
  %v3338 = vsel %vm22, %v3329, 0
  %v3341 = vsel %vm22, %v3330, 0
  %3343 = vmatprep.subr.bf16.mxu0 0
  %3344 = vmatpush1.bf16.msra.mxu0 0
  %3345 = vmatprep.subr.bf16.mxu0 0
  %3346 = vmatpush1.bf16.msra.mxu0 0
  %3347 = vmatprep.subr.bf16.mxu0 0
  %3348 = vmatpush1.bf16.msra.mxu0 0
  %3349 = vmatprep.subr.bf16.mxu0 0
  %3350 = vmatpush1.bf16.msra.mxu0 0
  %3351 = vmatprep.subr.bf16.mxu0 0
  %3352 = vmatpush1.bf16.msra.mxu0 %v3121
  %3353 = vmatprep.subr.bf16.mxu0 0
  %3354 = vmatpush1.bf16.msra.mxu0 %v3120
  %3355 = vmatprep.subr.bf16.mxu0 0
  %3356 = vmatpush1.bf16.msra.mxu0 %v3119
  %3357 = vmatprep.subr.bf16.mxu0 0
  %3358 = vmatpush1.bf16.msra.mxu0 %v3118
  %3359 = vmatprep.subr.bf16.mxu0 0
  %3360 = vmatpush2.bf16.msra.mxu0 0
  %3361 = vmatprep.subr.bf16.mxu0 0
  %3362 = vmatpush2.bf16.msra.mxu0 0
  %3363 = vmatprep.subr.bf16.mxu0 0
  %3364 = vmatpush2.bf16.msra.mxu0 0
  %3365 = vmatprep.subr.bf16.mxu0 0
  %3366 = vmatpush2.bf16.msra.mxu0 0
  %3367 = vmatprep.subr.bf16.mxu0 0
  %3368 = vmatpush2.bf16.msra.mxu0 0
  %3369 = vmatprep.subr.bf16.mxu0 0
  %3370 = vmatpush2.bf16.msra.mxu0 0
  %3371 = vmatprep.subr.bf16.mxu0 0
  %3372 = vmatpush2.bf16.msra.mxu0 0
  %3373 = vmatprep.subr.bf16.mxu0 0
  %3374 = vmatpush2.bf16.msra.mxu0 0
  %3375 = vmatprep.mubr.bf16.mxu0 0
  %3376 = vmatmul.mubr.bf16.gmra.mxu0 %v3332
  %v3377 = vpop.f32.mrf.mxu0
  %v3378 = vadd.f32 0.0, %v3377
  %v3379 = vpop.f32.mrf.mxu0
  %v3380 = vpop.f32.mrf.mxu0
  %v3381 = vadd.f32 0.0, %v3380
  %v3382 = vpop.f32.mrf.mxu0
  %3383 = vmatprep.mubr.bf16.mxu0 0
  %3384 = vmatmul.mubr.bf16.gmra.mxu0 %v3335
  %v3385 = vpop.f32.mrf.mxu0
  %v3386 = vadd.f32 0.0, %v3385
  %v3387 = vpop.f32.mrf.mxu0
  %v3388 = vpop.f32.mrf.mxu0
  %v3389 = vadd.f32 0.0, %v3388
  %v3390 = vpop.f32.mrf.mxu0
  %3391 = vmatprep.mubr.bf16.mxu0 0
  %3392 = vmatmul.mubr.bf16.gmra.mxu0 %v3338
  %v3393 = vpop.f32.mrf.mxu0
  %v3394 = vadd.f32 0.0, %v3393
  %v3395 = vpop.f32.mrf.mxu0
  %v3396 = vpop.f32.mrf.mxu0
  %v3397 = vadd.f32 0.0, %v3396
  %v3398 = vpop.f32.mrf.mxu0
  %3399 = vmatprep.mubr.bf16.mxu0 0
  %3400 = vmatmul.mubr.bf16.gmra.mxu0 %v3341
  %v3401 = vpop.f32.mrf.mxu0
  %v3402 = vadd.f32 0.0, %v3401
  %v3403 = vpop.f32.mrf.mxu0
  %v3404 = vpop.f32.mrf.mxu0
  %v3405 = vadd.f32 0.0, %v3404
  %v3406 = vpop.f32.mrf.mxu0
  %3407 = vdwg.mxu0
  %3412 = vrot.lane.b32.xlu0 %v3082, 112
  %v3413 = vpop.permute.xlu0 %3412
  %3414 = vrot.lane.b32.xlu0 %v3083, 112
  %v3415 = vpop.permute.xlu0 %3414
  %3416 = vrot.lane.b32.xlu0 %v3084, 112
  %v3417 = vpop.permute.xlu0 %3416
  %3418 = vrot.lane.b32.xlu0 %v3085, 112
  %v3419 = vpop.permute.xlu0 %3418
  %3420 = vrot.lane.b32.xlu0 %v3102, 48
  %v3421 = vpop.permute.xlu0 %3420
  %3422 = vrot.lane.b32.xlu0 %v3103, 48
  %v3423 = vpop.permute.xlu0 %3422
  %3424 = vrot.lane.b32.xlu0 %v3104, 48
  %v3425 = vpop.permute.xlu0 %3424
  %3426 = vrot.lane.b32.xlu0 %v3105, 48
  %v3427 = vpop.permute.xlu0 %3426
  %v3429 = vsel %vm92, %v3413, 0
  %v3432 = vsel %vm92, %v3415, 0
  %v3435 = vsel %vm92, %v3417, 0
  %v3438 = vsel %vm92, %v3419, 0
  %v3441 = vsel %vm92, %v3421, 0
  %v3444 = vsel %vm92, %v3423, 0
  %v3447 = vsel %vm92, %v3425, 0
  %v3450 = vsel %vm92, %v3427, 0
  %3452 = vmatprep.subr.bf16.mxu0 0
  %3453 = vmatpush1.bf16.xpose.msra.mxu0 0
  %3454 = vmatprep.subr.bf16.mxu0 0
  %3455 = vmatpush1.bf16.xpose.msra.mxu0 0
  %3456 = vmatprep.subr.bf16.mxu0 0
  %3457 = vmatpush1.bf16.xpose.msra.mxu0 0
  %3458 = vmatprep.subr.bf16.mxu0 0
  %3459 = vmatpush1.bf16.xpose.msra.mxu0 0
  %3460 = vmatprep.subr.bf16.mxu0 0
  %3461 = vmatpush1.bf16.xpose.msra.mxu0 %v3450
  %3462 = vmatprep.subr.bf16.mxu0 0
  %3463 = vmatpush1.bf16.xpose.msra.mxu0 %v3447
  %3464 = vmatprep.subr.bf16.mxu0 0
  %3465 = vmatpush1.bf16.xpose.msra.mxu0 %v3444
  %3466 = vmatprep.subr.bf16.mxu0 0
  %3467 = vmatpush1.bf16.xpose.msra.mxu0 %v3441
  %3468 = vmatprep.subr.bf16.mxu0 0
  %3469 = vmatpush2.bf16.xpose.msra.mxu0 0
  %3470 = vmatprep.subr.bf16.mxu0 0
  %3471 = vmatpush2.bf16.xpose.msra.mxu0 0
  %3472 = vmatprep.subr.bf16.mxu0 0
  %3473 = vmatpush2.bf16.xpose.msra.mxu0 0
  %3474 = vmatprep.subr.bf16.mxu0 0
  %3475 = vmatpush2.bf16.xpose.msra.mxu0 0
  %3476 = vmatprep.subr.bf16.mxu0 0
  %3477 = vmatpush2.bf16.xpose.msra.mxu0 0
  %3478 = vmatprep.subr.bf16.mxu0 0
  %3479 = vmatpush2.bf16.xpose.msra.mxu0 0
  %3480 = vmatprep.subr.bf16.mxu0 0
  %3481 = vmatpush2.bf16.xpose.msra.mxu0 0
  %3482 = vmatprep.subr.bf16.mxu0 0
  %3483 = vmatpush2.bf16.xpose.msra.mxu0 0
  %3484 = vmatprep.mubr.bf16.mxu0 0
  %3485 = vmatmul.mubr.bf16.gmra.mxu0 %v3429
  %v3486 = vpop.f32.mrf.mxu0
  %v3487 = vadd.f32 0.0, %v3486
  %v3488 = vpop.f32.mrf.mxu0
  %v3489 = vpop.f32.mrf.mxu0
  %v3490 = vadd.f32 0.0, %v3489
  %v3491 = vpop.f32.mrf.mxu0
  %3492 = vmatprep.mubr.bf16.mxu0 0
  %3493 = vmatmul.mubr.bf16.gmra.mxu0 %v3432
  %v3494 = vpop.f32.mrf.mxu0
  %v3495 = vadd.f32 0.0, %v3494
  %v3496 = vpop.f32.mrf.mxu0
  %v3497 = vpop.f32.mrf.mxu0
  %v3498 = vadd.f32 0.0, %v3497
  %v3499 = vpop.f32.mrf.mxu0
  %3500 = vmatprep.mubr.bf16.mxu0 0
  %3501 = vmatmul.mubr.bf16.gmra.mxu0 %v3435
  %v3502 = vpop.f32.mrf.mxu0
  %v3503 = vadd.f32 0.0, %v3502
  %v3504 = vpop.f32.mrf.mxu0
  %v3505 = vpop.f32.mrf.mxu0
  %v3506 = vadd.f32 0.0, %v3505
  %v3507 = vpop.f32.mrf.mxu0
  %3508 = vmatprep.mubr.bf16.mxu0 0
  %3509 = vmatmul.mubr.bf16.gmra.mxu0 %v3438
  %v3510 = vpop.f32.mrf.mxu0
  %v3511 = vadd.f32 0.0, %v3510
  %v3512 = vpop.f32.mrf.mxu0
  %v3513 = vpop.f32.mrf.mxu0
  %v3514 = vadd.f32 0.0, %v3513
  %v3515 = vpop.f32.mrf.mxu0
  %3516 = vdwg.mxu0
  %v3517 = vmul.f32 %v3487, 0.25
  %v3518 = vmul.f32 %v3490, 0.25
  %v3519 = vmul.f32 %v3495, 0.25
  %v3520 = vmul.f32 %v3498, 0.25
  %v3521 = vmul.f32 %v3503, 0.25
  %v3522 = vmul.f32 %v3506, 0.25
  %v3523 = vmul.f32 %v3511, 0.25
  %v3524 = vmul.f32 %v3514, 0.25
  %v3525 = vadd.f32 %v3517, %v309
  %v3526 = vadd.f32 %v3518, %v310
  %v3527 = vadd.f32 %v3519, %v311
  %v3528 = vadd.f32 %v3520, %v312
  %v3529 = vadd.f32 %v3521, %v313
  %v3530 = vadd.f32 %v3522, %v314
  %v3531 = vadd.f32 %v3523, %v315
  %v3532 = vadd.f32 %v3524, %v316
  %v3533 = vsel %vm22, %v3525, -inf
  %3534 = vmax.xlane.f32.xlu0 %v3533
  %v3535 = vpop.xlane.xlu0 %3534
  %v3536 = vsel %vm22, %v3526, -inf
  %3537 = vmax.xlane.f32.xlu0 %v3536
  %v3538 = vpop.xlane.xlu0 %3537
  %v3539 = vsel %vm22, %v3527, -inf
  %3540 = vmax.xlane.f32.xlu0 %v3539
  %v3541 = vpop.xlane.xlu0 %3540
  %v3542 = vsel %vm22, %v3528, -inf
  %3543 = vmax.xlane.f32.xlu0 %v3542
  %v3544 = vpop.xlane.xlu0 %3543
  %v3545 = vsel %vm22, %v3529, -inf
  %3546 = vmax.xlane.f32.xlu0 %v3545
  %v3547 = vpop.xlane.xlu0 %3546
  %v3548 = vsel %vm22, %v3530, -inf
  %3549 = vmax.xlane.f32.xlu0 %v3548
  %v3550 = vpop.xlane.xlu0 %3549
  %v3551 = vsel %vm22, %v3531, -inf
  %3552 = vmax.xlane.f32.xlu0 %v3551
  %v3553 = vpop.xlane.xlu0 %3552
  %v3554 = vsel %vm22, %v3532, -inf
  %3555 = vmax.xlane.f32.xlu0 %v3554
  %v3556 = vpop.xlane.xlu0 %3555
  %v3557 = vsub.f32 %v3525, %v3535
  %v3558 = vsub.f32 %v3526, %v3538
  %v3559 = vsub.f32 %v3527, %v3541
  %v3560 = vsub.f32 %v3528, %v3544
  %v3561 = vsub.f32 %v3529, %v3547
  %v3562 = vsub.f32 %v3530, %v3550
  %v3563 = vsub.f32 %v3531, %v3553
  %v3564 = vsub.f32 %v3532, %v3556
  %v3565 = vmul.f32 %v3557, 1.442695
  %v3566 = vpow.pop %v3565
  %v3567 = vmul.f32 %v3558, 1.442695
  %v3568 = vpow.pop %v3567
  %v3569 = vmul.f32 %v3559, 1.442695
  %v3570 = vpow.pop %v3569
  %v3571 = vmul.f32 %v3560, 1.442695
  %v3572 = vpow.pop %v3571
  %v3573 = vmul.f32 %v3561, 1.442695
  %v3574 = vpow.pop %v3573
  %v3575 = vmul.f32 %v3562, 1.442695
  %v3576 = vpow.pop %v3575
  %v3577 = vmul.f32 %v3563, 1.442695
  %v3578 = vpow.pop %v3577
  %v3579 = vmul.f32 %v3564, 1.442695
  %v3580 = vpow.pop %v3579
  %v3581 = vsel %vm22, %v3566, 0.0
  %3582 = vadd.xlane.f32.xlu0 %v3581
  %v3583 = vpop.xlane.xlu0 %3582
  %v3584 = vsel %vm22, %v3568, 0.0
  %3585 = vadd.xlane.f32.xlu0 %v3584
  %v3586 = vpop.xlane.xlu0 %3585
  %v3587 = vsel %vm22, %v3570, 0.0
  %3588 = vadd.xlane.f32.xlu0 %v3587
  %v3589 = vpop.xlane.xlu0 %3588
  %v3590 = vsel %vm22, %v3572, 0.0
  %3591 = vadd.xlane.f32.xlu0 %v3590
  %v3592 = vpop.xlane.xlu0 %3591
  %v3593 = vsel %vm22, %v3574, 0.0
  %3594 = vadd.xlane.f32.xlu0 %v3593
  %v3595 = vpop.xlane.xlu0 %3594
  %v3596 = vsel %vm22, %v3576, 0.0
  %3597 = vadd.xlane.f32.xlu0 %v3596
  %v3598 = vpop.xlane.xlu0 %3597
  %v3599 = vsel %vm22, %v3578, 0.0
  %3600 = vadd.xlane.f32.xlu0 %v3599
  %v3601 = vpop.xlane.xlu0 %3600
  %v3602 = vsel %vm22, %v3580, 0.0
  %3603 = vadd.xlane.f32.xlu0 %v3602
  %v3604 = vpop.xlane.xlu0 %3603
  %v3605 = vrcp.pop %v3583
  %v3606 = vrcp.pop %v3586
  %v3607 = vrcp.pop %v3589
  %v3608 = vrcp.pop %v3592
  %v3609 = vrcp.pop %v3595
  %v3610 = vrcp.pop %v3598
  %v3611 = vrcp.pop %v3601
  %v3612 = vrcp.pop %v3604
  %v3613 = vmul.f32 %v3566, %v3605
  %v3614 = vmul.f32 %v3568, %v3606
  %v3615 = vmul.f32 %v3570, %v3607
  %v3616 = vmul.f32 %v3572, %v3608
  %v3617 = vmul.f32 %v3574, %v3609
  %v3618 = vmul.f32 %v3576, %v3610
  %v3619 = vmul.f32 %v3578, %v3611
  %v3620 = vmul.f32 %v3580, %v3612
  %v3621 = vpack.c.bf16 %v3614, %v3613
  %v3622 = vpack.c.bf16 %v3616, %v3615
  %v3623 = vpack.c.bf16 %v3618, %v3617
  %v3624 = vpack.c.bf16 %v3620, %v3619
  %3629 = vrot.lane.b32.xlu0 %v3118, 112
  %v3630 = vpop.permute.xlu0 %3629
  %3631 = vrot.lane.b32.xlu0 %v3119, 112
  %v3632 = vpop.permute.xlu0 %3631
  %3633 = vrot.lane.b32.xlu0 %v3120, 112
  %v3634 = vpop.permute.xlu0 %3633
  %3635 = vrot.lane.b32.xlu0 %v3121, 112
  %v3636 = vpop.permute.xlu0 %3635
  %v3642 = vsel %vm22, %v3621, 0
  %v3645 = vsel %vm22, %v3622, 0
  %v3648 = vsel %vm22, %v3623, 0
  %v3651 = vsel %vm22, %v3624, 0
  %3653 = vmatprep.subr.bf16.mxu0 0
  %3654 = vmatpush1.bf16.msra.mxu0 0
  %3655 = vmatprep.subr.bf16.mxu0 0
  %3656 = vmatpush1.bf16.msra.mxu0 0
  %3657 = vmatprep.subr.bf16.mxu0 0
  %3658 = vmatpush1.bf16.msra.mxu0 0
  %3659 = vmatprep.subr.bf16.mxu0 0
  %3660 = vmatpush1.bf16.msra.mxu0 0
  %3661 = vmatprep.subr.bf16.mxu0 0
  %3662 = vmatpush1.bf16.msra.mxu0 %v3636
  %3663 = vmatprep.subr.bf16.mxu0 0
  %3664 = vmatpush1.bf16.msra.mxu0 %v3634
  %3665 = vmatprep.subr.bf16.mxu0 0
  %3666 = vmatpush1.bf16.msra.mxu0 %v3632
  %3667 = vmatprep.subr.bf16.mxu0 0
  %3668 = vmatpush1.bf16.msra.mxu0 %v3630
  %3669 = vmatprep.subr.bf16.mxu0 0
  %3670 = vmatpush2.bf16.msra.mxu0 0
  %3671 = vmatprep.subr.bf16.mxu0 0
  %3672 = vmatpush2.bf16.msra.mxu0 0
  %3673 = vmatprep.subr.bf16.mxu0 0
  %3674 = vmatpush2.bf16.msra.mxu0 0
  %3675 = vmatprep.subr.bf16.mxu0 0
  %3676 = vmatpush2.bf16.msra.mxu0 0
  %3677 = vmatprep.subr.bf16.mxu0 0
  %3678 = vmatpush2.bf16.msra.mxu0 0
  %3679 = vmatprep.subr.bf16.mxu0 0
  %3680 = vmatpush2.bf16.msra.mxu0 0
  %3681 = vmatprep.subr.bf16.mxu0 0
  %3682 = vmatpush2.bf16.msra.mxu0 0
  %3683 = vmatprep.subr.bf16.mxu0 0
  %3684 = vmatpush2.bf16.msra.mxu0 0
  %3685 = vmatprep.mubr.bf16.mxu0 0
  %3686 = vmatmul.mubr.bf16.gmra.mxu0 %v3642
  %v3687 = vpop.f32.mrf.mxu0
  %v3688 = vadd.f32 0.0, %v3687
  %v3689 = vpop.f32.mrf.mxu0
  %v3690 = vpop.f32.mrf.mxu0
  %v3691 = vadd.f32 0.0, %v3690
  %v3692 = vpop.f32.mrf.mxu0
  %3693 = vmatprep.mubr.bf16.mxu0 0
  %3694 = vmatmul.mubr.bf16.gmra.mxu0 %v3645
  %v3695 = vpop.f32.mrf.mxu0
  %v3696 = vadd.f32 0.0, %v3695
  %v3697 = vpop.f32.mrf.mxu0
  %v3698 = vpop.f32.mrf.mxu0
  %v3699 = vadd.f32 0.0, %v3698
  %v3700 = vpop.f32.mrf.mxu0
  %3701 = vmatprep.mubr.bf16.mxu0 0
  %3702 = vmatmul.mubr.bf16.gmra.mxu0 %v3648
  %v3703 = vpop.f32.mrf.mxu0
  %v3704 = vadd.f32 0.0, %v3703
  %v3705 = vpop.f32.mrf.mxu0
  %v3706 = vpop.f32.mrf.mxu0
  %v3707 = vadd.f32 0.0, %v3706
  %v3708 = vpop.f32.mrf.mxu0
  %3709 = vmatprep.mubr.bf16.mxu0 0
  %3710 = vmatmul.mubr.bf16.gmra.mxu0 %v3651
  %v3711 = vpop.f32.mrf.mxu0
  %v3712 = vadd.f32 0.0, %v3711
  %v3713 = vpop.f32.mrf.mxu0
  %v3714 = vpop.f32.mrf.mxu0
  %v3715 = vadd.f32 0.0, %v3714
  %v3716 = vpop.f32.mrf.mxu0
  %3717 = vdwg.mxu0
  %3718 = vrot.lane.b32.xlu0 %v3082, 96
  %v3719 = vpop.permute.xlu0 %3718
  %3720 = vrot.lane.b32.xlu0 %v3083, 96
  %v3721 = vpop.permute.xlu0 %3720
  %3722 = vrot.lane.b32.xlu0 %v3084, 96
  %v3723 = vpop.permute.xlu0 %3722
  %3724 = vrot.lane.b32.xlu0 %v3085, 96
  %v3725 = vpop.permute.xlu0 %3724
  %3726 = vrot.lane.b32.xlu0 %v3102, 32
  %v3727 = vpop.permute.xlu0 %3726
  %3728 = vrot.lane.b32.xlu0 %v3103, 32
  %v3729 = vpop.permute.xlu0 %3728
  %3730 = vrot.lane.b32.xlu0 %v3104, 32
  %v3731 = vpop.permute.xlu0 %3730
  %3732 = vrot.lane.b32.xlu0 %v3105, 32
  %v3733 = vpop.permute.xlu0 %3732
  %v3735 = vsel %vm92, %v3719, 0
  %v3738 = vsel %vm92, %v3721, 0
  %v3741 = vsel %vm92, %v3723, 0
  %v3744 = vsel %vm92, %v3725, 0
  %v3747 = vsel %vm92, %v3727, 0
  %v3750 = vsel %vm92, %v3729, 0
  %v3753 = vsel %vm92, %v3731, 0
  %v3756 = vsel %vm92, %v3733, 0
  %3758 = vmatprep.subr.bf16.mxu0 0
  %3759 = vmatpush1.bf16.xpose.msra.mxu0 0
  %3760 = vmatprep.subr.bf16.mxu0 0
  %3761 = vmatpush1.bf16.xpose.msra.mxu0 0
  %3762 = vmatprep.subr.bf16.mxu0 0
  %3763 = vmatpush1.bf16.xpose.msra.mxu0 0
  %3764 = vmatprep.subr.bf16.mxu0 0
  %3765 = vmatpush1.bf16.xpose.msra.mxu0 0
  %3766 = vmatprep.subr.bf16.mxu0 0
  %3767 = vmatpush1.bf16.xpose.msra.mxu0 %v3756
  %3768 = vmatprep.subr.bf16.mxu0 0
  %3769 = vmatpush1.bf16.xpose.msra.mxu0 %v3753
  %3770 = vmatprep.subr.bf16.mxu0 0
  %3771 = vmatpush1.bf16.xpose.msra.mxu0 %v3750
  %3772 = vmatprep.subr.bf16.mxu0 0
  %3773 = vmatpush1.bf16.xpose.msra.mxu0 %v3747
  %3774 = vmatprep.subr.bf16.mxu0 0
  %3775 = vmatpush2.bf16.xpose.msra.mxu0 0
  %3776 = vmatprep.subr.bf16.mxu0 0
  %3777 = vmatpush2.bf16.xpose.msra.mxu0 0
  %3778 = vmatprep.subr.bf16.mxu0 0
  %3779 = vmatpush2.bf16.xpose.msra.mxu0 0
  %3780 = vmatprep.subr.bf16.mxu0 0
  %3781 = vmatpush2.bf16.xpose.msra.mxu0 0
  %3782 = vmatprep.subr.bf16.mxu0 0
  %3783 = vmatpush2.bf16.xpose.msra.mxu0 0
  %3784 = vmatprep.subr.bf16.mxu0 0
  %3785 = vmatpush2.bf16.xpose.msra.mxu0 0
  %3786 = vmatprep.subr.bf16.mxu0 0
  %3787 = vmatpush2.bf16.xpose.msra.mxu0 0
  %3788 = vmatprep.subr.bf16.mxu0 0
  %3789 = vmatpush2.bf16.xpose.msra.mxu0 0
  %3790 = vmatprep.mubr.bf16.mxu0 0
  %3791 = vmatmul.mubr.bf16.gmra.mxu0 %v3735
  %v3792 = vpop.f32.mrf.mxu0
  %v3793 = vadd.f32 0.0, %v3792
  %v3794 = vpop.f32.mrf.mxu0
  %v3795 = vpop.f32.mrf.mxu0
  %v3796 = vadd.f32 0.0, %v3795
  %v3797 = vpop.f32.mrf.mxu0
  %3798 = vmatprep.mubr.bf16.mxu0 0
  %3799 = vmatmul.mubr.bf16.gmra.mxu0 %v3738
  %v3800 = vpop.f32.mrf.mxu0
  %v3801 = vadd.f32 0.0, %v3800
  %v3802 = vpop.f32.mrf.mxu0
  %v3803 = vpop.f32.mrf.mxu0
  %v3804 = vadd.f32 0.0, %v3803
  %v3805 = vpop.f32.mrf.mxu0
  %3806 = vmatprep.mubr.bf16.mxu0 0
  %3807 = vmatmul.mubr.bf16.gmra.mxu0 %v3741
  %v3808 = vpop.f32.mrf.mxu0
  %v3809 = vadd.f32 0.0, %v3808
  %v3810 = vpop.f32.mrf.mxu0
  %v3811 = vpop.f32.mrf.mxu0
  %v3812 = vadd.f32 0.0, %v3811
  %v3813 = vpop.f32.mrf.mxu0
  %3814 = vmatprep.mubr.bf16.mxu0 0
  %3815 = vmatmul.mubr.bf16.gmra.mxu0 %v3744
  %v3816 = vpop.f32.mrf.mxu0
  %v3817 = vadd.f32 0.0, %v3816
  %v3818 = vpop.f32.mrf.mxu0
  %v3819 = vpop.f32.mrf.mxu0
  %v3820 = vadd.f32 0.0, %v3819
  %v3821 = vpop.f32.mrf.mxu0
  %3822 = vdwg.mxu0
  %v3823 = vmul.f32 %v3793, 0.25
  %v3824 = vmul.f32 %v3796, 0.25
  %v3825 = vmul.f32 %v3801, 0.25
  %v3826 = vmul.f32 %v3804, 0.25
  %v3827 = vmul.f32 %v3809, 0.25
  %v3828 = vmul.f32 %v3812, 0.25
  %v3829 = vmul.f32 %v3817, 0.25
  %v3830 = vmul.f32 %v3820, 0.25
  %v3831 = vadd.f32 %v3823, %v309
  %v3832 = vadd.f32 %v3824, %v310
  %v3833 = vadd.f32 %v3825, %v311
  %v3834 = vadd.f32 %v3826, %v312
  %v3835 = vadd.f32 %v3827, %v313
  %v3836 = vadd.f32 %v3828, %v314
  %v3837 = vadd.f32 %v3829, %v315
  %v3838 = vadd.f32 %v3830, %v316
  %v3839 = vsel %vm22, %v3831, -inf
  %3840 = vmax.xlane.f32.xlu0 %v3839
  %v3841 = vpop.xlane.xlu0 %3840
  %v3842 = vsel %vm22, %v3832, -inf
  %3843 = vmax.xlane.f32.xlu0 %v3842
  %v3844 = vpop.xlane.xlu0 %3843
  %v3845 = vsel %vm22, %v3833, -inf
  %3846 = vmax.xlane.f32.xlu0 %v3845
  %v3847 = vpop.xlane.xlu0 %3846
  %v3848 = vsel %vm22, %v3834, -inf
  %3849 = vmax.xlane.f32.xlu0 %v3848
  %v3850 = vpop.xlane.xlu0 %3849
  %v3851 = vsel %vm22, %v3835, -inf
  %3852 = vmax.xlane.f32.xlu0 %v3851
  %v3853 = vpop.xlane.xlu0 %3852
  %v3854 = vsel %vm22, %v3836, -inf
  %3855 = vmax.xlane.f32.xlu0 %v3854
  %v3856 = vpop.xlane.xlu0 %3855
  %v3857 = vsel %vm22, %v3837, -inf
  %3858 = vmax.xlane.f32.xlu0 %v3857
  %v3859 = vpop.xlane.xlu0 %3858
  %v3860 = vsel %vm22, %v3838, -inf
  %3861 = vmax.xlane.f32.xlu0 %v3860
  %v3862 = vpop.xlane.xlu0 %3861
  %v3863 = vsub.f32 %v3831, %v3841
  %v3864 = vsub.f32 %v3832, %v3844
  %v3865 = vsub.f32 %v3833, %v3847
  %v3866 = vsub.f32 %v3834, %v3850
  %v3867 = vsub.f32 %v3835, %v3853
  %v3868 = vsub.f32 %v3836, %v3856
  %v3869 = vsub.f32 %v3837, %v3859
  %v3870 = vsub.f32 %v3838, %v3862
  %v3871 = vmul.f32 %v3863, 1.442695
  %v3872 = vpow.pop %v3871
  %v3873 = vmul.f32 %v3864, 1.442695
  %v3874 = vpow.pop %v3873
  %v3875 = vmul.f32 %v3865, 1.442695
  %v3876 = vpow.pop %v3875
  %v3877 = vmul.f32 %v3866, 1.442695
  %v3878 = vpow.pop %v3877
  %v3879 = vmul.f32 %v3867, 1.442695
  %v3880 = vpow.pop %v3879
  %v3881 = vmul.f32 %v3868, 1.442695
  %v3882 = vpow.pop %v3881
  %v3883 = vmul.f32 %v3869, 1.442695
  %v3884 = vpow.pop %v3883
  %v3885 = vmul.f32 %v3870, 1.442695
  %v3886 = vpow.pop %v3885
  %v3887 = vsel %vm22, %v3872, 0.0
  %3888 = vadd.xlane.f32.xlu0 %v3887
  %v3889 = vpop.xlane.xlu0 %3888
  %v3890 = vsel %vm22, %v3874, 0.0
  %3891 = vadd.xlane.f32.xlu0 %v3890
  %v3892 = vpop.xlane.xlu0 %3891
  %v3893 = vsel %vm22, %v3876, 0.0
  %3894 = vadd.xlane.f32.xlu0 %v3893
  %v3895 = vpop.xlane.xlu0 %3894
  %v3896 = vsel %vm22, %v3878, 0.0
  %3897 = vadd.xlane.f32.xlu0 %v3896
  %v3898 = vpop.xlane.xlu0 %3897
  %v3899 = vsel %vm22, %v3880, 0.0
  %3900 = vadd.xlane.f32.xlu0 %v3899
  %v3901 = vpop.xlane.xlu0 %3900
  %v3902 = vsel %vm22, %v3882, 0.0
  %3903 = vadd.xlane.f32.xlu0 %v3902
  %v3904 = vpop.xlane.xlu0 %3903
  %v3905 = vsel %vm22, %v3884, 0.0
  %3906 = vadd.xlane.f32.xlu0 %v3905
  %v3907 = vpop.xlane.xlu0 %3906
  %v3908 = vsel %vm22, %v3886, 0.0
  %3909 = vadd.xlane.f32.xlu0 %v3908
  %v3910 = vpop.xlane.xlu0 %3909
  %v3911 = vrcp.pop %v3889
  %v3912 = vrcp.pop %v3892
  %v3913 = vrcp.pop %v3895
  %v3914 = vrcp.pop %v3898
  %v3915 = vrcp.pop %v3901
  %v3916 = vrcp.pop %v3904
  %v3917 = vrcp.pop %v3907
  %v3918 = vrcp.pop %v3910
  %v3919 = vmul.f32 %v3872, %v3911
  %v3920 = vmul.f32 %v3874, %v3912
  %v3921 = vmul.f32 %v3876, %v3913
  %v3922 = vmul.f32 %v3878, %v3914
  %v3923 = vmul.f32 %v3880, %v3915
  %v3924 = vmul.f32 %v3882, %v3916
  %v3925 = vmul.f32 %v3884, %v3917
  %v3926 = vmul.f32 %v3886, %v3918
  %v3927 = vpack.c.bf16 %v3920, %v3919
  %v3928 = vpack.c.bf16 %v3922, %v3921
  %v3929 = vpack.c.bf16 %v3924, %v3923
  %v3930 = vpack.c.bf16 %v3926, %v3925
  %3931 = vrot.lane.b32.xlu0 %v3118, 96
  %v3932 = vpop.permute.xlu0 %3931
  %3933 = vrot.lane.b32.xlu0 %v3119, 96
  %v3934 = vpop.permute.xlu0 %3933
  %3935 = vrot.lane.b32.xlu0 %v3120, 96
  %v3936 = vpop.permute.xlu0 %3935
  %3937 = vrot.lane.b32.xlu0 %v3121, 96
  %v3938 = vpop.permute.xlu0 %3937
  %v3944 = vsel %vm22, %v3927, 0
  %v3947 = vsel %vm22, %v3928, 0
  %v3950 = vsel %vm22, %v3929, 0
  %v3953 = vsel %vm22, %v3930, 0
  %3955 = vmatprep.subr.bf16.mxu0 0
  %3956 = vmatpush1.bf16.msra.mxu0 0
  %3957 = vmatprep.subr.bf16.mxu0 0
  %3958 = vmatpush1.bf16.msra.mxu0 0
  %3959 = vmatprep.subr.bf16.mxu0 0
  %3960 = vmatpush1.bf16.msra.mxu0 0
  %3961 = vmatprep.subr.bf16.mxu0 0
  %3962 = vmatpush1.bf16.msra.mxu0 0
  %3963 = vmatprep.subr.bf16.mxu0 0
  %3964 = vmatpush1.bf16.msra.mxu0 %v3938
  %3965 = vmatprep.subr.bf16.mxu0 0
  %3966 = vmatpush1.bf16.msra.mxu0 %v3936
  %3967 = vmatprep.subr.bf16.mxu0 0
  %3968 = vmatpush1.bf16.msra.mxu0 %v3934
  %3969 = vmatprep.subr.bf16.mxu0 0
  %3970 = vmatpush1.bf16.msra.mxu0 %v3932
  %3971 = vmatprep.subr.bf16.mxu0 0
  %3972 = vmatpush2.bf16.msra.mxu0 0
  %3973 = vmatprep.subr.bf16.mxu0 0
  %3974 = vmatpush2.bf16.msra.mxu0 0
  %3975 = vmatprep.subr.bf16.mxu0 0
  %3976 = vmatpush2.bf16.msra.mxu0 0
  %3977 = vmatprep.subr.bf16.mxu0 0
  %3978 = vmatpush2.bf16.msra.mxu0 0
  %3979 = vmatprep.subr.bf16.mxu0 0
  %3980 = vmatpush2.bf16.msra.mxu0 0
  %3981 = vmatprep.subr.bf16.mxu0 0
  %3982 = vmatpush2.bf16.msra.mxu0 0
  %3983 = vmatprep.subr.bf16.mxu0 0
  %3984 = vmatpush2.bf16.msra.mxu0 0
  %3985 = vmatprep.subr.bf16.mxu0 0
  %3986 = vmatpush2.bf16.msra.mxu0 0
  %3987 = vmatprep.mubr.bf16.mxu0 0
  %3988 = vmatmul.mubr.bf16.gmra.mxu0 %v3944
  %v3989 = vpop.f32.mrf.mxu0
  %v3990 = vadd.f32 0.0, %v3989
  %v3991 = vpop.f32.mrf.mxu0
  %v3992 = vpop.f32.mrf.mxu0
  %v3993 = vadd.f32 0.0, %v3992
  %v3994 = vpop.f32.mrf.mxu0
  %3995 = vmatprep.mubr.bf16.mxu0 0
  %3996 = vmatmul.mubr.bf16.gmra.mxu0 %v3947
  %v3997 = vpop.f32.mrf.mxu0
  %v3998 = vadd.f32 0.0, %v3997
  %v3999 = vpop.f32.mrf.mxu0
  %v4000 = vpop.f32.mrf.mxu0
  %v4001 = vadd.f32 0.0, %v4000
  %v4002 = vpop.f32.mrf.mxu0
  %4003 = vmatprep.mubr.bf16.mxu0 0
  %4004 = vmatmul.mubr.bf16.gmra.mxu0 %v3950
  %v4005 = vpop.f32.mrf.mxu0
  %v4006 = vadd.f32 0.0, %v4005
  %v4007 = vpop.f32.mrf.mxu0
  %v4008 = vpop.f32.mrf.mxu0
  %v4009 = vadd.f32 0.0, %v4008
  %v4010 = vpop.f32.mrf.mxu0
  %4011 = vmatprep.mubr.bf16.mxu0 0
  %4012 = vmatmul.mubr.bf16.gmra.mxu0 %v3953
  %v4013 = vpop.f32.mrf.mxu0
  %v4014 = vadd.f32 0.0, %v4013
  %v4015 = vpop.f32.mrf.mxu0
  %v4016 = vpop.f32.mrf.mxu0
  %v4017 = vadd.f32 0.0, %v4016
  %v4018 = vpop.f32.mrf.mxu0
  %4019 = vdwg.mxu0
  %4020 = vrot.lane.b32.xlu0 %v3082, 80
  %v4021 = vpop.permute.xlu0 %4020
  %4022 = vrot.lane.b32.xlu0 %v3083, 80
  %v4023 = vpop.permute.xlu0 %4022
  %4024 = vrot.lane.b32.xlu0 %v3084, 80
  %v4025 = vpop.permute.xlu0 %4024
  %4026 = vrot.lane.b32.xlu0 %v3085, 80
  %v4027 = vpop.permute.xlu0 %4026
  %4028 = vrot.lane.b32.xlu0 %v3102, 16
  %v4029 = vpop.permute.xlu0 %4028
  %4030 = vrot.lane.b32.xlu0 %v3103, 16
  %v4031 = vpop.permute.xlu0 %4030
  %4032 = vrot.lane.b32.xlu0 %v3104, 16
  %v4033 = vpop.permute.xlu0 %4032
  %4034 = vrot.lane.b32.xlu0 %v3105, 16
  %v4035 = vpop.permute.xlu0 %4034
  %v4037 = vsel %vm92, %v4021, 0
  %v4040 = vsel %vm92, %v4023, 0
  %v4043 = vsel %vm92, %v4025, 0
  %v4046 = vsel %vm92, %v4027, 0
  %v4049 = vsel %vm92, %v4029, 0
  %v4052 = vsel %vm92, %v4031, 0
  %v4055 = vsel %vm92, %v4033, 0
  %v4058 = vsel %vm92, %v4035, 0
  %4060 = vmatprep.subr.bf16.mxu0 0
  %4061 = vmatpush1.bf16.xpose.msra.mxu0 0
  %4062 = vmatprep.subr.bf16.mxu0 0
  %4063 = vmatpush1.bf16.xpose.msra.mxu0 0
  %4064 = vmatprep.subr.bf16.mxu0 0
  %4065 = vmatpush1.bf16.xpose.msra.mxu0 0
  %4066 = vmatprep.subr.bf16.mxu0 0
  %4067 = vmatpush1.bf16.xpose.msra.mxu0 0
  %4068 = vmatprep.subr.bf16.mxu0 0
  %4069 = vmatpush1.bf16.xpose.msra.mxu0 %v4058
  %4070 = vmatprep.subr.bf16.mxu0 0
  %4071 = vmatpush1.bf16.xpose.msra.mxu0 %v4055
  %4072 = vmatprep.subr.bf16.mxu0 0
  %4073 = vmatpush1.bf16.xpose.msra.mxu0 %v4052
  %4074 = vmatprep.subr.bf16.mxu0 0
  %4075 = vmatpush1.bf16.xpose.msra.mxu0 %v4049
  %4076 = vmatprep.subr.bf16.mxu0 0
  %4077 = vmatpush2.bf16.xpose.msra.mxu0 0
  %4078 = vmatprep.subr.bf16.mxu0 0
  %4079 = vmatpush2.bf16.xpose.msra.mxu0 0
  %4080 = vmatprep.subr.bf16.mxu0 0
  %4081 = vmatpush2.bf16.xpose.msra.mxu0 0
  %4082 = vmatprep.subr.bf16.mxu0 0
  %4083 = vmatpush2.bf16.xpose.msra.mxu0 0
  %4084 = vmatprep.subr.bf16.mxu0 0
  %4085 = vmatpush2.bf16.xpose.msra.mxu0 0
  %4086 = vmatprep.subr.bf16.mxu0 0
  %4087 = vmatpush2.bf16.xpose.msra.mxu0 0
  %4088 = vmatprep.subr.bf16.mxu0 0
  %4089 = vmatpush2.bf16.xpose.msra.mxu0 0
  %4090 = vmatprep.subr.bf16.mxu0 0
  %4091 = vmatpush2.bf16.xpose.msra.mxu0 0
  %4092 = vmatprep.mubr.bf16.mxu0 0
  %4093 = vmatmul.mubr.bf16.gmra.mxu0 %v4037
  %v4094 = vpop.f32.mrf.mxu0
  %v4095 = vadd.f32 0.0, %v4094
  %v4096 = vpop.f32.mrf.mxu0
  %v4097 = vpop.f32.mrf.mxu0
  %v4098 = vadd.f32 0.0, %v4097
  %v4099 = vpop.f32.mrf.mxu0
  %4100 = vmatprep.mubr.bf16.mxu0 0
  %4101 = vmatmul.mubr.bf16.gmra.mxu0 %v4040
  %v4102 = vpop.f32.mrf.mxu0
  %v4103 = vadd.f32 0.0, %v4102
  %v4104 = vpop.f32.mrf.mxu0
  %v4105 = vpop.f32.mrf.mxu0
  %v4106 = vadd.f32 0.0, %v4105
  %v4107 = vpop.f32.mrf.mxu0
  %4108 = vmatprep.mubr.bf16.mxu0 0
  %4109 = vmatmul.mubr.bf16.gmra.mxu0 %v4043
  %v4110 = vpop.f32.mrf.mxu0
  %v4111 = vadd.f32 0.0, %v4110
  %v4112 = vpop.f32.mrf.mxu0
  %v4113 = vpop.f32.mrf.mxu0
  %v4114 = vadd.f32 0.0, %v4113
  %v4115 = vpop.f32.mrf.mxu0
  %4116 = vmatprep.mubr.bf16.mxu0 0
  %4117 = vmatmul.mubr.bf16.gmra.mxu0 %v4046
  %v4118 = vpop.f32.mrf.mxu0
  %v4119 = vadd.f32 0.0, %v4118
  %v4120 = vpop.f32.mrf.mxu0
  %v4121 = vpop.f32.mrf.mxu0
  %v4122 = vadd.f32 0.0, %v4121
  %v4123 = vpop.f32.mrf.mxu0
  %4124 = vdwg.mxu0
  %v4125 = vmul.f32 %v4095, 0.25
  %v4126 = vmul.f32 %v4098, 0.25
  %v4127 = vmul.f32 %v4103, 0.25
  %v4128 = vmul.f32 %v4106, 0.25
  %v4129 = vmul.f32 %v4111, 0.25
  %v4130 = vmul.f32 %v4114, 0.25
  %v4131 = vmul.f32 %v4119, 0.25
  %v4132 = vmul.f32 %v4122, 0.25
  %v4133 = vadd.f32 %v4125, %v309
  %v4134 = vadd.f32 %v4126, %v310
  %v4135 = vadd.f32 %v4127, %v311
  %v4136 = vadd.f32 %v4128, %v312
  %v4137 = vadd.f32 %v4129, %v313
  %v4138 = vadd.f32 %v4130, %v314
  %v4139 = vadd.f32 %v4131, %v315
  %v4140 = vadd.f32 %v4132, %v316
  %v4141 = vsel %vm22, %v4133, -inf
  %4142 = vmax.xlane.f32.xlu0 %v4141
  %v4143 = vpop.xlane.xlu0 %4142
  %v4144 = vsel %vm22, %v4134, -inf
  %4145 = vmax.xlane.f32.xlu0 %v4144
  %v4146 = vpop.xlane.xlu0 %4145
  %v4147 = vsel %vm22, %v4135, -inf
  %4148 = vmax.xlane.f32.xlu0 %v4147
  %v4149 = vpop.xlane.xlu0 %4148
  %v4150 = vsel %vm22, %v4136, -inf
  %4151 = vmax.xlane.f32.xlu0 %v4150
  %v4152 = vpop.xlane.xlu0 %4151
  %v4153 = vsel %vm22, %v4137, -inf
  %4154 = vmax.xlane.f32.xlu0 %v4153
  %v4155 = vpop.xlane.xlu0 %4154
  %v4156 = vsel %vm22, %v4138, -inf
  %4157 = vmax.xlane.f32.xlu0 %v4156
  %v4158 = vpop.xlane.xlu0 %4157
  %v4159 = vsel %vm22, %v4139, -inf
  %4160 = vmax.xlane.f32.xlu0 %v4159
  %v4161 = vpop.xlane.xlu0 %4160
  %v4162 = vsel %vm22, %v4140, -inf
  %4163 = vmax.xlane.f32.xlu0 %v4162
  %v4164 = vpop.xlane.xlu0 %4163
  %v4165 = vsub.f32 %v4133, %v4143
  %v4166 = vsub.f32 %v4134, %v4146
  %v4167 = vsub.f32 %v4135, %v4149
  %v4168 = vsub.f32 %v4136, %v4152
  %v4169 = vsub.f32 %v4137, %v4155
  %v4170 = vsub.f32 %v4138, %v4158
  %v4171 = vsub.f32 %v4139, %v4161
  %v4172 = vsub.f32 %v4140, %v4164
  %v4173 = vmul.f32 %v4165, 1.442695
  %v4174 = vpow.pop %v4173
  %v4175 = vmul.f32 %v4166, 1.442695
  %v4176 = vpow.pop %v4175
  %v4177 = vmul.f32 %v4167, 1.442695
  %v4178 = vpow.pop %v4177
  %v4179 = vmul.f32 %v4168, 1.442695
  %v4180 = vpow.pop %v4179
  %v4181 = vmul.f32 %v4169, 1.442695
  %v4182 = vpow.pop %v4181
  %v4183 = vmul.f32 %v4170, 1.442695
  %v4184 = vpow.pop %v4183
  %v4185 = vmul.f32 %v4171, 1.442695
  %v4186 = vpow.pop %v4185
  %v4187 = vmul.f32 %v4172, 1.442695
  %v4188 = vpow.pop %v4187
  %v4189 = vsel %vm22, %v4174, 0.0
  %4190 = vadd.xlane.f32.xlu0 %v4189
  %v4191 = vpop.xlane.xlu0 %4190
  %v4192 = vsel %vm22, %v4176, 0.0
  %4193 = vadd.xlane.f32.xlu0 %v4192
  %v4194 = vpop.xlane.xlu0 %4193
  %v4195 = vsel %vm22, %v4178, 0.0
  %4196 = vadd.xlane.f32.xlu0 %v4195
  %v4197 = vpop.xlane.xlu0 %4196
  %v4198 = vsel %vm22, %v4180, 0.0
  %4199 = vadd.xlane.f32.xlu0 %v4198
  %v4200 = vpop.xlane.xlu0 %4199
  %v4201 = vsel %vm22, %v4182, 0.0
  %4202 = vadd.xlane.f32.xlu0 %v4201
  %v4203 = vpop.xlane.xlu0 %4202
  %v4204 = vsel %vm22, %v4184, 0.0
  %4205 = vadd.xlane.f32.xlu0 %v4204
  %v4206 = vpop.xlane.xlu0 %4205
  %v4207 = vsel %vm22, %v4186, 0.0
  %4208 = vadd.xlane.f32.xlu0 %v4207
  %v4209 = vpop.xlane.xlu0 %4208
  %v4210 = vsel %vm22, %v4188, 0.0
  %4211 = vadd.xlane.f32.xlu0 %v4210
  %v4212 = vpop.xlane.xlu0 %4211
  %v4213 = vrcp.pop %v4191
  %v4214 = vrcp.pop %v4194
  %v4215 = vrcp.pop %v4197
  %v4216 = vrcp.pop %v4200
  %v4217 = vrcp.pop %v4203
  %v4218 = vrcp.pop %v4206
  %v4219 = vrcp.pop %v4209
  %v4220 = vrcp.pop %v4212
  %v4221 = vmul.f32 %v4174, %v4213
  %v4222 = vmul.f32 %v4176, %v4214
  %v4223 = vmul.f32 %v4178, %v4215
  %v4224 = vmul.f32 %v4180, %v4216
  %v4225 = vmul.f32 %v4182, %v4217
  %v4226 = vmul.f32 %v4184, %v4218
  %v4227 = vmul.f32 %v4186, %v4219
  %v4228 = vmul.f32 %v4188, %v4220
  %v4229 = vpack.c.bf16 %v4222, %v4221
  %v4230 = vpack.c.bf16 %v4224, %v4223
  %v4231 = vpack.c.bf16 %v4226, %v4225
  %v4232 = vpack.c.bf16 %v4228, %v4227
  %4233 = vrot.lane.b32.xlu0 %v3118, 80
  %v4234 = vpop.permute.xlu0 %4233
  %4235 = vrot.lane.b32.xlu0 %v3119, 80
  %v4236 = vpop.permute.xlu0 %4235
  %4237 = vrot.lane.b32.xlu0 %v3120, 80
  %v4238 = vpop.permute.xlu0 %4237
  %4239 = vrot.lane.b32.xlu0 %v3121, 80
  %v4240 = vpop.permute.xlu0 %4239
  %v4246 = vsel %vm22, %v4229, 0
  %v4249 = vsel %vm22, %v4230, 0
  %v4252 = vsel %vm22, %v4231, 0
  %v4255 = vsel %vm22, %v4232, 0
  %4257 = vmatprep.subr.bf16.mxu0 0
  %4258 = vmatpush1.bf16.msra.mxu0 0
  %4259 = vmatprep.subr.bf16.mxu0 0
  %4260 = vmatpush1.bf16.msra.mxu0 0
  %4261 = vmatprep.subr.bf16.mxu0 0
  %4262 = vmatpush1.bf16.msra.mxu0 0
  %4263 = vmatprep.subr.bf16.mxu0 0
  %4264 = vmatpush1.bf16.msra.mxu0 0
  %4265 = vmatprep.subr.bf16.mxu0 0
  %4266 = vmatpush1.bf16.msra.mxu0 %v4240
  %4267 = vmatprep.subr.bf16.mxu0 0
  %4268 = vmatpush1.bf16.msra.mxu0 %v4238
  %4269 = vmatprep.subr.bf16.mxu0 0
  %4270 = vmatpush1.bf16.msra.mxu0 %v4236
  %4271 = vmatprep.subr.bf16.mxu0 0
  %4272 = vmatpush1.bf16.msra.mxu0 %v4234
  %4273 = vmatprep.subr.bf16.mxu0 0
  %4274 = vmatpush2.bf16.msra.mxu0 0
  %4275 = vmatprep.subr.bf16.mxu0 0
  %4276 = vmatpush2.bf16.msra.mxu0 0
  %4277 = vmatprep.subr.bf16.mxu0 0
  %4278 = vmatpush2.bf16.msra.mxu0 0
  %4279 = vmatprep.subr.bf16.mxu0 0
  %4280 = vmatpush2.bf16.msra.mxu0 0
  %4281 = vmatprep.subr.bf16.mxu0 0
  %4282 = vmatpush2.bf16.msra.mxu0 0
  %4283 = vmatprep.subr.bf16.mxu0 0
  %4284 = vmatpush2.bf16.msra.mxu0 0
  %4285 = vmatprep.subr.bf16.mxu0 0
  %4286 = vmatpush2.bf16.msra.mxu0 0
  %4287 = vmatprep.subr.bf16.mxu0 0
  %4288 = vmatpush2.bf16.msra.mxu0 0
  %4289 = vmatprep.mubr.bf16.mxu0 0
  %4290 = vmatmul.mubr.bf16.gmra.mxu0 %v4246
  %v4291 = vpop.f32.mrf.mxu0
  %v4292 = vadd.f32 0.0, %v4291
  %v4293 = vpop.f32.mrf.mxu0
  %v4294 = vpop.f32.mrf.mxu0
  %v4295 = vadd.f32 0.0, %v4294
  %v4296 = vpop.f32.mrf.mxu0
  %4297 = vmatprep.mubr.bf16.mxu0 0
  %4298 = vmatmul.mubr.bf16.gmra.mxu0 %v4249
  %v4299 = vpop.f32.mrf.mxu0
  %v4300 = vadd.f32 0.0, %v4299
  %v4301 = vpop.f32.mrf.mxu0
  %v4302 = vpop.f32.mrf.mxu0
  %v4303 = vadd.f32 0.0, %v4302
  %v4304 = vpop.f32.mrf.mxu0
  %4305 = vmatprep.mubr.bf16.mxu0 0
  %4306 = vmatmul.mubr.bf16.gmra.mxu0 %v4252
  %v4307 = vpop.f32.mrf.mxu0
  %v4308 = vadd.f32 0.0, %v4307
  %v4309 = vpop.f32.mrf.mxu0
  %v4310 = vpop.f32.mrf.mxu0
  %v4311 = vadd.f32 0.0, %v4310
  %v4312 = vpop.f32.mrf.mxu0
  %4313 = vmatprep.mubr.bf16.mxu0 0
  %4314 = vmatmul.mubr.bf16.gmra.mxu0 %v4255
  %v4315 = vpop.f32.mrf.mxu0
  %v4316 = vadd.f32 0.0, %v4315
  %v4317 = vpop.f32.mrf.mxu0
  %v4318 = vpop.f32.mrf.mxu0
  %v4319 = vadd.f32 0.0, %v4318
  %v4320 = vpop.f32.mrf.mxu0
  %4321 = vdwg.mxu0
  %4330 = vrot.lane.b32.xlu0 %v3688, 16
  %v4331 = vpop.permute.xlu0 %4330
  %4332 = vrot.lane.b32.xlu0 %v3691, 16
  %v4333 = vpop.permute.xlu0 %4332
  %4334 = vrot.lane.b32.xlu0 %v3696, 16
  %v4335 = vpop.permute.xlu0 %4334
  %4336 = vrot.lane.b32.xlu0 %v3699, 16
  %v4337 = vpop.permute.xlu0 %4336
  %4338 = vrot.lane.b32.xlu0 %v3704, 16
  %v4339 = vpop.permute.xlu0 %4338
  %4340 = vrot.lane.b32.xlu0 %v3707, 16
  %v4341 = vpop.permute.xlu0 %4340
  %4342 = vrot.lane.b32.xlu0 %v3712, 16
  %v4343 = vpop.permute.xlu0 %4342
  %4344 = vrot.lane.b32.xlu0 %v3715, 16
  %v4345 = vpop.permute.xlu0 %4344
  %4362 = vrot.lane.b32.xlu0 %v3990, 32
  %v4363 = vpop.permute.xlu0 %4362
  %4364 = vrot.lane.b32.xlu0 %v3993, 32
  %v4365 = vpop.permute.xlu0 %4364
  %4366 = vrot.lane.b32.xlu0 %v3998, 32
  %v4367 = vpop.permute.xlu0 %4366
  %4368 = vrot.lane.b32.xlu0 %v4001, 32
  %v4369 = vpop.permute.xlu0 %4368
  %4370 = vrot.lane.b32.xlu0 %v4006, 32
  %v4371 = vpop.permute.xlu0 %4370
  %4372 = vrot.lane.b32.xlu0 %v4009, 32
  %v4373 = vpop.permute.xlu0 %4372
  %4374 = vrot.lane.b32.xlu0 %v4014, 32
  %v4375 = vpop.permute.xlu0 %4374
  %4376 = vrot.lane.b32.xlu0 %v4017, 32
  %v4377 = vpop.permute.xlu0 %4376
  %4394 = vrot.lane.b32.xlu0 %v4292, 48
  %v4395 = vpop.permute.xlu0 %4394
  %4396 = vrot.lane.b32.xlu0 %v4295, 48
  %v4397 = vpop.permute.xlu0 %4396
  %4398 = vrot.lane.b32.xlu0 %v4300, 48
  %v4399 = vpop.permute.xlu0 %4398
  %4400 = vrot.lane.b32.xlu0 %v4303, 48
  %v4401 = vpop.permute.xlu0 %4400
  %4402 = vrot.lane.b32.xlu0 %v4308, 48
  %v4403 = vpop.permute.xlu0 %4402
  %4404 = vrot.lane.b32.xlu0 %v4311, 48
  %v4405 = vpop.permute.xlu0 %4404
  %4406 = vrot.lane.b32.xlu0 %v4316, 48
  %v4407 = vpop.permute.xlu0 %4406
  %4408 = vrot.lane.b32.xlu0 %v4319, 48
  %v4409 = vpop.permute.xlu0 %4408
  %v4418 = vsel %vm92, %v3378, %v4331
  %v4419 = vsel %vm92, %v3381, %v4333
  %v4420 = vsel %vm92, %v3386, %v4335
  %v4421 = vsel %vm92, %v3389, %v4337
  %v4422 = vsel %vm92, %v3394, %v4339
  %v4423 = vsel %vm92, %v3397, %v4341
  %v4424 = vsel %vm92, %v3402, %v4343
  %v4425 = vsel %vm92, %v3405, %v4345
  %v4426 = vsel %vm2009, %v4418, %v4363
  %v4427 = vsel %vm2009, %v4419, %v4365
  %v4428 = vsel %vm2009, %v4420, %v4367
  %v4429 = vsel %vm2009, %v4421, %v4369
  %v4430 = vsel %vm2009, %v4422, %v4371
  %v4431 = vsel %vm2009, %v4423, %v4373
  %v4432 = vsel %vm2009, %v4424, %v4375
  %v4433 = vsel %vm2009, %v4425, %v4377
  %v4434 = vsel %vm2018, %v4426, %v4395
  %v4435 = vsel %vm2018, %v4427, %v4397
  %v4436 = vsel %vm2018, %v4428, %v4399
  %v4437 = vsel %vm2018, %v4429, %v4401
  %v4438 = vsel %vm2018, %v4430, %v4403
  %v4439 = vsel %vm2018, %v4431, %v4405
  %v4440 = vsel %vm2018, %v4432, %v4407
  %v4441 = vsel %vm2018, %v4433, %v4409
  %v4442 = vpack.c.bf16 %v4435, %v4434
  %v4443 = vpack.c.bf16 %v4437, %v4436
  %v4444 = vpack.c.bf16 %v4439, %v4438
  %v4445 = vpack.c.bf16 %v4441, %v4440
  %v4446 = vlaneseq
  %v4447 = vshrl.u32 %v4446, 7
  %v4448 = vsub.s32 0, %v4447
  %v4449 = vrot.slane %v2739, %v4448
  %v4458 = vunpack.c.l.b16 %v2765
  %v4459 = vunpack.c.l.b16 %v2766
  %v4460 = vunpack.c.l.b16 %v2767
  %v4461 = vunpack.c.l.b16 %v2768
  %v4462 = vunpack.c.l.b16 %v2769
  %v4463 = vunpack.c.l.b16 %v2770
  %v4464 = vunpack.c.l.b16 %v2771
  %v4465 = vunpack.c.l.b16 %v2772
  %v4466 = vpack.c.b16 %v4459, %v4458
  %v4467 = vpack.c.b16 %v4461, %v4460
  %v4468 = vpack.c.b16 %v4463, %v4462
  %v4469 = vpack.c.b16 %v4465, %v4464
  %v4475 = vsel %vm22, %v4442, 0
  %v4478 = vsel %vm22, %v4443, 0
  %v4481 = vsel %vm22, %v4444, 0
  %v4484 = vsel %vm22, %v4445, 0
  %4486 = vmatprep.subr.bf16.mxu0 0
  %4487 = vmatpush1.bf16.msra.mxu0 0
  %4488 = vmatprep.subr.bf16.mxu0 0
  %4489 = vmatpush1.bf16.msra.mxu0 0
  %4490 = vmatprep.subr.bf16.mxu0 0
  %4491 = vmatpush1.bf16.msra.mxu0 0
  %4492 = vmatprep.subr.bf16.mxu0 0
  %4493 = vmatpush1.bf16.msra.mxu0 0
  %4494 = vmatprep.subr.bf16.mxu0 0
  %4495 = vmatpush1.bf16.msra.mxu0 %v4469
  %4496 = vmatprep.subr.bf16.mxu0 0
  %4497 = vmatpush1.bf16.msra.mxu0 %v4468
  %4498 = vmatprep.subr.bf16.mxu0 0
  %4499 = vmatpush1.bf16.msra.mxu0 %v4467
  %4500 = vmatprep.subr.bf16.mxu0 0
  %4501 = vmatpush1.bf16.msra.mxu0 %v4466
  %4502 = vmatprep.subr.bf16.mxu0 0
  %4503 = vmatpush2.bf16.msra.mxu0 0
  %4504 = vmatprep.subr.bf16.mxu0 0
  %4505 = vmatpush2.bf16.msra.mxu0 0
  %4506 = vmatprep.subr.bf16.mxu0 0
  %4507 = vmatpush2.bf16.msra.mxu0 0
  %4508 = vmatprep.subr.bf16.mxu0 0
  %4509 = vmatpush2.bf16.msra.mxu0 0
  %4510 = vmatprep.subr.bf16.mxu0 0
  %4511 = vmatpush2.bf16.msra.mxu0 0
  %4512 = vmatprep.subr.bf16.mxu0 0
  %4513 = vmatpush2.bf16.msra.mxu0 0
  %4514 = vmatprep.subr.bf16.mxu0 0
  %4515 = vmatpush2.bf16.msra.mxu0 0
  %4516 = vmatprep.subr.bf16.mxu0 0
  %4517 = vmatpush2.bf16.msra.mxu0 0
  %4518 = vmatprep.mubr.bf16.mxu0 0
  %4519 = vmatmul.mubr.bf16.gmra.mxu0 %v4475
  %v4520 = vpop.f32.mrf.mxu0
  %v4521 = vadd.f32 %v4449, %v4520
  %v4522 = vpop.f32.mrf.mxu0
  %v4523 = vpop.f32.mrf.mxu0
  %v4524 = vadd.f32 %v4449, %v4523
  %v4525 = vpop.f32.mrf.mxu0
  %4526 = vmatprep.mubr.bf16.mxu0 0
  %4527 = vmatmul.mubr.bf16.gmra.mxu0 %v4478
  %v4528 = vpop.f32.mrf.mxu0
  %v4529 = vadd.f32 %v4449, %v4528
  %v4530 = vpop.f32.mrf.mxu0
  %v4531 = vpop.f32.mrf.mxu0
  %v4532 = vadd.f32 %v4449, %v4531
  %v4533 = vpop.f32.mrf.mxu0
  %4534 = vmatprep.mubr.bf16.mxu0 0
  %4535 = vmatmul.mubr.bf16.gmra.mxu0 %v4481
  %v4536 = vpop.f32.mrf.mxu0
  %v4537 = vadd.f32 %v4449, %v4536
  %v4538 = vpop.f32.mrf.mxu0
  %v4539 = vpop.f32.mrf.mxu0
  %v4540 = vadd.f32 %v4449, %v4539
  %v4541 = vpop.f32.mrf.mxu0
  %4542 = vmatprep.mubr.bf16.mxu0 0
  %4543 = vmatmul.mubr.bf16.gmra.mxu0 %v4484
  %v4544 = vpop.f32.mrf.mxu0
  %v4545 = vadd.f32 %v4449, %v4544
  %v4546 = vpop.f32.mrf.mxu0
  %v4547 = vpop.f32.mrf.mxu0
  %v4548 = vadd.f32 %v4449, %v4547
  %v4549 = vpop.f32.mrf.mxu0
  %4550 = vdwg.mxu0
  %v4551 = vadd.f32 %v2726, %v4521
  %v4552 = vadd.f32 %v2727, %v4524
  %v4553 = vadd.f32 %v2728, %v4529
  %v4554 = vadd.f32 %v2729, %v4532
  %v4555 = vadd.f32 %v2730, %v4537
  %v4556 = vadd.f32 %v2731, %v4540
  %v4557 = vadd.f32 %v2732, %v4545
  %v4558 = vadd.f32 %v2733, %v4548
  %v4559 = vsel %vm22, %v4551, 0.0
  %4560 = vadd.xlane.f32.xlu0 %v4559
  %v4561 = vpop.xlane.xlu0 %4560
  %v4562 = vsel %vm22, %v4552, 0.0
  %4563 = vadd.xlane.f32.xlu0 %v4562
  %v4564 = vpop.xlane.xlu0 %4563
  %v4565 = vsel %vm22, %v4553, 0.0
  %4566 = vadd.xlane.f32.xlu0 %v4565
  %v4567 = vpop.xlane.xlu0 %4566
  %v4568 = vsel %vm22, %v4554, 0.0
  %4569 = vadd.xlane.f32.xlu0 %v4568
  %v4570 = vpop.xlane.xlu0 %4569
  %v4571 = vsel %vm22, %v4555, 0.0
  %4572 = vadd.xlane.f32.xlu0 %v4571
  %v4573 = vpop.xlane.xlu0 %4572
  %v4574 = vsel %vm22, %v4556, 0.0
  %4575 = vadd.xlane.f32.xlu0 %v4574
  %v4576 = vpop.xlane.xlu0 %4575
  %v4577 = vsel %vm22, %v4557, 0.0
  %4578 = vadd.xlane.f32.xlu0 %v4577
  %v4579 = vpop.xlane.xlu0 %4578
  %v4580 = vsel %vm22, %v4558, 0.0
  %4581 = vadd.xlane.f32.xlu0 %v4580
  %v4582 = vpop.xlane.xlu0 %4581
  %v4583 = vmul.f32 %v4561, %v26
  %v4584 = vmul.f32 %v4564, %v26
  %v4585 = vmul.f32 %v4567, %v26
  %v4586 = vmul.f32 %v4570, %v26
  %v4587 = vmul.f32 %v4573, %v26
  %v4588 = vmul.f32 %v4576, %v26
  %v4589 = vmul.f32 %v4579, %v26
  %v4590 = vmul.f32 %v4582, %v26
  %v4591 = vsub.f32 %v4551, %v4583
  %v4592 = vsub.f32 %v4552, %v4584
  %v4593 = vsub.f32 %v4553, %v4585
  %v4594 = vsub.f32 %v4554, %v4586
  %v4595 = vsub.f32 %v4555, %v4587
  %v4596 = vsub.f32 %v4556, %v4588
  %v4597 = vsub.f32 %v4557, %v4589
  %v4598 = vsub.f32 %v4558, %v4590
  %v4599 = vmul.f32 %v4591, %v4591
  %v4600 = vmul.f32 %v4592, %v4592
  %v4601 = vmul.f32 %v4593, %v4593
  %v4602 = vmul.f32 %v4594, %v4594
  %v4603 = vmul.f32 %v4595, %v4595
  %v4604 = vmul.f32 %v4596, %v4596
  %v4605 = vmul.f32 %v4597, %v4597
  %v4606 = vmul.f32 %v4598, %v4598
  %v4607 = vsel %vm22, %v4599, 0.0
  %4608 = vadd.xlane.f32.xlu0 %v4607
  %v4609 = vpop.xlane.xlu0 %4608
  %v4610 = vsel %vm22, %v4600, 0.0
  %4611 = vadd.xlane.f32.xlu0 %v4610
  %v4612 = vpop.xlane.xlu0 %4611
  %v4613 = vsel %vm22, %v4601, 0.0
  %4614 = vadd.xlane.f32.xlu0 %v4613
  %v4615 = vpop.xlane.xlu0 %4614
  %v4616 = vsel %vm22, %v4602, 0.0
  %4617 = vadd.xlane.f32.xlu0 %v4616
  %v4618 = vpop.xlane.xlu0 %4617
  %v4619 = vsel %vm22, %v4603, 0.0
  %4620 = vadd.xlane.f32.xlu0 %v4619
  %v4621 = vpop.xlane.xlu0 %4620
  %v4622 = vsel %vm22, %v4604, 0.0
  %4623 = vadd.xlane.f32.xlu0 %v4622
  %v4624 = vpop.xlane.xlu0 %4623
  %v4625 = vsel %vm22, %v4605, 0.0
  %4626 = vadd.xlane.f32.xlu0 %v4625
  %v4627 = vpop.xlane.xlu0 %4626
  %v4628 = vsel %vm22, %v4606, 0.0
  %4629 = vadd.xlane.f32.xlu0 %v4628
  %v4630 = vpop.xlane.xlu0 %4629
  %v4631 = vmul.f32 %v4609, %v26
  %v4632 = vmul.f32 %v4612, %v26
  %v4633 = vmul.f32 %v4615, %v26
  %v4634 = vmul.f32 %v4618, %v26
  %v4635 = vmul.f32 %v4621, %v26
  %v4636 = vmul.f32 %v4624, %v26
  %v4637 = vmul.f32 %v4627, %v26
  %v4638 = vmul.f32 %v4630, %v26
  %v4639 = vadd.f32 %v4631, 1e-05
  %v4640 = vadd.f32 %v4632, 1e-05
  %v4641 = vadd.f32 %v4633, 1e-05
  %v4642 = vadd.f32 %v4634, 1e-05
  %v4643 = vadd.f32 %v4635, 1e-05
  %v4644 = vadd.f32 %v4636, 1e-05
  %v4645 = vadd.f32 %v4637, 1e-05
  %v4646 = vadd.f32 %v4638, 1e-05
  %v4647 = vrsqrt.pop %v4639
  %v4648 = vrsqrt.pop %v4640
  %v4649 = vrsqrt.pop %v4641
  %v4650 = vrsqrt.pop %v4642
  %v4651 = vrsqrt.pop %v4643
  %v4652 = vrsqrt.pop %v4644
  %v4653 = vrsqrt.pop %v4645
  %v4654 = vrsqrt.pop %v4646
  %v4655 = vmul.f32 %v4591, %v4647
  %v4656 = vmul.f32 %v4592, %v4648
  %v4657 = vmul.f32 %v4593, %v4649
  %v4658 = vmul.f32 %v4594, %v4650
  %v4659 = vmul.f32 %v4595, %v4651
  %v4660 = vmul.f32 %v4596, %v4652
  %v4661 = vmul.f32 %v4597, %v4653
  %v4662 = vmul.f32 %v4598, %v4654
  %v4663 = vlaneseq
  %v4664 = vshrl.u32 %v4663, 7
  %v4665 = vsub.s32 0, %v4664
  %v4666 = vrot.slane %v2740, %v4665
  %v4667 = vmul.f32 %v4655, %v4666
  %v4668 = vmul.f32 %v4656, %v4666
  %v4669 = vmul.f32 %v4657, %v4666
  %v4670 = vmul.f32 %v4658, %v4666
  %v4671 = vmul.f32 %v4659, %v4666
  %v4672 = vmul.f32 %v4660, %v4666
  %v4673 = vmul.f32 %v4661, %v4666
  %v4674 = vmul.f32 %v4662, %v4666
  %v4675 = vlaneseq
  %v4676 = vshrl.u32 %v4675, 7
  %v4677 = vsub.s32 0, %v4676
  %v4678 = vrot.slane %v2741, %v4677
  %v4679 = vadd.f32 %v4667, %v4678
  %v4680 = vadd.f32 %v4668, %v4678
  %v4681 = vadd.f32 %v4669, %v4678
  %v4682 = vadd.f32 %v4670, %v4678
  %v4683 = vadd.f32 %v4671, %v4678
  %v4684 = vadd.f32 %v4672, %v4678
  %v4685 = vadd.f32 %v4673, %v4678
  %v4686 = vadd.f32 %v4674, %v4678
  %v4687 = vpack.c.bf16 %v4680, %v4679
  %v4688 = vpack.c.bf16 %v4682, %v4681
  %v4689 = vpack.c.bf16 %v4684, %v4683
  %v4690 = vpack.c.bf16 %v4686, %v4685
  %v4691 = vlaneseq
  %v4692 = vshrl.u32 %v4691, 7
  %v4693 = vsub.s32 0, %v4692
  %v4694 = vrot.slane %v2754, %v4693
  %v4695 = vlaneseq
  %v4696 = vshrl.u32 %v4695, 7
  %v4697 = vsub.s32 0, %v4696
  %v4698 = vrot.slane %v2755, %v4697
  %v4707 = vunpack.c.l.b16 %v2805
  %v4708 = vunpack.c.h.b16 %v2805
  %v4709 = vunpack.c.l.b16 %v2806
  %v4710 = vunpack.c.h.b16 %v2806
  %v4711 = vunpack.c.l.b16 %v2807
  %v4712 = vunpack.c.h.b16 %v2807
  %v4713 = vunpack.c.l.b16 %v2808
  %v4714 = vunpack.c.h.b16 %v2808
  %v4715 = vunpack.c.l.b16 %v2809
  %v4716 = vunpack.c.h.b16 %v2809
  %v4717 = vunpack.c.l.b16 %v2810
  %v4718 = vunpack.c.h.b16 %v2810
  %v4719 = vunpack.c.l.b16 %v2811
  %v4720 = vunpack.c.h.b16 %v2811
  %v4721 = vunpack.c.l.b16 %v2812
  %v4722 = vunpack.c.h.b16 %v2812
  %v4723 = vpack.c.b16 %v4709, %v4707
  %v4724 = vpack.c.b16 %v4710, %v4708
  %v4725 = vpack.c.b16 %v4713, %v4711
  %v4726 = vpack.c.b16 %v4714, %v4712
  %v4727 = vpack.c.b16 %v4717, %v4715
  %v4728 = vpack.c.b16 %v4718, %v4716
  %v4729 = vpack.c.b16 %v4721, %v4719
  %v4730 = vpack.c.b16 %v4722, %v4720
  %v4740 = vsel %vm22, %v4687, 0
  %v4743 = vsel %vm22, %v4688, 0
  %v4746 = vsel %vm22, %v4689, 0
  %v4749 = vsel %vm22, %v4690, 0
  %4751 = vmatprep.subr.bf16.mxu0 0
  %4752 = vmatpush1.bf16.msra.mxu0 0
  %4753 = vmatprep.subr.bf16.mxu0 0
  %4754 = vmatpush1.bf16.msra.mxu0 0
  %4755 = vmatprep.subr.bf16.mxu0 0
  %4756 = vmatpush1.bf16.msra.mxu0 0
  %4757 = vmatprep.subr.bf16.mxu0 0
  %4758 = vmatpush1.bf16.msra.mxu0 0
  %4759 = vmatprep.subr.bf16.mxu0 %v4730
  %4760 = vmatpush1.bf16.msra.mxu0 %v4729
  %4761 = vmatprep.subr.bf16.mxu0 %v4728
  %4762 = vmatpush1.bf16.msra.mxu0 %v4727
  %4763 = vmatprep.subr.bf16.mxu0 %v4726
  %4764 = vmatpush1.bf16.msra.mxu0 %v4725
  %4765 = vmatprep.subr.bf16.mxu0 %v4724
  %4766 = vmatpush1.bf16.msra.mxu0 %v4723
  %4767 = vmatprep.subr.bf16.mxu0 0
  %4768 = vmatpush2.bf16.msra.mxu0 0
  %4769 = vmatprep.subr.bf16.mxu0 0
  %4770 = vmatpush2.bf16.msra.mxu0 0
  %4771 = vmatprep.subr.bf16.mxu0 0
  %4772 = vmatpush2.bf16.msra.mxu0 0
  %4773 = vmatprep.subr.bf16.mxu0 0
  %4774 = vmatpush2.bf16.msra.mxu0 0
  %4775 = vmatprep.subr.bf16.mxu0 0
  %4776 = vmatpush2.bf16.msra.mxu0 0
  %4777 = vmatprep.subr.bf16.mxu0 0
  %4778 = vmatpush2.bf16.msra.mxu0 0
  %4779 = vmatprep.subr.bf16.mxu0 0
  %4780 = vmatpush2.bf16.msra.mxu0 0
  %4781 = vmatprep.subr.bf16.mxu0 0
  %4782 = vmatpush2.bf16.msra.mxu0 0
  %4783 = vmatprep.mubr.bf16.mxu0 0
  %4784 = vmatmul.mubr.bf16.gmra.mxu0 %v4740
  %v4785 = vpop.f32.mrf.mxu0
  %v4786 = vadd.f32 %v4694, %v4785
  %v4787 = vpop.f32.mrf.mxu0
  %v4788 = vadd.f32 %v4698, %v4787
  %v4789 = vpop.f32.mrf.mxu0
  %v4790 = vadd.f32 %v4694, %v4789
  %v4791 = vpop.f32.mrf.mxu0
  %v4792 = vadd.f32 %v4698, %v4791
  %4793 = vmatprep.mubr.bf16.mxu0 0
  %4794 = vmatmul.mubr.bf16.gmra.mxu0 %v4743
  %v4795 = vpop.f32.mrf.mxu0
  %v4796 = vadd.f32 %v4694, %v4795
  %v4797 = vpop.f32.mrf.mxu0
  %v4798 = vadd.f32 %v4698, %v4797
  %v4799 = vpop.f32.mrf.mxu0
  %v4800 = vadd.f32 %v4694, %v4799
  %v4801 = vpop.f32.mrf.mxu0
  %v4802 = vadd.f32 %v4698, %v4801
  %4803 = vmatprep.mubr.bf16.mxu0 0
  %4804 = vmatmul.mubr.bf16.gmra.mxu0 %v4746
  %v4805 = vpop.f32.mrf.mxu0
  %v4806 = vadd.f32 %v4694, %v4805
  %v4807 = vpop.f32.mrf.mxu0
  %v4808 = vadd.f32 %v4698, %v4807
  %v4809 = vpop.f32.mrf.mxu0
  %v4810 = vadd.f32 %v4694, %v4809
  %v4811 = vpop.f32.mrf.mxu0
  %v4812 = vadd.f32 %v4698, %v4811
  %4813 = vmatprep.mubr.bf16.mxu0 0
  %4814 = vmatmul.mubr.bf16.gmra.mxu0 %v4749
  %v4815 = vpop.f32.mrf.mxu0
  %v4816 = vadd.f32 %v4694, %v4815
  %v4817 = vpop.f32.mrf.mxu0
  %v4818 = vadd.f32 %v4698, %v4817
  %v4819 = vpop.f32.mrf.mxu0
  %v4820 = vadd.f32 %v4694, %v4819
  %v4821 = vpop.f32.mrf.mxu0
  %v4822 = vadd.f32 %v4698, %v4821
  %4823 = vdwg.mxu0
  %v4824 = vmul.f32 %v4786, 0.5
  %v4825 = vmul.f32 %v4788, 0.5
  %v4826 = vmul.f32 %v4790, 0.5
  %v4827 = vmul.f32 %v4792, 0.5
  %v4828 = vmul.f32 %v4796, 0.5
  %v4829 = vmul.f32 %v4798, 0.5
  %v4830 = vmul.f32 %v4800, 0.5
  %v4831 = vmul.f32 %v4802, 0.5
  %v4832 = vmul.f32 %v4806, 0.5
  %v4833 = vmul.f32 %v4808, 0.5
  %v4834 = vmul.f32 %v4810, 0.5
  %v4835 = vmul.f32 %v4812, 0.5
  %v4836 = vmul.f32 %v4816, 0.5
  %v4837 = vmul.f32 %v4818, 0.5
  %v4838 = vmul.f32 %v4820, 0.5
  %v4839 = vmul.f32 %v4822, 0.5
  %v4840 = vmul.f32 %v4786, %v4786
  %v4841 = vmul.f32 %v4788, %v4788
  %v4842 = vmul.f32 %v4790, %v4790
  %v4843 = vmul.f32 %v4792, %v4792
  %v4844 = vmul.f32 %v4796, %v4796
  %v4845 = vmul.f32 %v4798, %v4798
  %v4846 = vmul.f32 %v4800, %v4800
  %v4847 = vmul.f32 %v4802, %v4802
  %v4848 = vmul.f32 %v4806, %v4806
  %v4849 = vmul.f32 %v4808, %v4808
  %v4850 = vmul.f32 %v4810, %v4810
  %v4851 = vmul.f32 %v4812, %v4812
  %v4852 = vmul.f32 %v4816, %v4816
  %v4853 = vmul.f32 %v4818, %v4818
  %v4854 = vmul.f32 %v4820, %v4820
  %v4855 = vmul.f32 %v4822, %v4822
  %v4856 = vmul.f32 %v4786, %v4840
  %v4857 = vmul.f32 %v4788, %v4841
  %v4858 = vmul.f32 %v4790, %v4842
  %v4859 = vmul.f32 %v4792, %v4843
  %v4860 = vmul.f32 %v4796, %v4844
  %v4861 = vmul.f32 %v4798, %v4845
  %v4862 = vmul.f32 %v4800, %v4846
  %v4863 = vmul.f32 %v4802, %v4847
  %v4864 = vmul.f32 %v4806, %v4848
  %v4865 = vmul.f32 %v4808, %v4849
  %v4866 = vmul.f32 %v4810, %v4850
  %v4867 = vmul.f32 %v4812, %v4851
  %v4868 = vmul.f32 %v4816, %v4852
  %v4869 = vmul.f32 %v4818, %v4853
  %v4870 = vmul.f32 %v4820, %v4854
  %v4871 = vmul.f32 %v4822, %v4855
  %v4872 = vmul.f32 %v4856, 0.044715
  %v4873 = vmul.f32 %v4857, 0.044715
  %v4874 = vmul.f32 %v4858, 0.044715
  %v4875 = vmul.f32 %v4859, 0.044715
  %v4876 = vmul.f32 %v4860, 0.044715
  %v4877 = vmul.f32 %v4861, 0.044715
  %v4878 = vmul.f32 %v4862, 0.044715
  %v4879 = vmul.f32 %v4863, 0.044715
  %v4880 = vmul.f32 %v4864, 0.044715
  %v4881 = vmul.f32 %v4865, 0.044715
  %v4882 = vmul.f32 %v4866, 0.044715
  %v4883 = vmul.f32 %v4867, 0.044715
  %v4884 = vmul.f32 %v4868, 0.044715
  %v4885 = vmul.f32 %v4869, 0.044715
  %v4886 = vmul.f32 %v4870, 0.044715
  %v4887 = vmul.f32 %v4871, 0.044715
  %v4888 = vadd.f32 %v4786, %v4872
  %v4889 = vadd.f32 %v4788, %v4873
  %v4890 = vadd.f32 %v4790, %v4874
  %v4891 = vadd.f32 %v4792, %v4875
  %v4892 = vadd.f32 %v4796, %v4876
  %v4893 = vadd.f32 %v4798, %v4877
  %v4894 = vadd.f32 %v4800, %v4878
  %v4895 = vadd.f32 %v4802, %v4879
  %v4896 = vadd.f32 %v4806, %v4880
  %v4897 = vadd.f32 %v4808, %v4881
  %v4898 = vadd.f32 %v4810, %v4882
  %v4899 = vadd.f32 %v4812, %v4883
  %v4900 = vadd.f32 %v4816, %v4884
  %v4901 = vadd.f32 %v4818, %v4885
  %v4902 = vadd.f32 %v4820, %v4886
  %v4903 = vadd.f32 %v4822, %v4887
  %v4904 = vmul.f32 %v4888, 0.7978845
  %v4905 = vmul.f32 %v4889, 0.7978845
  %v4906 = vmul.f32 %v4890, 0.7978845
  %v4907 = vmul.f32 %v4891, 0.7978845
  %v4908 = vmul.f32 %v4892, 0.7978845
  %v4909 = vmul.f32 %v4893, 0.7978845
  %v4910 = vmul.f32 %v4894, 0.7978845
  %v4911 = vmul.f32 %v4895, 0.7978845
  %v4912 = vmul.f32 %v4896, 0.7978845
  %v4913 = vmul.f32 %v4897, 0.7978845
  %v4914 = vmul.f32 %v4898, 0.7978845
  %v4915 = vmul.f32 %v4899, 0.7978845
  %v4916 = vmul.f32 %v4900, 0.7978845
  %v4917 = vmul.f32 %v4901, 0.7978845
  %v4918 = vmul.f32 %v4902, 0.7978845
  %v4919 = vmul.f32 %v4903, 0.7978845
  %v4920 = vtanh.pop %v4904
  %v4921 = vtanh.pop %v4905
  %v4922 = vtanh.pop %v4906
  %v4923 = vtanh.pop %v4907
  %v4924 = vtanh.pop %v4908
  %v4925 = vtanh.pop %v4909
  %v4926 = vtanh.pop %v4910
  %v4927 = vtanh.pop %v4911
  %v4928 = vtanh.pop %v4912
  %v4929 = vtanh.pop %v4913
  %v4930 = vtanh.pop %v4914
  %v4931 = vtanh.pop %v4915
  %v4932 = vtanh.pop %v4916
  %v4933 = vtanh.pop %v4917
  %v4934 = vtanh.pop %v4918
  %v4935 = vtanh.pop %v4919
  %v4936 = vadd.f32 %v4920, 1.0
  %v4937 = vadd.f32 %v4921, 1.0
  %v4938 = vadd.f32 %v4922, 1.0
  %v4939 = vadd.f32 %v4923, 1.0
  %v4940 = vadd.f32 %v4924, 1.0
  %v4941 = vadd.f32 %v4925, 1.0
  %v4942 = vadd.f32 %v4926, 1.0
  %v4943 = vadd.f32 %v4927, 1.0
  %v4944 = vadd.f32 %v4928, 1.0
  %v4945 = vadd.f32 %v4929, 1.0
  %v4946 = vadd.f32 %v4930, 1.0
  %v4947 = vadd.f32 %v4931, 1.0
  %v4948 = vadd.f32 %v4932, 1.0
  %v4949 = vadd.f32 %v4933, 1.0
  %v4950 = vadd.f32 %v4934, 1.0
  %v4951 = vadd.f32 %v4935, 1.0
  %v4952 = vmul.f32 %v4824, %v4936
  %v4953 = vmul.f32 %v4825, %v4937
  %v4954 = vmul.f32 %v4826, %v4938
  %v4955 = vmul.f32 %v4827, %v4939
  %v4956 = vmul.f32 %v4828, %v4940
  %v4957 = vmul.f32 %v4829, %v4941
  %v4958 = vmul.f32 %v4830, %v4942
  %v4959 = vmul.f32 %v4831, %v4943
  %v4960 = vmul.f32 %v4832, %v4944
  %v4961 = vmul.f32 %v4833, %v4945
  %v4962 = vmul.f32 %v4834, %v4946
  %v4963 = vmul.f32 %v4835, %v4947
  %v4964 = vmul.f32 %v4836, %v4948
  %v4965 = vmul.f32 %v4837, %v4949
  %v4966 = vmul.f32 %v4838, %v4950
  %v4967 = vmul.f32 %v4839, %v4951
  %v4968 = vpack.c.bf16 %v4954, %v4952
  %v4969 = vpack.c.bf16 %v4955, %v4953
  %v4970 = vpack.c.bf16 %v4958, %v4956
  %v4971 = vpack.c.bf16 %v4959, %v4957
  %v4972 = vpack.c.bf16 %v4962, %v4960
  %v4973 = vpack.c.bf16 %v4963, %v4961
  %v4974 = vpack.c.bf16 %v4966, %v4964
  %v4975 = vpack.c.bf16 %v4967, %v4965
  %v4976 = vlaneseq
  %v4977 = vshrl.u32 %v4976, 7
  %v4978 = vsub.s32 0, %v4977
  %v4979 = vrot.slane %v2756, %v4978
  %v5012 = vunpack.c.l.b16 %v2773
  %v5013 = vunpack.c.l.b16 %v2774
  %v5014 = vunpack.c.l.b16 %v2775
  %v5015 = vunpack.c.l.b16 %v2776
  %v5016 = vunpack.c.l.b16 %v2777
  %v5017 = vunpack.c.l.b16 %v2778
  %v5018 = vunpack.c.l.b16 %v2779
  %v5019 = vunpack.c.l.b16 %v2780
  %v5020 = vunpack.c.l.b16 %v2781
  %v5021 = vunpack.c.l.b16 %v2782
  %v5022 = vunpack.c.l.b16 %v2783
  %v5023 = vunpack.c.l.b16 %v2784
  %v5024 = vunpack.c.l.b16 %v2785
  %v5025 = vunpack.c.l.b16 %v2786
  %v5026 = vunpack.c.l.b16 %v2787
  %v5027 = vunpack.c.l.b16 %v2788
  %v5028 = vunpack.c.l.b16 %v2789
  %v5029 = vunpack.c.l.b16 %v2790
  %v5030 = vunpack.c.l.b16 %v2791
  %v5031 = vunpack.c.l.b16 %v2792
  %v5032 = vunpack.c.l.b16 %v2793
  %v5033 = vunpack.c.l.b16 %v2794
  %v5034 = vunpack.c.l.b16 %v2795
  %v5035 = vunpack.c.l.b16 %v2796
  %v5036 = vunpack.c.l.b16 %v2797
  %v5037 = vunpack.c.l.b16 %v2798
  %v5038 = vunpack.c.l.b16 %v2799
  %v5039 = vunpack.c.l.b16 %v2800
  %v5040 = vunpack.c.l.b16 %v2801
  %v5041 = vunpack.c.l.b16 %v2802
  %v5042 = vunpack.c.l.b16 %v2803
  %v5043 = vunpack.c.l.b16 %v2804
  %v5044 = vpack.c.b16 %v5013, %v5012
  %v5045 = vpack.c.b16 %v5015, %v5014
  %v5046 = vpack.c.b16 %v5017, %v5016
  %v5047 = vpack.c.b16 %v5019, %v5018
  %v5048 = vpack.c.b16 %v5021, %v5020
  %v5049 = vpack.c.b16 %v5023, %v5022
  %v5050 = vpack.c.b16 %v5025, %v5024
  %v5051 = vpack.c.b16 %v5027, %v5026
  %v5052 = vpack.c.b16 %v5029, %v5028
  %v5053 = vpack.c.b16 %v5031, %v5030
  %v5054 = vpack.c.b16 %v5033, %v5032
  %v5055 = vpack.c.b16 %v5035, %v5034
  %v5056 = vpack.c.b16 %v5037, %v5036
  %v5057 = vpack.c.b16 %v5039, %v5038
  %v5058 = vpack.c.b16 %v5041, %v5040
  %v5059 = vpack.c.b16 %v5043, %v5042
  %5076 = vmatprep.subr.bf16.mxu0 0
  %5077 = vmatpush1.bf16.msra.mxu0 %v5051
  %5078 = vmatprep.subr.bf16.mxu0 0
  %5079 = vmatpush1.bf16.msra.mxu0 %v5050
  %5080 = vmatprep.subr.bf16.mxu0 0
  %5081 = vmatpush1.bf16.msra.mxu0 %v5049
  %5082 = vmatprep.subr.bf16.mxu0 0
  %5083 = vmatpush1.bf16.msra.mxu0 %v5048
  %5084 = vmatprep.subr.bf16.mxu0 0
  %5085 = vmatpush1.bf16.msra.mxu0 %v5047
  %5086 = vmatprep.subr.bf16.mxu0 0
  %5087 = vmatpush1.bf16.msra.mxu0 %v5046
  %5088 = vmatprep.subr.bf16.mxu0 0
  %5089 = vmatpush1.bf16.msra.mxu0 %v5045
  %5090 = vmatprep.subr.bf16.mxu0 0
  %5091 = vmatpush1.bf16.msra.mxu0 %v5044
  %5092 = vmatprep.subr.bf16.mxu0 0
  %5093 = vmatpush2.bf16.msra.mxu0 %v5059
  %5094 = vmatprep.subr.bf16.mxu0 0
  %5095 = vmatpush2.bf16.msra.mxu0 %v5058
  %5096 = vmatprep.subr.bf16.mxu0 0
  %5097 = vmatpush2.bf16.msra.mxu0 %v5057
  %5098 = vmatprep.subr.bf16.mxu0 0
  %5099 = vmatpush2.bf16.msra.mxu0 %v5056
  %5100 = vmatprep.subr.bf16.mxu0 0
  %5101 = vmatpush2.bf16.msra.mxu0 %v5055
  %5102 = vmatprep.subr.bf16.mxu0 0
  %5103 = vmatpush2.bf16.msra.mxu0 %v5054
  %5104 = vmatprep.subr.bf16.mxu0 0
  %5105 = vmatpush2.bf16.msra.mxu0 %v5053
  %5106 = vmatprep.subr.bf16.mxu0 0
  %5107 = vmatpush2.bf16.msra.mxu0 %v5052
  %5108 = vmatprep.mubr.bf16.mxu0 %v4969
  %5109 = vmatmul.mubr.bf16.gmra.mxu0 %v4968
  %v5110 = vpop.f32.mrf.mxu0
  %v5111 = vadd.f32 %v4979, %v5110
  %v5112 = vpop.f32.mrf.mxu0
  %v5113 = vpop.f32.mrf.mxu0
  %v5114 = vadd.f32 %v4979, %v5113
  %v5115 = vpop.f32.mrf.mxu0
  %5116 = vmatprep.mubr.bf16.mxu0 %v4971
  %5117 = vmatmul.mubr.bf16.gmra.mxu0 %v4970
  %v5118 = vpop.f32.mrf.mxu0
  %v5119 = vadd.f32 %v4979, %v5118
  %v5120 = vpop.f32.mrf.mxu0
  %v5121 = vpop.f32.mrf.mxu0
  %v5122 = vadd.f32 %v4979, %v5121
  %v5123 = vpop.f32.mrf.mxu0
  %5124 = vmatprep.mubr.bf16.mxu0 %v4973
  %5125 = vmatmul.mubr.bf16.gmra.mxu0 %v4972
  %v5126 = vpop.f32.mrf.mxu0
  %v5127 = vadd.f32 %v4979, %v5126
  %v5128 = vpop.f32.mrf.mxu0
  %v5129 = vpop.f32.mrf.mxu0
  %v5130 = vadd.f32 %v4979, %v5129
  %v5131 = vpop.f32.mrf.mxu0
  %5132 = vmatprep.mubr.bf16.mxu0 %v4975
  %5133 = vmatmul.mubr.bf16.gmra.mxu0 %v4974
  %v5134 = vpop.f32.mrf.mxu0
  %v5135 = vadd.f32 %v4979, %v5134
  %v5136 = vpop.f32.mrf.mxu0
  %v5137 = vpop.f32.mrf.mxu0
  %v5138 = vadd.f32 %v4979, %v5137
  %v5139 = vpop.f32.mrf.mxu0
  %5140 = vdwg.mxu0
  %v5141 = vadd.f32 %v4551, %v5111
  %v5142 = vadd.f32 %v4552, %v5114
  %v5143 = vadd.f32 %v4553, %v5119
  %v5144 = vadd.f32 %v4554, %v5122
  %v5145 = vadd.f32 %v4555, %v5127
  %v5146 = vadd.f32 %v4556, %v5130
  %v5147 = vadd.f32 %v4557, %v5135
  %v5148 = vadd.f32 %v4558, %v5138
  %v5149 = vld [vmem:[%s1 + $0x60] sm:$0x1]
  %v5150 = vld [vmem:[%s1 + $0x61] sm:$0x1]
  %v5151 = vld [vmem:[%s1 + $0x62] sm:$0x1]
  %v5152 = vsel %vm22, %v5141, 0.0
  %5153 = vadd.xlane.f32.xlu0 %v5152
  %v5154 = vpop.xlane.xlu0 %5153
  %v5155 = vsel %vm22, %v5142, 0.0
  %5156 = vadd.xlane.f32.xlu0 %v5155
  %v5157 = vpop.xlane.xlu0 %5156
  %v5158 = vsel %vm22, %v5143, 0.0
  %5159 = vadd.xlane.f32.xlu0 %v5158
  %v5160 = vpop.xlane.xlu0 %5159
  %v5161 = vsel %vm22, %v5144, 0.0
  %5162 = vadd.xlane.f32.xlu0 %v5161
  %v5163 = vpop.xlane.xlu0 %5162
  %v5164 = vsel %vm22, %v5145, 0.0
  %5165 = vadd.xlane.f32.xlu0 %v5164
  %v5166 = vpop.xlane.xlu0 %5165
  %v5167 = vsel %vm22, %v5146, 0.0
  %5168 = vadd.xlane.f32.xlu0 %v5167
  %v5169 = vpop.xlane.xlu0 %5168
  %v5170 = vsel %vm22, %v5147, 0.0
  %5171 = vadd.xlane.f32.xlu0 %v5170
  %v5172 = vpop.xlane.xlu0 %5171
  %v5173 = vsel %vm22, %v5148, 0.0
  %5174 = vadd.xlane.f32.xlu0 %v5173
  %v5175 = vpop.xlane.xlu0 %5174
  %v5176 = vmul.f32 %v5154, %v26
  %v5177 = vmul.f32 %v5157, %v26
  %v5178 = vmul.f32 %v5160, %v26
  %v5179 = vmul.f32 %v5163, %v26
  %v5180 = vmul.f32 %v5166, %v26
  %v5181 = vmul.f32 %v5169, %v26
  %v5182 = vmul.f32 %v5172, %v26
  %v5183 = vmul.f32 %v5175, %v26
  %v5184 = vsub.f32 %v5141, %v5176
  %v5185 = vsub.f32 %v5142, %v5177
  %v5186 = vsub.f32 %v5143, %v5178
  %v5187 = vsub.f32 %v5144, %v5179
  %v5188 = vsub.f32 %v5145, %v5180
  %v5189 = vsub.f32 %v5146, %v5181
  %v5190 = vsub.f32 %v5147, %v5182
  %v5191 = vsub.f32 %v5148, %v5183
  %v5192 = vmul.f32 %v5184, %v5184
  %v5193 = vmul.f32 %v5185, %v5185
  %v5194 = vmul.f32 %v5186, %v5186
  %v5195 = vmul.f32 %v5187, %v5187
  %v5196 = vmul.f32 %v5188, %v5188
  %v5197 = vmul.f32 %v5189, %v5189
  %v5198 = vmul.f32 %v5190, %v5190
  %v5199 = vmul.f32 %v5191, %v5191
  %v5200 = vsel %vm22, %v5192, 0.0
  %5201 = vadd.xlane.f32.xlu0 %v5200
  %v5202 = vpop.xlane.xlu0 %5201
  %v5203 = vsel %vm22, %v5193, 0.0
  %5204 = vadd.xlane.f32.xlu0 %v5203
  %v5205 = vpop.xlane.xlu0 %5204
  %v5206 = vsel %vm22, %v5194, 0.0
  %5207 = vadd.xlane.f32.xlu0 %v5206
  %v5208 = vpop.xlane.xlu0 %5207
  %v5209 = vsel %vm22, %v5195, 0.0
  %5210 = vadd.xlane.f32.xlu0 %v5209
  %v5211 = vpop.xlane.xlu0 %5210
  %v5212 = vsel %vm22, %v5196, 0.0
  %5213 = vadd.xlane.f32.xlu0 %v5212
  %v5214 = vpop.xlane.xlu0 %5213
  %v5215 = vsel %vm22, %v5197, 0.0
  %5216 = vadd.xlane.f32.xlu0 %v5215
  %v5217 = vpop.xlane.xlu0 %5216
  %v5218 = vsel %vm22, %v5198, 0.0
  %5219 = vadd.xlane.f32.xlu0 %v5218
  %v5220 = vpop.xlane.xlu0 %5219
  %v5221 = vsel %vm22, %v5199, 0.0
  %5222 = vadd.xlane.f32.xlu0 %v5221
  %v5223 = vpop.xlane.xlu0 %5222
  %v5224 = vmul.f32 %v5202, %v26
  %v5225 = vmul.f32 %v5205, %v26
  %v5226 = vmul.f32 %v5208, %v26
  %v5227 = vmul.f32 %v5211, %v26
  %v5228 = vmul.f32 %v5214, %v26
  %v5229 = vmul.f32 %v5217, %v26
  %v5230 = vmul.f32 %v5220, %v26
  %v5231 = vmul.f32 %v5223, %v26
  %v5232 = vadd.f32 %v5224, 1e-05
  %v5233 = vadd.f32 %v5225, 1e-05
  %v5234 = vadd.f32 %v5226, 1e-05
  %v5235 = vadd.f32 %v5227, 1e-05
  %v5236 = vadd.f32 %v5228, 1e-05
  %v5237 = vadd.f32 %v5229, 1e-05
  %v5238 = vadd.f32 %v5230, 1e-05
  %v5239 = vadd.f32 %v5231, 1e-05
  %v5240 = vrsqrt.pop %v5232
  %v5241 = vrsqrt.pop %v5233
  %v5242 = vrsqrt.pop %v5234
  %v5243 = vrsqrt.pop %v5235
  %v5244 = vrsqrt.pop %v5236
  %v5245 = vrsqrt.pop %v5237
  %v5246 = vrsqrt.pop %v5238
  %v5247 = vrsqrt.pop %v5239
  %v5248 = vmul.f32 %v5184, %v5240
  %v5249 = vmul.f32 %v5185, %v5241
  %v5250 = vmul.f32 %v5186, %v5242
  %v5251 = vmul.f32 %v5187, %v5243
  %v5252 = vmul.f32 %v5188, %v5244
  %v5253 = vmul.f32 %v5189, %v5245
  %v5254 = vmul.f32 %v5190, %v5246
  %v5255 = vmul.f32 %v5191, %v5247
  %v5256 = vlaneseq
  %v5257 = vshrl.u32 %v5256, 7
  %v5258 = vsub.s32 0, %v5257
  %v5259 = vrot.slane %v5149, %v5258
  %v5260 = vmul.f32 %v5248, %v5259
  %v5261 = vmul.f32 %v5249, %v5259
  %v5262 = vmul.f32 %v5250, %v5259
  %v5263 = vmul.f32 %v5251, %v5259
  %v5264 = vmul.f32 %v5252, %v5259
  %v5265 = vmul.f32 %v5253, %v5259
  %v5266 = vmul.f32 %v5254, %v5259
  %v5267 = vmul.f32 %v5255, %v5259
  %v5268 = vlaneseq
  %v5269 = vshrl.u32 %v5268, 7
  %v5270 = vsub.s32 0, %v5269
  %v5271 = vrot.slane %v5150, %v5270
  %v5272 = vadd.f32 %v5260, %v5271
  %v5273 = vadd.f32 %v5261, %v5271
  %v5274 = vadd.f32 %v5262, %v5271
  %v5275 = vadd.f32 %v5263, %v5271
  %v5276 = vadd.f32 %v5264, %v5271
  %v5277 = vadd.f32 %v5265, %v5271
  %v5278 = vadd.f32 %v5266, %v5271
  %v5279 = vadd.f32 %v5267, %v5271
  %5281 = vrot.lane.b32.xlu0 %v5273, 64
  %v5282 = vpop.permute.xlu0 %5281
  %5285 = vrot.lane.b32.xlu0 %v5275, 64
  %v5286 = vpop.permute.xlu0 %5285
  %5289 = vrot.lane.b32.xlu0 %v5277, 64
  %v5290 = vpop.permute.xlu0 %5289
  %5293 = vrot.lane.b32.xlu0 %v5279, 64
  %v5294 = vpop.permute.xlu0 %5293
  %v5296 = vsel %vm22, %v5272, %v5282
  %v5297 = vsel %vm22, %v5274, %v5286
  %v5298 = vsel %vm22, %v5276, %v5290
  %v5299 = vsel %vm22, %v5278, %v5294
  %v5300 = vld [vmem:[%s3 + $0x148] sm:$0xf]
  %v5301 = vld [vmem:[%s3 + $0x14c] sm:$0xf]
  %v5302 = vld [vmem:[%s3 + $0x150] sm:$0xf]
  %v5303 = vld [vmem:[%s3 + $0x154] sm:$0xf]
  %v5304 = vld [vmem:[%s3 + $0x158] sm:$0xf]
  %v5305 = vld [vmem:[%s3 + $0x15c] sm:$0xf]
  %v5306 = vld [vmem:[%s3 + $0x160] sm:$0xf]
  %v5307 = vld [vmem:[%s3 + $0x164] sm:$0xf]
  %v5308 = vld [vmem:[%s3 + $0x168] sm:$0xf]
  %v5309 = vld [vmem:[%s3 + $0x16c] sm:$0xf]
  %v5310 = vld [vmem:[%s3 + $0x170] sm:$0xf]
  %v5311 = vld [vmem:[%s3 + $0x174] sm:$0xf]
  %v5312 = vld [vmem:[%s3 + $0x178] sm:$0xf]
  %v5313 = vld [vmem:[%s3 + $0x17c] sm:$0xf]
  %v5314 = vld [vmem:[%s3 + $0x180] sm:$0xf]
  %v5315 = vld [vmem:[%s3 + $0x184] sm:$0xf]
  %v5316 = vld [vmem:[%s3 + $0x188] sm:$0xf]
  %v5317 = vld [vmem:[%s3 + $0x18c] sm:$0xf]
  %v5318 = vld [vmem:[%s3 + $0x190] sm:$0xf]
  %v5319 = vld [vmem:[%s3 + $0x194] sm:$0xf]
  %v5320 = vld [vmem:[%s3 + $0x198] sm:$0xf]
  %v5321 = vld [vmem:[%s3 + $0x19c] sm:$0xf]
  %v5322 = vld [vmem:[%s3 + $0x1a0] sm:$0xf]
  %v5323 = vld [vmem:[%s3 + $0x1a4] sm:$0xf]
  %v5324 = vld [vmem:[%s3 + $0x1a8] sm:$0xf]
  %v5325 = vld [vmem:[%s3 + $0x1ac] sm:$0xf]
  %v5326 = vld [vmem:[%s3 + $0x1b0] sm:$0xf]
  %v5327 = vld [vmem:[%s3 + $0x1b4] sm:$0xf]
  %v5328 = vld [vmem:[%s3 + $0x1b8] sm:$0xf]
  %v5329 = vld [vmem:[%s3 + $0x1bc] sm:$0xf]
  %v5330 = vld [vmem:[%s3 + $0x1c0] sm:$0xf]
  %v5331 = vld [vmem:[%s3 + $0x1c4] sm:$0xf]
  %v5332 = vld [vmem:[%s3 + $0x1c8] sm:$0xf]
  %v5333 = vld [vmem:[%s3 + $0x1cc] sm:$0xf]
  %v5334 = vld [vmem:[%s3 + $0x1d0] sm:$0xf]
  %v5335 = vld [vmem:[%s3 + $0x1d4] sm:$0xf]
  %v5336 = vld [vmem:[%s3 + $0x1d8] sm:$0xf]
  %v5337 = vld [vmem:[%s3 + $0x1dc] sm:$0xf]
  %v5338 = vld [vmem:[%s3 + $0x1e0] sm:$0xf]
  %v5339 = vld [vmem:[%s3 + $0x1e4] sm:$0xf]
  %v5340 = vld [vmem:[%s3 + $0x1e8] sm:$0xf]
  %v5341 = vld [vmem:[%s3 + $0x1ec] sm:$0xf]
  %v5342 = vld [vmem:[%s3 + $0x1f0] sm:$0xf]
  %v5343 = vld [vmem:[%s3 + $0x1f4] sm:$0xf]
  %v5344 = vld [vmem:[%s3 + $0x1f8] sm:$0xf]
  %v5345 = vld [vmem:[%s3 + $0x1fc] sm:$0xf]
  %v5346 = vld [vmem:[%s3 + $0x200] sm:$0xf]
  %v5347 = vld [vmem:[%s3 + $0x204] sm:$0xf]
  %v5348 = vld [vmem:[%s3 + $0x208] sm:$0xf]
  %v5349 = vld [vmem:[%s3 + $0x20c] sm:$0xf]
  %v5350 = vld [vmem:[%s3 + $0x210] sm:$0xf]
  %v5351 = vld [vmem:[%s3 + $0x214] sm:$0xf]
  %v5352 = vld [vmem:[%s3 + $0x218] sm:$0xf]
  %v5353 = vld [vmem:[%s3 + $0x21c] sm:$0xf]
  %v5354 = vld [vmem:[%s3 + $0x220] sm:$0xf]
  %v5355 = vld [vmem:[%s3 + $0x224] sm:$0xf]
  %v5356 = vld [vmem:[%s3 + $0x228] sm:$0xf]
  %v5357 = vld [vmem:[%s3 + $0x22c] sm:$0xf]
  %v5358 = vld [vmem:[%s3 + $0x230] sm:$0xf]
  %v5359 = vld [vmem:[%s3 + $0x234] sm:$0xf]
  %v5360 = vld [vmem:[%s3 + $0x238] sm:$0xf]
  %v5361 = vld [vmem:[%s3 + $0x23c] sm:$0xf]
  %v5362 = vld [vmem:[%s3 + $0x240] sm:$0xf]
  %v5363 = vld [vmem:[%s3 + $0x244] sm:$0xf]
  %v5364 = vpack.c.bf16 %v5296, %v5296
  %v5365 = vpack.c.bf16 %v5297, %v5297
  %v5366 = vpack.c.bf16 %v5298, %v5298
  %v5367 = vpack.c.bf16 %v5299, %v5299
  %v5432 = vunpack.c.l.b16 %v5300
  %v5433 = vunpack.c.l.b16 %v5301
  %v5434 = vunpack.c.l.b16 %v5302
  %v5435 = vunpack.c.l.b16 %v5303
  %v5436 = vunpack.c.l.b16 %v5304
  %v5437 = vunpack.c.l.b16 %v5305
  %v5438 = vunpack.c.l.b16 %v5306
  %v5439 = vunpack.c.l.b16 %v5307
  %v5440 = vunpack.c.l.b16 %v5308
  %v5441 = vunpack.c.l.b16 %v5309
  %v5442 = vunpack.c.l.b16 %v5310
  %v5443 = vunpack.c.l.b16 %v5311
  %v5444 = vunpack.c.l.b16 %v5312
  %v5445 = vunpack.c.l.b16 %v5313
  %v5446 = vunpack.c.l.b16 %v5314
  %v5447 = vunpack.c.l.b16 %v5315
  %v5448 = vunpack.c.l.b16 %v5316
  %v5449 = vunpack.c.l.b16 %v5317
  %v5450 = vunpack.c.l.b16 %v5318
  %v5451 = vunpack.c.l.b16 %v5319
  %v5452 = vunpack.c.l.b16 %v5320
  %v5453 = vunpack.c.l.b16 %v5321
  %v5454 = vunpack.c.l.b16 %v5322
  %v5455 = vunpack.c.l.b16 %v5323
  %v5456 = vunpack.c.l.b16 %v5324
  %v5457 = vunpack.c.l.b16 %v5325
  %v5458 = vunpack.c.l.b16 %v5326
  %v5459 = vunpack.c.l.b16 %v5327
  %v5460 = vunpack.c.l.b16 %v5328
  %v5461 = vunpack.c.l.b16 %v5329
  %v5462 = vunpack.c.l.b16 %v5330
  %v5463 = vunpack.c.l.b16 %v5331
  %v5464 = vunpack.c.l.b16 %v5332
  %v5465 = vunpack.c.l.b16 %v5333
  %v5466 = vunpack.c.l.b16 %v5334
  %v5467 = vunpack.c.l.b16 %v5335
  %v5468 = vunpack.c.l.b16 %v5336
  %v5469 = vunpack.c.l.b16 %v5337
  %v5470 = vunpack.c.l.b16 %v5338
  %v5471 = vunpack.c.l.b16 %v5339
  %v5472 = vunpack.c.l.b16 %v5340
  %v5473 = vunpack.c.l.b16 %v5341
  %v5474 = vunpack.c.l.b16 %v5342
  %v5475 = vunpack.c.l.b16 %v5343
  %v5476 = vunpack.c.l.b16 %v5344
  %v5477 = vunpack.c.l.b16 %v5345
  %v5478 = vunpack.c.l.b16 %v5346
  %v5479 = vunpack.c.l.b16 %v5347
  %v5480 = vunpack.c.l.b16 %v5348
  %v5481 = vunpack.c.l.b16 %v5349
  %v5482 = vunpack.c.l.b16 %v5350
  %v5483 = vunpack.c.l.b16 %v5351
  %v5484 = vunpack.c.l.b16 %v5352
  %v5485 = vunpack.c.l.b16 %v5353
  %v5486 = vunpack.c.l.b16 %v5354
  %v5487 = vunpack.c.l.b16 %v5355
  %v5488 = vunpack.c.l.b16 %v5356
  %v5489 = vunpack.c.l.b16 %v5357
  %v5490 = vunpack.c.l.b16 %v5358
  %v5491 = vunpack.c.l.b16 %v5359
  %v5492 = vunpack.c.l.b16 %v5360
  %v5493 = vunpack.c.l.b16 %v5361
  %v5494 = vunpack.c.l.b16 %v5362
  %v5495 = vunpack.c.l.b16 %v5363
  %v5496 = vpack.c.b16 %v5433, %v5432
  %v5497 = vpack.c.b16 %v5435, %v5434
  %v5498 = vpack.c.b16 %v5437, %v5436
  %v5499 = vpack.c.b16 %v5439, %v5438
  %v5500 = vpack.c.b16 %v5441, %v5440
  %v5501 = vpack.c.b16 %v5443, %v5442
  %v5502 = vpack.c.b16 %v5445, %v5444
  %v5503 = vpack.c.b16 %v5447, %v5446
  %v5504 = vpack.c.b16 %v5449, %v5448
  %v5505 = vpack.c.b16 %v5451, %v5450
  %v5506 = vpack.c.b16 %v5453, %v5452
  %v5507 = vpack.c.b16 %v5455, %v5454
  %v5508 = vpack.c.b16 %v5457, %v5456
  %v5509 = vpack.c.b16 %v5459, %v5458
  %v5510 = vpack.c.b16 %v5461, %v5460
  %v5511 = vpack.c.b16 %v5463, %v5462
  %v5512 = vpack.c.b16 %v5465, %v5464
  %v5513 = vpack.c.b16 %v5467, %v5466
  %v5514 = vpack.c.b16 %v5469, %v5468
  %v5515 = vpack.c.b16 %v5471, %v5470
  %v5516 = vpack.c.b16 %v5473, %v5472
  %v5517 = vpack.c.b16 %v5475, %v5474
  %v5518 = vpack.c.b16 %v5477, %v5476
  %v5519 = vpack.c.b16 %v5479, %v5478
  %v5520 = vpack.c.b16 %v5481, %v5480
  %v5521 = vpack.c.b16 %v5483, %v5482
  %v5522 = vpack.c.b16 %v5485, %v5484
  %v5523 = vpack.c.b16 %v5487, %v5486
  %v5524 = vpack.c.b16 %v5489, %v5488
  %v5525 = vpack.c.b16 %v5491, %v5490
  %v5526 = vpack.c.b16 %v5493, %v5492
  %v5527 = vpack.c.b16 %v5495, %v5494
  %5560 = vmatprep.subr.bf16.mxu0 0
  %5561 = vmatpush1.bf16.msra.mxu0 %v5503
  %5562 = vmatprep.subr.bf16.mxu0 0
  %5563 = vmatpush1.bf16.msra.mxu0 %v5502
  %5564 = vmatprep.subr.bf16.mxu0 0
  %5565 = vmatpush1.bf16.msra.mxu0 %v5501
  %5566 = vmatprep.subr.bf16.mxu0 0
  %5567 = vmatpush1.bf16.msra.mxu0 %v5500
  %5568 = vmatprep.subr.bf16.mxu0 0
  %5569 = vmatpush1.bf16.msra.mxu0 %v5499
  %5570 = vmatprep.subr.bf16.mxu0 0
  %5571 = vmatpush1.bf16.msra.mxu0 %v5498
  %5572 = vmatprep.subr.bf16.mxu0 0
  %5573 = vmatpush1.bf16.msra.mxu0 %v5497
  %5574 = vmatprep.subr.bf16.mxu0 0
  %5575 = vmatpush1.bf16.msra.mxu0 %v5496
  %5576 = vmatprep.subr.bf16.mxu0 0
  %5577 = vmatpush2.bf16.msra.mxu0 %v5511
  %5578 = vmatprep.subr.bf16.mxu0 0
  %5579 = vmatpush2.bf16.msra.mxu0 %v5510
  %5580 = vmatprep.subr.bf16.mxu0 0
  %5581 = vmatpush2.bf16.msra.mxu0 %v5509
  %5582 = vmatprep.subr.bf16.mxu0 0
  %5583 = vmatpush2.bf16.msra.mxu0 %v5508
  %5584 = vmatprep.subr.bf16.mxu0 0
  %5585 = vmatpush2.bf16.msra.mxu0 %v5507
  %5586 = vmatprep.subr.bf16.mxu0 0
  %5587 = vmatpush2.bf16.msra.mxu0 %v5506
  %5588 = vmatprep.subr.bf16.mxu0 0
  %5589 = vmatpush2.bf16.msra.mxu0 %v5505
  %5590 = vmatprep.subr.bf16.mxu0 0
  %5591 = vmatpush2.bf16.msra.mxu0 %v5504
  %5592 = vmatprep.mubr.bf16.mxu0 %v5365
  %5593 = vmatmul.mubr.bf16.gmra.mxu0 %v5364
  %v5594 = vpop.f32.mrf.mxu0
  %v5595 = vadd.f32 0.0, %v5594
  %v5596 = vpop.f32.mrf.mxu0
  %v5597 = vpop.f32.mrf.mxu0
  %v5598 = vpop.f32.mrf.mxu0
  %5599 = vdwg.mxu0
  %5600 = vmatprep.subr.bf16.mxu0 0
  %5601 = vmatpush1.bf16.msra.mxu0 %v5519
  %5602 = vmatprep.subr.bf16.mxu0 0
  %5603 = vmatpush1.bf16.msra.mxu0 %v5518
  %5604 = vmatprep.subr.bf16.mxu0 0
  %5605 = vmatpush1.bf16.msra.mxu0 %v5517
  %5606 = vmatprep.subr.bf16.mxu0 0
  %5607 = vmatpush1.bf16.msra.mxu0 %v5516
  %5608 = vmatprep.subr.bf16.mxu0 0
  %5609 = vmatpush1.bf16.msra.mxu0 %v5515
  %5610 = vmatprep.subr.bf16.mxu0 0
  %5611 = vmatpush1.bf16.msra.mxu0 %v5514
  %5612 = vmatprep.subr.bf16.mxu0 0
  %5613 = vmatpush1.bf16.msra.mxu0 %v5513
  %5614 = vmatprep.subr.bf16.mxu0 0
  %5615 = vmatpush1.bf16.msra.mxu0 %v5512
  %5616 = vmatprep.subr.bf16.mxu0 0
  %5617 = vmatpush2.bf16.msra.mxu0 %v5527
  %5618 = vmatprep.subr.bf16.mxu0 0
  %5619 = vmatpush2.bf16.msra.mxu0 %v5526
  %5620 = vmatprep.subr.bf16.mxu0 0
  %5621 = vmatpush2.bf16.msra.mxu0 %v5525
  %5622 = vmatprep.subr.bf16.mxu0 0
  %5623 = vmatpush2.bf16.msra.mxu0 %v5524
  %5624 = vmatprep.subr.bf16.mxu0 0
  %5625 = vmatpush2.bf16.msra.mxu0 %v5523
  %5626 = vmatprep.subr.bf16.mxu0 0
  %5627 = vmatpush2.bf16.msra.mxu0 %v5522
  %5628 = vmatprep.subr.bf16.mxu0 0
  %5629 = vmatpush2.bf16.msra.mxu0 %v5521
  %5630 = vmatprep.subr.bf16.mxu0 0
  %5631 = vmatpush2.bf16.msra.mxu0 %v5520
  %5632 = vmatprep.mubr.bf16.mxu0 %v5367
  %5633 = vmatmul.mubr.bf16.gmra.mxu0 %v5366
  %v5634 = vpop.f32.mrf.mxu0
  %v5635 = vadd.f32 %v5595, %v5634
  %v5636 = vpop.f32.mrf.mxu0
  %v5637 = vpop.f32.mrf.mxu0
  %v5638 = vpop.f32.mrf.mxu0
  %5639 = vdwg.mxu0
  %v5640 = vlaneseq
  %v5641 = vshrl.u32 %v5640, 7
  %v5642 = vsub.s32 0, %v5641
  %v5643 = vrot.slane %v5151, %v5642
  %v5644 = vadd.f32 %v5635, %v5643
  %v5645 = vmul.f32 %v5644, %v41
  %v5646 = vadd.f32 %v5645, %v27
  %vm5647 = vcmask 259072
  %5648 = vst.msk [vmem:[%s5] sm:$0x3f] %vm5647, %v5646
  // Predicated region
  $region22: #{ofa_forward.1} parent=0 // pred_check
    _
  $region23: #{ofa_forward.1} parent=0 // pred_check_branch
    %5650 = sbr.rel (0) target = $region25
  $region24: #{ofa_forward.1} parent=0 // pred_region
    _
  $region25: #{ofa_forward.1} parent=0 // pred_fallthru
    _
  // Predicated region
  $region26: #{ofa_forward.1} parent=0 // pred_check
    _
  $region27: #{ofa_forward.1} parent=0 // pred_check_branch
    %5652 = sbr.rel (0) target = $region29
  $region28: #{ofa_forward.1} parent=0 // pred_region
    _
  $region29: #{ofa_forward.1} parent=0 // pred_fallthru
    _

</llo_original>
